<compile_context>
chip_gen: v7x
topology: tpu7x:2x2x1
jax: 0.10.0
libtpu: 0.0.40
codegen_flags: <defaults>
</compile_context>

<pallas_src>
import functools

import jax
import jax.numpy as jnp
from jax.experimental import pallas as pl
from jax.experimental.pallas import tpu as pltpu


# --------------------------------------------------------------------------
# Kernel (single grid step, fully in-VMEM recurrence)
# --------------------------------------------------------------------------
def _lstm_latent_3_kernel(
    # inputs
    x_ref,                                  # (T*B, D)  time-major, flat (T,B)
    wih1_ref, whh1_ref, b1_ref,             # (D, 4H1), (H1, 4H1), (1, 4H1)
    wih2_ref, whh2_ref, b2_ref,             # (H1, 4H1), (H1, 4H1), (1, 4H1)
    wih3_ref, whh3_ref, b3_ref,             # (H1, 4H3), (H3, 4H3), (1, 4H3)
    wlin_ref, blin_ref,                     # (H3, D), (1, D)
    # output
    out_ref,                                # (T + future, B, D)
    # scratch
    xw1_ref,                                # (T*B, 4H1) hoisted layer-1 proj
    *, seq_len, future, batch,
):
    B = batch
    H1 = whh1_ref.shape[0]
    H3 = whh3_ref.shape[0]
    D = wlin_ref.shape[1]

    # ---- Hoist ALL loop-invariant ref reads & bias broadcasts (the loops
    # below are fully unrolled; without this every step re-emits them). ----
    wih1 = wih1_ref[...]
    whh1 = whh1_ref[...]
    wih2 = wih2_ref[...]
    whh2 = whh2_ref[...]
    wih3 = wih3_ref[...]
    whh3 = whh3_ref[...]
    wlin = wlin_ref[...]
    b1 = jnp.broadcast_to(b1_ref[...], (B, 4 * H1))
    b2 = jnp.broadcast_to(b2_ref[...], (B, 4 * H1))
    b3 = jnp.broadcast_to(b3_ref[...], (B, 4 * H3))
    blin = jnp.broadcast_to(blin_ref[...], (B, D))

    # Hoisted: layer-1 input contribution (+ bias) for all real timesteps in
    # ONE batched matmul (M = T*B) instead of T tiny serial matmuls.
    xw1_ref[...] = (
        jnp.dot(x_ref[...], wih1, preferred_element_type=jnp.float32)
        + b1_ref[...]
    )

    def gates(g, c, H):
        # ONE full-width sigmoid over the whole (B, 4H) pre-activation; the
        # g-gate columns were pre-scaled x2 in pack_params, so
        # tanh(z) = 2*sigmoid(2z) - 1 is a single VALU fma after the EUP op.
        a = jax.nn.sigmoid(g)
        i = a[:, 0 * H:1 * H]
        f = a[:, 1 * H:2 * H]
        gg = 2.0 * a[:, 2 * H:3 * H] - 1.0
        o = a[:, 3 * H:4 * H]
        c_new = f * c + i * gg
        return o * jnp.tanh(c_new), c_new

    def upper_layers(h1, h2, c2, h3, c3):
        # Layers 2 & 3: two independent matmuls + free VALU add
        # (no per-step XLU lane concat on the critical path).
        g2 = (jnp.dot(h1, wih2, preferred_element_type=jnp.float32)
              + jnp.dot(h2, whh2, preferred_element_type=jnp.float32) + b2)
        h2, c2 = gates(g2, c2, H1)
        g3 = (jnp.dot(h2, wih3, preferred_element_type=jnp.float32)
              + jnp.dot(h3, whh3, preferred_element_type=jnp.float32) + b3)
        h3, c3 = gates(g3, c3, H3)
        out = jnp.dot(h3, wlin, preferred_element_type=jnp.float32) + blin
        return h2, c2, h3, c3, out

    z = lambda n: jnp.zeros((B, n), jnp.float32)
    h1, c1, h2, c2, h3, c3 = z(H1), z(H1), z(H1), z(H1), z(H3), z(H3)
    out = z(D)  # defined even if seq_len == 0 and future > 0

    # Fully-unrolled recurrence over real timesteps (small static trip count).
    for t in range(seq_len):
        g1 = (xw1_ref[pl.ds(t * B, B), :]
              + jnp.dot(h1, whh1, preferred_element_type=jnp.float32))
        h1, c1 = gates(g1, c1, H1)
        h2, c2, h3, c3, out = upper_layers(h1, h2, c2, h3, c3)
        out_ref[t] = out

    # Autoregressive extrapolation: feed previous output back in-register.
    for i in range(future):
        g1 = (jnp.dot(out, wih1, preferred_element_type=jnp.float32)
              + jnp.dot(h1, whh1, preferred_element_type=jnp.float32) + b1)
        h1, c1 = gates(g1, c1, H1)
        h2, c2, h3, c3, out = upper_layers(h1, h2, c2, h3, c3)
        out_ref[seq_len + i] = out


# --------------------------------------------------------------------------
# Wrapper
# --------------------------------------------------------------------------
def lstm_latent_3_forward(x, packed, future=0):
    """x: (B, T, D) float32. Returns (T + future, B, D) float32."""
    B, T, D = x.shape
    (wih1, whh1, b1, wih2, whh2, b2, wih3, whh3, b3, wlin, blin) = packed
    H1 = whh1.shape[0]
    total = T + future

    # Time-major, flattened over (T, B): rows t*B .. t*B+B-1 are timestep t.
    x_flat = jnp.transpose(x, (1, 0, 2)).reshape(T * B, D)

    full = lambda a: pl.BlockSpec(a.shape, lambda i: (0,) * a.ndim)
    kernel = functools.partial(_lstm_latent_3_kernel,
                               seq_len=T, future=future, batch=B)

    return pl.pallas_call(
        kernel,
        out_shape=jax.ShapeDtypeStruct((total, B, D), jnp.float32),
        grid_spec=pltpu.PrefetchScalarGridSpec(
            num_scalar_prefetch=0,
            grid=(1,),  # single step: whole recurrence runs inside the kernel
            in_specs=[
                pl.BlockSpec((T * B, D), lambda i: (0, 0)),
                full(wih1), full(whh1), full(b1),
                full(wih2), full(whh2), full(b2),
                full(wih3), full(whh3), full(b3),
                full(wlin), full(blin),
            ],
            out_specs=pl.BlockSpec((total, B, D), lambda i: (0, 0, 0)),
            scratch_shapes=[pltpu.VMEM((T * B, 4 * H1), jnp.float32)],
        ),
        compiler_params=pltpu.CompilerParams(
            dimension_semantics=("arbitrary",),
        ),
    )(x_flat, wih1, whh1, b1, wih2, whh2, b2, wih3, whh3, b3, wlin, blin)


# --------------------------------------------------------------------------
# Parameter init in raw PyTorch layout (gates i, f, g, o) + packing
# --------------------------------------------------------------------------
def init_params(key, n_hidden=64, dim_latent=32):
    H1 = n_hidden // 2
    H3 = n_hidden
    D = dim_latent

    def uniform(k, shape, bound):
        return jax.random.uniform(k, shape, jnp.float32, -bound, bound)

    ks = iter(jax.random.split(key, 14))

    def lstm_raw(in_dim, hid):
        bound = 1.0 / float(hid) ** 0.5
        w_ih = uniform(next(ks), (4 * hid, in_dim), bound)   # torch layout
        w_hh = uniform(next(ks), (4 * hid, hid), bound)
        b_ih = uniform(next(ks), (4 * hid,), bound)
        b_hh = uniform(next(ks), (4 * hid,), bound)
        return (w_ih, w_hh, b_ih, b_hh)

    l1 = lstm_raw(D, H1)
    l2 = lstm_raw(H1, H1)
    l3 = lstm_raw(H1, H3)
    bound = 1.0 / float(H3) ** 0.5
    w_lin = uniform(next(ks), (D, H3), bound)   # torch Linear weight (out, in)
    b_lin = uniform(next(ks), (D,), bound)
    return (l1, l2, l3, (w_lin, b_lin))


def pack_params(raw):
    """Pre-transpose weights into kernel layout + pre-scale g-gate columns.

    The g-gate columns (2H:3H along the 4H axis) of Wih, Whh and the combined
    bias are scaled by 2 so the kernel can apply ONE full-width sigmoid and
    recover tanh(z) = 2*sigmoid(2z) - 1.
    """
    (l1, l2, l3, (w_lin, b_lin)) = raw

    def prep(w_ih, w_hh, b_ih, b_hh):
        H = w_hh.shape[1]
        scale = jnp.concatenate([
            jnp.ones((2 * H,), jnp.float32),
            jnp.full((H,), 2.0, jnp.float32),
            jnp.ones((H,), jnp.float32),
        ])[None, :]                                   # (1, 4H)
        wih = w_ih.T * scale                          # (in, 4H)
        whh = w_hh.T * scale                          # (H, 4H)
        b = ((b_ih + b_hh)[None, :]) * scale          # (1, 4H)
        return wih, whh, b

    wih1, whh1, b1 = prep(*l1)
    wih2, whh2, b2 = prep(*l2)
    wih3, whh3, b3 = prep(*l3)
    wlin = w_lin.T                                    # (H3, D)
    blin = b_lin[None, :]
    return (wih1, whh1, b1, wih2, whh2, b2, wih3, whh3, b3, wlin, blin)


# --------------------------------------------------------------------------
# Pure-JAX reference (mirrors the PyTorch forward exactly, raw weights)
# --------------------------------------------------------------------------
def reference_forward(x, raw, future=0):
    (l1, l2, l3, (w_lin, b_lin)) = raw
    B, T, D = x.shape

    def cell(x_in, h, c, p):
        w_ih, w_hh, b_ih, b_hh = p
        H = h.shape[1]
        g = x_in @ w_ih.T + b_ih + h @ w_hh.T + b_hh
        i = jax.nn.sigmoid(g[:, :H])
        f = jax.nn.sigmoid(g[:, H:2 * H])
        gg = jnp.tanh(g[:, 2 * H:3 * H])
        o = jax.nn.sigmoid(g[:, 3 * H:])
        c_new = f * c + i * gg
        return o * jnp.tanh(c_new), c_new

    H1 = l1[1].shape[1]
    H3 = l3[1].shape[1]
    h1 = jnp.zeros((B, H1)); c1 = jnp.zeros((B, H1))
    h2 = jnp.zeros((B, H1)); c2 = jnp.zeros((B, H1))
    h3 = jnp.zeros((B, H3)); c3 = jnp.zeros((B, H3))
    outs = []
    out = None
    for t in range(T):
        h1, c1 = cell(x[:, t], h1, c1, l1)
        h2, c2 = cell(h1, h2, c2, l2)
        h3, c3 = cell(h2, h3, c3, l3)
        out = h3 @ w_lin.T + b_lin
        outs.append(out)
    for _ in range(future):
        h1, c1 = cell(out, h1, c1, l1)
        h2, c2 = cell(h1, h2, c2, l2)
        h3, c3 = cell(h2, h3, c3, l3)
        out = h3 @ w_lin.T + b_lin
        outs.append(out)
    return jnp.stack(outs)


if __name__ == "__main__":
    B, T = 8, 8
    n_hidden, dim_latent = 64, 32

    key = jax.random.PRNGKey(0)
    kx, kp = jax.random.split(key)
    x = jax.random.normal(kx, (B, T, dim_latent), dtype=jnp.float32)
    raw = init_params(kp, n_hidden=n_hidden, dim_latent=dim_latent)
    packed = pack_params(raw)

    # default forward (future=0)
    out = lstm_latent_3_forward(x, packed, future=0)
    out = jax.block_until_ready(out)
    ref = reference_forward(x, raw, future=0)
    assert out.shape == (T, B, dim_latent)
    assert jnp.allclose(out, ref, rtol=1e-4, atol=1e-4), (
        f"mismatch: max abs err {jnp.max(jnp.abs(out - ref))}")

    # autoregressive extrapolation (future=2)
    out_f = lstm_latent_3_forward(x, packed, future=2)
    out_f = jax.block_until_ready(out_f)
    ref_f = reference_forward(x, raw, future=2)
    assert out_f.shape == (T + 2, B, dim_latent)
    assert jnp.allclose(out_f, ref_f, rtol=1e-4, atol=1e-4), (
        f"mismatch (future): max abs err {jnp.max(jnp.abs(out_f - ref_f))}")

    print("KERNEL_OK")
</pallas_src>

<mosaic_0001>
module attributes {stable_mosaic.version = 11 : i64} {
  func.func @_lstm_latent_3_kernel(%arg0: i32, %arg1: memref<64x32xf32, #tpu.memory_space<vmem>>, %arg2: memref<32x128xf32, #tpu.memory_space<vmem>>, %arg3: memref<32x128xf32, #tpu.memory_space<vmem>>, %arg4: memref<1x128xf32, #tpu.memory_space<vmem>>, %arg5: memref<32x128xf32, #tpu.memory_space<vmem>>, %arg6: memref<32x128xf32, #tpu.memory_space<vmem>>, %arg7: memref<1x128xf32, #tpu.memory_space<vmem>>, %arg8: memref<32x256xf32, #tpu.memory_space<vmem>>, %arg9: memref<64x256xf32, #tpu.memory_space<vmem>>, %arg10: memref<1x256xf32, #tpu.memory_space<vmem>>, %arg11: memref<64x32xf32, #tpu.memory_space<vmem>>, %arg12: memref<1x32xf32, #tpu.memory_space<vmem>>, %arg13: memref<8x8x32xf32, #tpu.memory_space<vmem>>, %arg14: memref<64x128xf32, #tpu.memory_space<vmem>>) attributes {dimension_semantics = [#tpu.dimension_semantics<arbitrary>], iteration_bounds = array<i64: 1>, scalar_prefetch = 0 : i64, scratch_operands = 1 : i64, tpu.core_type = #tpu.core_type<tc>, window_params = [{pipeline_mode = #tpu.pipeline_mode<synchronous>, transform_indices = @transform_0, window_bounds = array<i64: 64, 32>}, {pipeline_mode = #tpu.pipeline_mode<synchronous>, transform_indices = @transform_1, window_bounds = array<i64: 32, 128>}, {pipeline_mode = #tpu.pipeline_mode<synchronous>, transform_indices = @transform_2, window_bounds = array<i64: 32, 128>}, {pipeline_mode = #tpu.pipeline_mode<synchronous>, transform_indices = @transform_3, window_bounds = array<i64: 1, 128>}, {pipeline_mode = #tpu.pipeline_mode<synchronous>, transform_indices = @transform_4, window_bounds = array<i64: 32, 128>}, {pipeline_mode = #tpu.pipeline_mode<synchronous>, transform_indices = @transform_5, window_bounds = array<i64: 32, 128>}, {pipeline_mode = #tpu.pipeline_mode<synchronous>, transform_indices = @transform_6, window_bounds = array<i64: 1, 128>}, {pipeline_mode = #tpu.pipeline_mode<synchronous>, transform_indices = @transform_7, window_bounds = array<i64: 32, 256>}, {pipeline_mode = #tpu.pipeline_mode<synchronous>, transform_indices = @transform_8, window_bounds = array<i64: 64, 256>}, {pipeline_mode = #tpu.pipeline_mode<synchronous>, transform_indices = @transform_9, window_bounds = array<i64: 1, 256>}, {pipeline_mode = #tpu.pipeline_mode<synchronous>, transform_indices = @transform_10, window_bounds = array<i64: 64, 32>}, {pipeline_mode = #tpu.pipeline_mode<synchronous>, transform_indices = @transform_11, window_bounds = array<i64: 1, 32>}, {pipeline_mode = #tpu.pipeline_mode<synchronous>, transform_indices = @transform_12, window_bounds = array<i64: 8, 8, 32>}]} {
    %c0 = arith.constant 0 : index
    %c0_0 = arith.constant 0 : index
    %0 = vector.load %arg2[%c0, %c0_0] : memref<32x128xf32, #tpu.memory_space<vmem>>, vector<32x128xf32>
    %c0_1 = arith.constant 0 : index
    %c0_2 = arith.constant 0 : index
    %1 = vector.load %arg3[%c0_1, %c0_2] : memref<32x128xf32, #tpu.memory_space<vmem>>, vector<32x128xf32>
    %c0_3 = arith.constant 0 : index
    %c0_4 = arith.constant 0 : index
    %2 = vector.load %arg5[%c0_3, %c0_4] : memref<32x128xf32, #tpu.memory_space<vmem>>, vector<32x128xf32>
    %c0_5 = arith.constant 0 : index
    %c0_6 = arith.constant 0 : index
    %3 = vector.load %arg6[%c0_5, %c0_6] : memref<32x128xf32, #tpu.memory_space<vmem>>, vector<32x128xf32>
    %c0_7 = arith.constant 0 : index
    %c0_8 = arith.constant 0 : index
    %4 = vector.load %arg8[%c0_7, %c0_8] : memref<32x256xf32, #tpu.memory_space<vmem>>, vector<32x256xf32>
    %c0_9 = arith.constant 0 : index
    %c0_10 = arith.constant 0 : index
    %5 = vector.load %arg9[%c0_9, %c0_10] : memref<64x256xf32, #tpu.memory_space<vmem>>, vector<64x256xf32>
    %c0_11 = arith.constant 0 : index
    %c0_12 = arith.constant 0 : index
    %6 = vector.load %arg11[%c0_11, %c0_12] : memref<64x32xf32, #tpu.memory_space<vmem>>, vector<64x32xf32>
    %c0_13 = arith.constant 0 : index
    %c0_14 = arith.constant 0 : index
    %7 = vector.load %arg7[%c0_13, %c0_14] : memref<1x128xf32, #tpu.memory_space<vmem>>, vector<1x128xf32>
    %8 = vector.shape_cast %7 : vector<1x128xf32> to vector<1x128xf32>
    %9 = vector.broadcast %8 : vector<1x128xf32> to vector<8x128xf32>
    %c0_15 = arith.constant 0 : index
    %c0_16 = arith.constant 0 : index
    %10 = vector.load %arg10[%c0_15, %c0_16] : memref<1x256xf32, #tpu.memory_space<vmem>>, vector<1x256xf32>
    %11 = vector.shape_cast %10 : vector<1x256xf32> to vector<1x256xf32>
    %12 = vector.broadcast %11 : vector<1x256xf32> to vector<8x256xf32>
    %c0_17 = arith.constant 0 : index
    %c0_18 = arith.constant 0 : index
    %13 = vector.load %arg12[%c0_17, %c0_18] : memref<1x32xf32, #tpu.memory_space<vmem>>, vector<1x32xf32>
    %14 = vector.shape_cast %13 : vector<1x32xf32> to vector<1x32xf32>
    %15 = vector.broadcast %14 : vector<1x32xf32> to vector<8x32xf32>
    %c0_19 = arith.constant 0 : index
    %c0_20 = arith.constant 0 : index
    %16 = vector.load %arg1[%c0_19, %c0_20] : memref<64x32xf32, #tpu.memory_space<vmem>>, vector<64x32xf32>
    %cst = arith.constant dense<0.000000e+00> : vector<64x128xf32>
    %17 = tpu.matmul %16, %0, %cst {dimension_numbers = #tpu.dot_dimension_numbers<[1], [0], [0], [1], [0, 0, 1, 1], [], []>} : vector<64x32xf32>, vector<32x128xf32>, vector<64x128xf32> -> vector<64x128xf32>
    %c0_21 = arith.constant 0 : index
    %c0_22 = arith.constant 0 : index
    %18 = vector.load %arg4[%c0_21, %c0_22] : memref<1x128xf32, #tpu.memory_space<vmem>>, vector<1x128xf32>
    %19 = vector.broadcast %18 : vector<1x128xf32> to vector<64x128xf32>
    %20 = arith.addf %17, %19 : vector<64x128xf32>
    %c0_23 = arith.constant 0 : index
    %c0_24 = arith.constant 0 : index
    %21 = vector.load %arg14[%c0_23, %c0_24] : memref<64x128xf32, #tpu.memory_space<vmem>>, vector<64x128xf32>
    tpu.vector_store %arg14[%c0_23, %c0_24], %20 {strides = array<i32>} : memref<64x128xf32, #tpu.memory_space<vmem>>, vector<64x128xf32>,
    %cst_25 = arith.constant 0.000000e+00 : f32
    %22 = vector.broadcast %cst_25 : f32 to vector<8x32xf32>
    %cst_26 = arith.constant 0.000000e+00 : f32
    %23 = vector.broadcast %cst_26 : f32 to vector<8x32xf32>
    %cst_27 = arith.constant 0.000000e+00 : f32
    %24 = vector.broadcast %cst_27 : f32 to vector<8x32xf32>
    %cst_28 = arith.constant 0.000000e+00 : f32
    %25 = vector.broadcast %cst_28 : f32 to vector<8x32xf32>
    %cst_29 = arith.constant 0.000000e+00 : f32
    %26 = vector.broadcast %cst_29 : f32 to vector<8x64xf32>
    %cst_30 = arith.constant 0.000000e+00 : f32
    %27 = vector.broadcast %cst_30 : f32 to vector<8x64xf32>
    %c0_31 = arith.constant 0 : index
    %c0_32 = arith.constant 0 : index
    %28 = vector.load %arg14[%c0_31, %c0_32] : memref<64x128xf32, #tpu.memory_space<vmem>>, vector<8x128xf32>
    %cst_33 = arith.constant dense<0.000000e+00> : vector<8x128xf32>
    %29 = tpu.matmul %22, %1, %cst_33 {dimension_numbers = #tpu.dot_dimension_numbers<[1], [0], [0], [1], [0, 0, 1, 1], [], []>} : vector<8x32xf32>, vector<32x128xf32>, vector<8x128xf32> -> vector<8x128xf32>
    %30 = arith.addf %28, %29 : vector<8x128xf32>
    %31 = arith.negf %30 : vector<8x128xf32>
    %32 = math.exp %31 : vector<8x128xf32>
    %cst_34 = arith.constant 1.000000e+00 : f32
    %33 = vector.broadcast %cst_34 : f32 to vector<8x128xf32>
    %34 = arith.addf %33, %32 : vector<8x128xf32>
    %35 = arith.divf %33, %34 : vector<8x128xf32>
    %36 = vector.extract_strided_slice %35 {offsets = [0, 0], sizes = [8, 32], strides = [1, 1]} : vector<8x128xf32> to vector<8x32xf32>
    %37 = vector.extract_strided_slice %35 {offsets = [0, 32], sizes = [8, 32], strides = [1, 1]} : vector<8x128xf32> to vector<8x32xf32>
    %38 = vector.extract_strided_slice %35 {offsets = [0, 64], sizes = [8, 32], strides = [1, 1]} : vector<8x128xf32> to vector<8x32xf32>
    %cst_35 = arith.constant 2.000000e+00 : f32
    %39 = vector.broadcast %cst_35 : f32 to vector<8x32xf32>
    %40 = arith.mulf %39, %38 : vector<8x32xf32>
    %cst_36 = arith.constant 1.000000e+00 : f32
    %41 = vector.broadcast %cst_36 : f32 to vector<8x32xf32>
    %42 = arith.subf %40, %41 : vector<8x32xf32>
    %43 = vector.extract_strided_slice %35 {offsets = [0, 96], sizes = [8, 32], strides = [1, 1]} : vector<8x128xf32> to vector<8x32xf32>
    %44 = arith.mulf %37, %23 : vector<8x32xf32>
    %45 = arith.mulf %36, %42 : vector<8x32xf32>
    %46 = arith.addf %44, %45 : vector<8x32xf32>
    %47 = math.tanh %46 : vector<8x32xf32>
    %48 = arith.mulf %43, %47 : vector<8x32xf32>
    %cst_37 = arith.constant dense<0.000000e+00> : vector<8x128xf32>
    %49 = tpu.matmul %48, %2, %cst_37 {dimension_numbers = #tpu.dot_dimension_numbers<[1], [0], [0], [1], [0, 0, 1, 1], [], []>} : vector<8x32xf32>, vector<32x128xf32>, vector<8x128xf32> -> vector<8x128xf32>
    %cst_38 = arith.constant dense<0.000000e+00> : vector<8x128xf32>
    %50 = tpu.matmul %24, %3, %cst_38 {dimension_numbers = #tpu.dot_dimension_numbers<[1], [0], [0], [1], [0, 0, 1, 1], [], []>} : vector<8x32xf32>, vector<32x128xf32>, vector<8x128xf32> -> vector<8x128xf32>
    %51 = arith.addf %49, %50 : vector<8x128xf32>
    %52 = arith.addf %51, %9 : vector<8x128xf32>
    %53 = arith.negf %52 : vector<8x128xf32>
    %54 = math.exp %53 : vector<8x128xf32>
    %cst_39 = arith.constant 1.000000e+00 : f32
    %55 = vector.broadcast %cst_39 : f32 to vector<8x128xf32>
    %56 = arith.addf %55, %54 : vector<8x128xf32>
    %57 = arith.divf %55, %56 : vector<8x128xf32>
    %58 = vector.extract_strided_slice %57 {offsets = [0, 0], sizes = [8, 32], strides = [1, 1]} : vector<8x128xf32> to vector<8x32xf32>
    %59 = vector.extract_strided_slice %57 {offsets = [0, 32], sizes = [8, 32], strides = [1, 1]} : vector<8x128xf32> to vector<8x32xf32>
    %60 = vector.extract_strided_slice %57 {offsets = [0, 64], sizes = [8, 32], strides = [1, 1]} : vector<8x128xf32> to vector<8x32xf32>
    %cst_40 = arith.constant 2.000000e+00 : f32
    %61 = vector.broadcast %cst_40 : f32 to vector<8x32xf32>
    %62 = arith.mulf %61, %60 : vector<8x32xf32>
    %cst_41 = arith.constant 1.000000e+00 : f32
    %63 = vector.broadcast %cst_41 : f32 to vector<8x32xf32>
    %64 = arith.subf %62, %63 : vector<8x32xf32>
    %65 = vector.extract_strided_slice %57 {offsets = [0, 96], sizes = [8, 32], strides = [1, 1]} : vector<8x128xf32> to vector<8x32xf32>
    %66 = arith.mulf %59, %25 : vector<8x32xf32>
    %67 = arith.mulf %58, %64 : vector<8x32xf32>
    %68 = arith.addf %66, %67 : vector<8x32xf32>
    %69 = math.tanh %68 : vector<8x32xf32>
    %70 = arith.mulf %65, %69 : vector<8x32xf32>
    %cst_42 = arith.constant dense<0.000000e+00> : vector<8x256xf32>
    %71 = tpu.matmul %70, %4, %cst_42 {dimension_numbers = #tpu.dot_dimension_numbers<[1], [0], [0], [1], [0, 0, 1, 1], [], []>} : vector<8x32xf32>, vector<32x256xf32>, vector<8x256xf32> -> vector<8x256xf32>
    %cst_43 = arith.constant dense<0.000000e+00> : vector<8x256xf32>
    %72 = tpu.matmul %26, %5, %cst_43 {dimension_numbers = #tpu.dot_dimension_numbers<[1], [0], [0], [1], [0, 0, 1, 1], [], []>} : vector<8x64xf32>, vector<64x256xf32>, vector<8x256xf32> -> vector<8x256xf32>
    %73 = arith.addf %71, %72 : vector<8x256xf32>
    %74 = arith.addf %73, %12 : vector<8x256xf32>
    %75 = arith.negf %74 : vector<8x256xf32>
    %76 = math.exp %75 : vector<8x256xf32>
    %cst_44 = arith.constant 1.000000e+00 : f32
    %77 = vector.broadcast %cst_44 : f32 to vector<8x256xf32>
    %78 = arith.addf %77, %76 : vector<8x256xf32>
    %79 = arith.divf %77, %78 : vector<8x256xf32>
    %80 = vector.extract_strided_slice %79 {offsets = [0, 0], sizes = [8, 64], strides = [1, 1]} : vector<8x256xf32> to vector<8x64xf32>
    %81 = vector.extract_strided_slice %79 {offsets = [0, 64], sizes = [8, 64], strides = [1, 1]} : vector<8x256xf32> to vector<8x64xf32>
    %82 = vector.extract_strided_slice %79 {offsets = [0, 128], sizes = [8, 64], strides = [1, 1]} : vector<8x256xf32> to vector<8x64xf32>
    %cst_45 = arith.constant 2.000000e+00 : f32
    %83 = vector.broadcast %cst_45 : f32 to vector<8x64xf32>
    %84 = arith.mulf %83, %82 : vector<8x64xf32>
    %cst_46 = arith.constant 1.000000e+00 : f32
    %85 = vector.broadcast %cst_46 : f32 to vector<8x64xf32>
    %86 = arith.subf %84, %85 : vector<8x64xf32>
    %87 = vector.extract_strided_slice %79 {offsets = [0, 192], sizes = [8, 64], strides = [1, 1]} : vector<8x256xf32> to vector<8x64xf32>
    %88 = arith.mulf %81, %27 : vector<8x64xf32>
    %89 = arith.mulf %80, %86 : vector<8x64xf32>
    %90 = arith.addf %88, %89 : vector<8x64xf32>
    %91 = math.tanh %90 : vector<8x64xf32>
    %92 = arith.mulf %87, %91 : vector<8x64xf32>
    %cst_47 = arith.constant dense<0.000000e+00> : vector<8x32xf32>
    %93 = tpu.matmul %92, %6, %cst_47 {dimension_numbers = #tpu.dot_dimension_numbers<[1], [0], [0], [1], [0, 0, 1, 1], [], []>} : vector<8x64xf32>, vector<64x32xf32>, vector<8x32xf32> -> vector<8x32xf32>
    %94 = arith.addf %93, %15 : vector<8x32xf32>
    %c0_48 = arith.constant 0 : index
    %c0_49 = arith.constant 0 : index
    %c0_50 = arith.constant 0 : index
    %95 = vector.load %arg13[%c0_48, %c0_49, %c0_50] : memref<8x8x32xf32, #tpu.memory_space<vmem>>, vector<1x8x32xf32>
    %96 = vector.shape_cast %95 : vector<1x8x32xf32> to vector<8x32xf32>
    %97 = vector.shape_cast %94 : vector<8x32xf32> to vector<1x8x32xf32>
    tpu.vector_store %arg13[%c0_48, %c0_49, %c0_50], %97 {strides = array<i32>} : memref<8x8x32xf32, #tpu.memory_space<vmem>>, vector<1x8x32xf32>,
    %c8 = arith.constant 8 : index
    %c0_51 = arith.constant 0 : index
    %98 = vector.load %arg14[%c8, %c0_51] : memref<64x128xf32, #tpu.memory_space<vmem>>, vector<8x128xf32>
    %cst_52 = arith.constant dense<0.000000e+00> : vector<8x128xf32>
    %99 = tpu.matmul %48, %1, %cst_52 {dimension_numbers = #tpu.dot_dimension_numbers<[1], [0], [0], [1], [0, 0, 1, 1], [], []>} : vector<8x32xf32>, vector<32x128xf32>, vector<8x128xf32> -> vector<8x128xf32>
    %100 = arith.addf %98, %99 : vector<8x128xf32>
    %101 = arith.negf %100 : vector<8x128xf32>
    %102 = math.exp %101 : vector<8x128xf32>
    %cst_53 = arith.constant 1.000000e+00 : f32
    %103 = vector.broadcast %cst_53 : f32 to vector<8x128xf32>
    %104 = arith.addf %103, %102 : vector<8x128xf32>
    %105 = arith.divf %103, %104 : vector<8x128xf32>
    %106 = vector.extract_strided_slice %105 {offsets = [0, 0], sizes = [8, 32], strides = [1, 1]} : vector<8x128xf32> to vector<8x32xf32>
    %107 = vector.extract_strided_slice %105 {offsets = [0, 32], sizes = [8, 32], strides = [1, 1]} : vector<8x128xf32> to vector<8x32xf32>
    %108 = vector.extract_strided_slice %105 {offsets = [0, 64], sizes = [8, 32], strides = [1, 1]} : vector<8x128xf32> to vector<8x32xf32>
    %cst_54 = arith.constant 2.000000e+00 : f32
    %109 = vector.broadcast %cst_54 : f32 to vector<8x32xf32>
    %110 = arith.mulf %109, %108 : vector<8x32xf32>
    %cst_55 = arith.constant 1.000000e+00 : f32
    %111 = vector.broadcast %cst_55 : f32 to vector<8x32xf32>
    %112 = arith.subf %110, %111 : vector<8x32xf32>
    %113 = vector.extract_strided_slice %105 {offsets = [0, 96], sizes = [8, 32], strides = [1, 1]} : vector<8x128xf32> to vector<8x32xf32>
    %114 = arith.mulf %107, %46 : vector<8x32xf32>
    %115 = arith.mulf %106, %112 : vector<8x32xf32>
    %116 = arith.addf %114, %115 : vector<8x32xf32>
    %117 = math.tanh %116 : vector<8x32xf32>
    %118 = arith.mulf %113, %117 : vector<8x32xf32>
    %cst_56 = arith.constant dense<0.000000e+00> : vector<8x128xf32>
    %119 = tpu.matmul %118, %2, %cst_56 {dimension_numbers = #tpu.dot_dimension_numbers<[1], [0], [0], [1], [0, 0, 1, 1], [], []>} : vector<8x32xf32>, vector<32x128xf32>, vector<8x128xf32> -> vector<8x128xf32>
    %cst_57 = arith.constant dense<0.000000e+00> : vector<8x128xf32>
    %120 = tpu.matmul %70, %3, %cst_57 {dimension_numbers = #tpu.dot_dimension_numbers<[1], [0], [0], [1], [0, 0, 1, 1], [], []>} : vector<8x32xf32>, vector<32x128xf32>, vector<8x128xf32> -> vector<8x128xf32>
    %121 = arith.addf %119, %120 : vector<8x128xf32>
    %122 = arith.addf %121, %9 : vector<8x128xf32>
    %123 = arith.negf %122 : vector<8x128xf32>
    %124 = math.exp %123 : vector<8x128xf32>
    %cst_58 = arith.constant 1.000000e+00 : f32
    %125 = vector.broadcast %cst_58 : f32 to vector<8x128xf32>
    %126 = arith.addf %125, %124 : vector<8x128xf32>
    %127 = arith.divf %125, %126 : vector<8x128xf32>
    %128 = vector.extract_strided_slice %127 {offsets = [0, 0], sizes = [8, 32], strides = [1, 1]} : vector<8x128xf32> to vector<8x32xf32>
    %129 = vector.extract_strided_slice %127 {offsets = [0, 32], sizes = [8, 32], strides = [1, 1]} : vector<8x128xf32> to vector<8x32xf32>
    %130 = vector.extract_strided_slice %127 {offsets = [0, 64], sizes = [8, 32], strides = [1, 1]} : vector<8x128xf32> to vector<8x32xf32>
    %cst_59 = arith.constant 2.000000e+00 : f32
    %131 = vector.broadcast %cst_59 : f32 to vector<8x32xf32>
    %132 = arith.mulf %131, %130 : vector<8x32xf32>
    %cst_60 = arith.constant 1.000000e+00 : f32
    %133 = vector.broadcast %cst_60 : f32 to vector<8x32xf32>
    %134 = arith.subf %132, %133 : vector<8x32xf32>
    %135 = vector.extract_strided_slice %127 {offsets = [0, 96], sizes = [8, 32], strides = [1, 1]} : vector<8x128xf32> to vector<8x32xf32>
    %136 = arith.mulf %129, %68 : vector<8x32xf32>
    %137 = arith.mulf %128, %134 : vector<8x32xf32>
    %138 = arith.addf %136, %137 : vector<8x32xf32>
    %139 = math.tanh %138 : vector<8x32xf32>
    %140 = arith.mulf %135, %139 : vector<8x32xf32>
    %cst_61 = arith.constant dense<0.000000e+00> : vector<8x256xf32>
    %141 = tpu.matmul %140, %4, %cst_61 {dimension_numbers = #tpu.dot_dimension_numbers<[1], [0], [0], [1], [0, 0, 1, 1], [], []>} : vector<8x32xf32>, vector<32x256xf32>, vector<8x256xf32> -> vector<8x256xf32>
    %cst_62 = arith.constant dense<0.000000e+00> : vector<8x256xf32>
    %142 = tpu.matmul %92, %5, %cst_62 {dimension_numbers = #tpu.dot_dimension_numbers<[1], [0], [0], [1], [0, 0, 1, 1], [], []>} : vector<8x64xf32>, vector<64x256xf32>, vector<8x256xf32> -> vector<8x256xf32>
    %143 = arith.addf %141, %142 : vector<8x256xf32>
    %144 = arith.addf %143, %12 : vector<8x256xf32>
    %145 = arith.negf %144 : vector<8x256xf32>
    %146 = math.exp %145 : vector<8x256xf32>
    %cst_63 = arith.constant 1.000000e+00 : f32
    %147 = vector.broadcast %cst_63 : f32 to vector<8x256xf32>
    %148 = arith.addf %147, %146 : vector<8x256xf32>
    %149 = arith.divf %147, %148 : vector<8x256xf32>
    %150 = vector.extract_strided_slice %149 {offsets = [0, 0], sizes = [8, 64], strides = [1, 1]} : vector<8x256xf32> to vector<8x64xf32>
    %151 = vector.extract_strided_slice %149 {offsets = [0, 64], sizes = [8, 64], strides = [1, 1]} : vector<8x256xf32> to vector<8x64xf32>
    %152 = vector.extract_strided_slice %149 {offsets = [0, 128], sizes = [8, 64], strides = [1, 1]} : vector<8x256xf32> to vector<8x64xf32>
    %cst_64 = arith.constant 2.000000e+00 : f32
    %153 = vector.broadcast %cst_64 : f32 to vector<8x64xf32>
    %154 = arith.mulf %153, %152 : vector<8x64xf32>
    %cst_65 = arith.constant 1.000000e+00 : f32
    %155 = vector.broadcast %cst_65 : f32 to vector<8x64xf32>
    %156 = arith.subf %154, %155 : vector<8x64xf32>
    %157 = vector.extract_strided_slice %149 {offsets = [0, 192], sizes = [8, 64], strides = [1, 1]} : vector<8x256xf32> to vector<8x64xf32>
    %158 = arith.mulf %151, %90 : vector<8x64xf32>
    %159 = arith.mulf %150, %156 : vector<8x64xf32>
    %160 = arith.addf %158, %159 : vector<8x64xf32>
    %161 = math.tanh %160 : vector<8x64xf32>
    %162 = arith.mulf %157, %161 : vector<8x64xf32>
    %cst_66 = arith.constant dense<0.000000e+00> : vector<8x32xf32>
    %163 = tpu.matmul %162, %6, %cst_66 {dimension_numbers = #tpu.dot_dimension_numbers<[1], [0], [0], [1], [0, 0, 1, 1], [], []>} : vector<8x64xf32>, vector<64x32xf32>, vector<8x32xf32> -> vector<8x32xf32>
    %164 = arith.addf %163, %15 : vector<8x32xf32>
    %c1 = arith.constant 1 : index
    %c0_67 = arith.constant 0 : index
    %c0_68 = arith.constant 0 : index
    %165 = vector.load %arg13[%c1, %c0_67, %c0_68] : memref<8x8x32xf32, #tpu.memory_space<vmem>>, vector<1x8x32xf32>
    %166 = vector.shape_cast %165 : vector<1x8x32xf32> to vector<8x32xf32>
    %167 = vector.shape_cast %164 : vector<8x32xf32> to vector<1x8x32xf32>
    tpu.vector_store %arg13[%c1, %c0_67, %c0_68], %167 {strides = array<i32>} : memref<8x8x32xf32, #tpu.memory_space<vmem>>, vector<1x8x32xf32>,
    %c16 = arith.constant 16 : index
    %c0_69 = arith.constant 0 : index
    %168 = vector.load %arg14[%c16, %c0_69] : memref<64x128xf32, #tpu.memory_space<vmem>>, vector<8x128xf32>
    %cst_70 = arith.constant dense<0.000000e+00> : vector<8x128xf32>
    %169 = tpu.matmul %118, %1, %cst_70 {dimension_numbers = #tpu.dot_dimension_numbers<[1], [0], [0], [1], [0, 0, 1, 1], [], []>} : vector<8x32xf32>, vector<32x128xf32>, vector<8x128xf32> -> vector<8x128xf32>
    %170 = arith.addf %168, %169 : vector<8x128xf32>
    %171 = arith.negf %170 : vector<8x128xf32>
    %172 = math.exp %171 : vector<8x128xf32>
    %cst_71 = arith.constant 1.000000e+00 : f32
    %173 = vector.broadcast %cst_71 : f32 to vector<8x128xf32>
    %174 = arith.addf %173, %172 : vector<8x128xf32>
    %175 = arith.divf %173, %174 : vector<8x128xf32>
    %176 = vector.extract_strided_slice %175 {offsets = [0, 0], sizes = [8, 32], strides = [1, 1]} : vector<8x128xf32> to vector<8x32xf32>
    %177 = vector.extract_strided_slice %175 {offsets = [0, 32], sizes = [8, 32], strides = [1, 1]} : vector<8x128xf32> to vector<8x32xf32>
    %178 = vector.extract_strided_slice %175 {offsets = [0, 64], sizes = [8, 32], strides = [1, 1]} : vector<8x128xf32> to vector<8x32xf32>
    %cst_72 = arith.constant 2.000000e+00 : f32
    %179 = vector.broadcast %cst_72 : f32 to vector<8x32xf32>
    %180 = arith.mulf %179, %178 : vector<8x32xf32>
    %cst_73 = arith.constant 1.000000e+00 : f32
    %181 = vector.broadcast %cst_73 : f32 to vector<8x32xf32>
    %182 = arith.subf %180, %181 : vector<8x32xf32>
    %183 = vector.extract_strided_slice %175 {offsets = [0, 96], sizes = [8, 32], strides = [1, 1]} : vector<8x128xf32> to vector<8x32xf32>
    %184 = arith.mulf %177, %116 : vector<8x32xf32>
    %185 = arith.mulf %176, %182 : vector<8x32xf32>
    %186 = arith.addf %184, %185 : vector<8x32xf32>
    %187 = math.tanh %186 : vector<8x32xf32>
    %188 = arith.mulf %183, %187 : vector<8x32xf32>
    %cst_74 = arith.constant dense<0.000000e+00> : vector<8x128xf32>
    %189 = tpu.matmul %188, %2, %cst_74 {dimension_numbers = #tpu.dot_dimension_numbers<[1], [0], [0], [1], [0, 0, 1, 1], [], []>} : vector<8x32xf32>, vector<32x128xf32>, vector<8x128xf32> -> vector<8x128xf32>
    %cst_75 = arith.constant dense<0.000000e+00> : vector<8x128xf32>
    %190 = tpu.matmul %140, %3, %cst_75 {dimension_numbers = #tpu.dot_dimension_numbers<[1], [0], [0], [1], [0, 0, 1, 1], [], []>} : vector<8x32xf32>, vector<32x128xf32>, vector<8x128xf32> -> vector<8x128xf32>
    %191 = arith.addf %189, %190 : vector<8x128xf32>
    %192 = arith.addf %191, %9 : vector<8x128xf32>
    %193 = arith.negf %192 : vector<8x128xf32>
    %194 = math.exp %193 : vector<8x128xf32>
    %cst_76 = arith.constant 1.000000e+00 : f32
    %195 = vector.broadcast %cst_76 : f32 to vector<8x128xf32>
    %196 = arith.addf %195, %194 : vector<8x128xf32>
    %197 = arith.divf %195, %196 : vector<8x128xf32>
    %198 = vector.extract_strided_slice %197 {offsets = [0, 0], sizes = [8, 32], strides = [1, 1]} : vector<8x128xf32> to vector<8x32xf32>
    %199 = vector.extract_strided_slice %197 {offsets = [0, 32], sizes = [8, 32], strides = [1, 1]} : vector<8x128xf32> to vector<8x32xf32>
    %200 = vector.extract_strided_slice %197 {offsets = [0, 64], sizes = [8, 32], strides = [1, 1]} : vector<8x128xf32> to vector<8x32xf32>
    %cst_77 = arith.constant 2.000000e+00 : f32
    %201 = vector.broadcast %cst_77 : f32 to vector<8x32xf32>
    %202 = arith.mulf %201, %200 : vector<8x32xf32>
    %cst_78 = arith.constant 1.000000e+00 : f32
    %203 = vector.broadcast %cst_78 : f32 to vector<8x32xf32>
    %204 = arith.subf %202, %203 : vector<8x32xf32>
    %205 = vector.extract_strided_slice %197 {offsets = [0, 96], sizes = [8, 32], strides = [1, 1]} : vector<8x128xf32> to vector<8x32xf32>
    %206 = arith.mulf %199, %138 : vector<8x32xf32>
    %207 = arith.mulf %198, %204 : vector<8x32xf32>
    %208 = arith.addf %206, %207 : vector<8x32xf32>
    %209 = math.tanh %208 : vector<8x32xf32>
    %210 = arith.mulf %205, %209 : vector<8x32xf32>
    %cst_79 = arith.constant dense<0.000000e+00> : vector<8x256xf32>
    %211 = tpu.matmul %210, %4, %cst_79 {dimension_numbers = #tpu.dot_dimension_numbers<[1], [0], [0], [1], [0, 0, 1, 1], [], []>} : vector<8x32xf32>, vector<32x256xf32>, vector<8x256xf32> -> vector<8x256xf32>
    %cst_80 = arith.constant dense<0.000000e+00> : vector<8x256xf32>
    %212 = tpu.matmul %162, %5, %cst_80 {dimension_numbers = #tpu.dot_dimension_numbers<[1], [0], [0], [1], [0, 0, 1, 1], [], []>} : vector<8x64xf32>, vector<64x256xf32>, vector<8x256xf32> -> vector<8x256xf32>
    %213 = arith.addf %211, %212 : vector<8x256xf32>
    %214 = arith.addf %213, %12 : vector<8x256xf32>
    %215 = arith.negf %214 : vector<8x256xf32>
    %216 = math.exp %215 : vector<8x256xf32>
    %cst_81 = arith.constant 1.000000e+00 : f32
    %217 = vector.broadcast %cst_81 : f32 to vector<8x256xf32>
    %218 = arith.addf %217, %216 : vector<8x256xf32>
    %219 = arith.divf %217, %218 : vector<8x256xf32>
    %220 = vector.extract_strided_slice %219 {offsets = [0, 0], sizes = [8, 64], strides = [1, 1]} : vector<8x256xf32> to vector<8x64xf32>
    %221 = vector.extract_strided_slice %219 {offsets = [0, 64], sizes = [8, 64], strides = [1, 1]} : vector<8x256xf32> to vector<8x64xf32>
    %222 = vector.extract_strided_slice %219 {offsets = [0, 128], sizes = [8, 64], strides = [1, 1]} : vector<8x256xf32> to vector<8x64xf32>
    %cst_82 = arith.constant 2.000000e+00 : f32
    %223 = vector.broadcast %cst_82 : f32 to vector<8x64xf32>
    %224 = arith.mulf %223, %222 : vector<8x64xf32>
    %cst_83 = arith.constant 1.000000e+00 : f32
    %225 = vector.broadcast %cst_83 : f32 to vector<8x64xf32>
    %226 = arith.subf %224, %225 : vector<8x64xf32>
    %227 = vector.extract_strided_slice %219 {offsets = [0, 192], sizes = [8, 64], strides = [1, 1]} : vector<8x256xf32> to vector<8x64xf32>
    %228 = arith.mulf %221, %160 : vector<8x64xf32>
    %229 = arith.mulf %220, %226 : vector<8x64xf32>
    %230 = arith.addf %228, %229 : vector<8x64xf32>
    %231 = math.tanh %230 : vector<8x64xf32>
    %232 = arith.mulf %227, %231 : vector<8x64xf32>
    %cst_84 = arith.constant dense<0.000000e+00> : vector<8x32xf32>
    %233 = tpu.matmul %232, %6, %cst_84 {dimension_numbers = #tpu.dot_dimension_numbers<[1], [0], [0], [1], [0, 0, 1, 1], [], []>} : vector<8x64xf32>, vector<64x32xf32>, vector<8x32xf32> -> vector<8x32xf32>
    %234 = arith.addf %233, %15 : vector<8x32xf32>
    %c2 = arith.constant 2 : index
    %c0_85 = arith.constant 0 : index
    %c0_86 = arith.constant 0 : index
    %235 = vector.load %arg13[%c2, %c0_85, %c0_86] : memref<8x8x32xf32, #tpu.memory_space<vmem>>, vector<1x8x32xf32>
    %236 = vector.shape_cast %235 : vector<1x8x32xf32> to vector<8x32xf32>
    %237 = vector.shape_cast %234 : vector<8x32xf32> to vector<1x8x32xf32>
    tpu.vector_store %arg13[%c2, %c0_85, %c0_86], %237 {strides = array<i32>} : memref<8x8x32xf32, #tpu.memory_space<vmem>>, vector<1x8x32xf32>,
    %c24 = arith.constant 24 : index
    %c0_87 = arith.constant 0 : index
    %238 = vector.load %arg14[%c24, %c0_87] : memref<64x128xf32, #tpu.memory_space<vmem>>, vector<8x128xf32>
    %cst_88 = arith.constant dense<0.000000e+00> : vector<8x128xf32>
    %239 = tpu.matmul %188, %1, %cst_88 {dimension_numbers = #tpu.dot_dimension_numbers<[1], [0], [0], [1], [0, 0, 1, 1], [], []>} : vector<8x32xf32>, vector<32x128xf32>, vector<8x128xf32> -> vector<8x128xf32>
    %240 = arith.addf %238, %239 : vector<8x128xf32>
    %241 = arith.negf %240 : vector<8x128xf32>
    %242 = math.exp %241 : vector<8x128xf32>
    %cst_89 = arith.constant 1.000000e+00 : f32
    %243 = vector.broadcast %cst_89 : f32 to vector<8x128xf32>
    %244 = arith.addf %243, %242 : vector<8x128xf32>
    %245 = arith.divf %243, %244 : vector<8x128xf32>
    %246 = vector.extract_strided_slice %245 {offsets = [0, 0], sizes = [8, 32], strides = [1, 1]} : vector<8x128xf32> to vector<8x32xf32>
    %247 = vector.extract_strided_slice %245 {offsets = [0, 32], sizes = [8, 32], strides = [1, 1]} : vector<8x128xf32> to vector<8x32xf32>
    %248 = vector.extract_strided_slice %245 {offsets = [0, 64], sizes = [8, 32], strides = [1, 1]} : vector<8x128xf32> to vector<8x32xf32>
    %cst_90 = arith.constant 2.000000e+00 : f32
    %249 = vector.broadcast %cst_90 : f32 to vector<8x32xf32>
    %250 = arith.mulf %249, %248 : vector<8x32xf32>
    %cst_91 = arith.constant 1.000000e+00 : f32
    %251 = vector.broadcast %cst_91 : f32 to vector<8x32xf32>
    %252 = arith.subf %250, %251 : vector<8x32xf32>
    %253 = vector.extract_strided_slice %245 {offsets = [0, 96], sizes = [8, 32], strides = [1, 1]} : vector<8x128xf32> to vector<8x32xf32>
    %254 = arith.mulf %247, %186 : vector<8x32xf32>
    %255 = arith.mulf %246, %252 : vector<8x32xf32>
    %256 = arith.addf %254, %255 : vector<8x32xf32>
    %257 = math.tanh %256 : vector<8x32xf32>
    %258 = arith.mulf %253, %257 : vector<8x32xf32>
    %cst_92 = arith.constant dense<0.000000e+00> : vector<8x128xf32>
    %259 = tpu.matmul %258, %2, %cst_92 {dimension_numbers = #tpu.dot_dimension_numbers<[1], [0], [0], [1], [0, 0, 1, 1], [], []>} : vector<8x32xf32>, vector<32x128xf32>, vector<8x128xf32> -> vector<8x128xf32>
    %cst_93 = arith.constant dense<0.000000e+00> : vector<8x128xf32>
    %260 = tpu.matmul %210, %3, %cst_93 {dimension_numbers = #tpu.dot_dimension_numbers<[1], [0], [0], [1], [0, 0, 1, 1], [], []>} : vector<8x32xf32>, vector<32x128xf32>, vector<8x128xf32> -> vector<8x128xf32>
    %261 = arith.addf %259, %260 : vector<8x128xf32>
    %262 = arith.addf %261, %9 : vector<8x128xf32>
    %263 = arith.negf %262 : vector<8x128xf32>
    %264 = math.exp %263 : vector<8x128xf32>
    %cst_94 = arith.constant 1.000000e+00 : f32
    %265 = vector.broadcast %cst_94 : f32 to vector<8x128xf32>
    %266 = arith.addf %265, %264 : vector<8x128xf32>
    %267 = arith.divf %265, %266 : vector<8x128xf32>
    %268 = vector.extract_strided_slice %267 {offsets = [0, 0], sizes = [8, 32], strides = [1, 1]} : vector<8x128xf32> to vector<8x32xf32>
    %269 = vector.extract_strided_slice %267 {offsets = [0, 32], sizes = [8, 32], strides = [1, 1]} : vector<8x128xf32> to vector<8x32xf32>
    %270 = vector.extract_strided_slice %267 {offsets = [0, 64], sizes = [8, 32], strides = [1, 1]} : vector<8x128xf32> to vector<8x32xf32>
    %cst_95 = arith.constant 2.000000e+00 : f32
    %271 = vector.broadcast %cst_95 : f32 to vector<8x32xf32>
    %272 = arith.mulf %271, %270 : vector<8x32xf32>
    %cst_96 = arith.constant 1.000000e+00 : f32
    %273 = vector.broadcast %cst_96 : f32 to vector<8x32xf32>
    %274 = arith.subf %272, %273 : vector<8x32xf32>
    %275 = vector.extract_strided_slice %267 {offsets = [0, 96], sizes = [8, 32], strides = [1, 1]} : vector<8x128xf32> to vector<8x32xf32>
    %276 = arith.mulf %269, %208 : vector<8x32xf32>
    %277 = arith.mulf %268, %274 : vector<8x32xf32>
    %278 = arith.addf %276, %277 : vector<8x32xf32>
    %279 = math.tanh %278 : vector<8x32xf32>
    %280 = arith.mulf %275, %279 : vector<8x32xf32>
    %cst_97 = arith.constant dense<0.000000e+00> : vector<8x256xf32>
    %281 = tpu.matmul %280, %4, %cst_97 {dimension_numbers = #tpu.dot_dimension_numbers<[1], [0], [0], [1], [0, 0, 1, 1], [], []>} : vector<8x32xf32>, vector<32x256xf32>, vector<8x256xf32> -> vector<8x256xf32>
    %cst_98 = arith.constant dense<0.000000e+00> : vector<8x256xf32>
    %282 = tpu.matmul %232, %5, %cst_98 {dimension_numbers = #tpu.dot_dimension_numbers<[1], [0], [0], [1], [0, 0, 1, 1], [], []>} : vector<8x64xf32>, vector<64x256xf32>, vector<8x256xf32> -> vector<8x256xf32>
    %283 = arith.addf %281, %282 : vector<8x256xf32>
    %284 = arith.addf %283, %12 : vector<8x256xf32>
    %285 = arith.negf %284 : vector<8x256xf32>
    %286 = math.exp %285 : vector<8x256xf32>
    %cst_99 = arith.constant 1.000000e+00 : f32
    %287 = vector.broadcast %cst_99 : f32 to vector<8x256xf32>
    %288 = arith.addf %287, %286 : vector<8x256xf32>
    %289 = arith.divf %287, %288 : vector<8x256xf32>
    %290 = vector.extract_strided_slice %289 {offsets = [0, 0], sizes = [8, 64], strides = [1, 1]} : vector<8x256xf32> to vector<8x64xf32>
    %291 = vector.extract_strided_slice %289 {offsets = [0, 64], sizes = [8, 64], strides = [1, 1]} : vector<8x256xf32> to vector<8x64xf32>
    %292 = vector.extract_strided_slice %289 {offsets = [0, 128], sizes = [8, 64], strides = [1, 1]} : vector<8x256xf32> to vector<8x64xf32>
    %cst_100 = arith.constant 2.000000e+00 : f32
    %293 = vector.broadcast %cst_100 : f32 to vector<8x64xf32>
    %294 = arith.mulf %293, %292 : vector<8x64xf32>
    %cst_101 = arith.constant 1.000000e+00 : f32
    %295 = vector.broadcast %cst_101 : f32 to vector<8x64xf32>
    %296 = arith.subf %294, %295 : vector<8x64xf32>
    %297 = vector.extract_strided_slice %289 {offsets = [0, 192], sizes = [8, 64], strides = [1, 1]} : vector<8x256xf32> to vector<8x64xf32>
    %298 = arith.mulf %291, %230 : vector<8x64xf32>
    %299 = arith.mulf %290, %296 : vector<8x64xf32>
    %300 = arith.addf %298, %299 : vector<8x64xf32>
    %301 = math.tanh %300 : vector<8x64xf32>
    %302 = arith.mulf %297, %301 : vector<8x64xf32>
    %cst_102 = arith.constant dense<0.000000e+00> : vector<8x32xf32>
    %303 = tpu.matmul %302, %6, %cst_102 {dimension_numbers = #tpu.dot_dimension_numbers<[1], [0], [0], [1], [0, 0, 1, 1], [], []>} : vector<8x64xf32>, vector<64x32xf32>, vector<8x32xf32> -> vector<8x32xf32>
    %304 = arith.addf %303, %15 : vector<8x32xf32>
    %c3 = arith.constant 3 : index
    %c0_103 = arith.constant 0 : index
    %c0_104 = arith.constant 0 : index
    %305 = vector.load %arg13[%c3, %c0_103, %c0_104] : memref<8x8x32xf32, #tpu.memory_space<vmem>>, vector<1x8x32xf32>
    %306 = vector.shape_cast %305 : vector<1x8x32xf32> to vector<8x32xf32>
    %307 = vector.shape_cast %304 : vector<8x32xf32> to vector<1x8x32xf32>
    tpu.vector_store %arg13[%c3, %c0_103, %c0_104], %307 {strides = array<i32>} : memref<8x8x32xf32, #tpu.memory_space<vmem>>, vector<1x8x32xf32>,
    %c32 = arith.constant 32 : index
    %c0_105 = arith.constant 0 : index
    %308 = vector.load %arg14[%c32, %c0_105] : memref<64x128xf32, #tpu.memory_space<vmem>>, vector<8x128xf32>
    %cst_106 = arith.constant dense<0.000000e+00> : vector<8x128xf32>
    %309 = tpu.matmul %258, %1, %cst_106 {dimension_numbers = #tpu.dot_dimension_numbers<[1], [0], [0], [1], [0, 0, 1, 1], [], []>} : vector<8x32xf32>, vector<32x128xf32>, vector<8x128xf32> -> vector<8x128xf32>
    %310 = arith.addf %308, %309 : vector<8x128xf32>
    %311 = arith.negf %310 : vector<8x128xf32>
    %312 = math.exp %311 : vector<8x128xf32>
    %cst_107 = arith.constant 1.000000e+00 : f32
    %313 = vector.broadcast %cst_107 : f32 to vector<8x128xf32>
    %314 = arith.addf %313, %312 : vector<8x128xf32>
    %315 = arith.divf %313, %314 : vector<8x128xf32>
    %316 = vector.extract_strided_slice %315 {offsets = [0, 0], sizes = [8, 32], strides = [1, 1]} : vector<8x128xf32> to vector<8x32xf32>
    %317 = vector.extract_strided_slice %315 {offsets = [0, 32], sizes = [8, 32], strides = [1, 1]} : vector<8x128xf32> to vector<8x32xf32>
    %318 = vector.extract_strided_slice %315 {offsets = [0, 64], sizes = [8, 32], strides = [1, 1]} : vector<8x128xf32> to vector<8x32xf32>
    %cst_108 = arith.constant 2.000000e+00 : f32
    %319 = vector.broadcast %cst_108 : f32 to vector<8x32xf32>
    %320 = arith.mulf %319, %318 : vector<8x32xf32>
    %cst_109 = arith.constant 1.000000e+00 : f32
    %321 = vector.broadcast %cst_109 : f32 to vector<8x32xf32>
    %322 = arith.subf %320, %321 : vector<8x32xf32>
    %323 = vector.extract_strided_slice %315 {offsets = [0, 96], sizes = [8, 32], strides = [1, 1]} : vector<8x128xf32> to vector<8x32xf32>
    %324 = arith.mulf %317, %256 : vector<8x32xf32>
    %325 = arith.mulf %316, %322 : vector<8x32xf32>
    %326 = arith.addf %324, %325 : vector<8x32xf32>
    %327 = math.tanh %326 : vector<8x32xf32>
    %328 = arith.mulf %323, %327 : vector<8x32xf32>
    %cst_110 = arith.constant dense<0.000000e+00> : vector<8x128xf32>
    %329 = tpu.matmul %328, %2, %cst_110 {dimension_numbers = #tpu.dot_dimension_numbers<[1], [0], [0], [1], [0, 0, 1, 1], [], []>} : vector<8x32xf32>, vector<32x128xf32>, vector<8x128xf32> -> vector<8x128xf32>
    %cst_111 = arith.constant dense<0.000000e+00> : vector<8x128xf32>
    %330 = tpu.matmul %280, %3, %cst_111 {dimension_numbers = #tpu.dot_dimension_numbers<[1], [0], [0], [1], [0, 0, 1, 1], [], []>} : vector<8x32xf32>, vector<32x128xf32>, vector<8x128xf32> -> vector<8x128xf32>
    %331 = arith.addf %329, %330 : vector<8x128xf32>
    %332 = arith.addf %331, %9 : vector<8x128xf32>
    %333 = arith.negf %332 : vector<8x128xf32>
    %334 = math.exp %333 : vector<8x128xf32>
    %cst_112 = arith.constant 1.000000e+00 : f32
    %335 = vector.broadcast %cst_112 : f32 to vector<8x128xf32>
    %336 = arith.addf %335, %334 : vector<8x128xf32>
    %337 = arith.divf %335, %336 : vector<8x128xf32>
    %338 = vector.extract_strided_slice %337 {offsets = [0, 0], sizes = [8, 32], strides = [1, 1]} : vector<8x128xf32> to vector<8x32xf32>
    %339 = vector.extract_strided_slice %337 {offsets = [0, 32], sizes = [8, 32], strides = [1, 1]} : vector<8x128xf32> to vector<8x32xf32>
    %340 = vector.extract_strided_slice %337 {offsets = [0, 64], sizes = [8, 32], strides = [1, 1]} : vector<8x128xf32> to vector<8x32xf32>
    %cst_113 = arith.constant 2.000000e+00 : f32
    %341 = vector.broadcast %cst_113 : f32 to vector<8x32xf32>
    %342 = arith.mulf %341, %340 : vector<8x32xf32>
    %cst_114 = arith.constant 1.000000e+00 : f32
    %343 = vector.broadcast %cst_114 : f32 to vector<8x32xf32>
    %344 = arith.subf %342, %343 : vector<8x32xf32>
    %345 = vector.extract_strided_slice %337 {offsets = [0, 96], sizes = [8, 32], strides = [1, 1]} : vector<8x128xf32> to vector<8x32xf32>
    %346 = arith.mulf %339, %278 : vector<8x32xf32>
    %347 = arith.mulf %338, %344 : vector<8x32xf32>
    %348 = arith.addf %346, %347 : vector<8x32xf32>
    %349 = math.tanh %348 : vector<8x32xf32>
    %350 = arith.mulf %345, %349 : vector<8x32xf32>
    %cst_115 = arith.constant dense<0.000000e+00> : vector<8x256xf32>
    %351 = tpu.matmul %350, %4, %cst_115 {dimension_numbers = #tpu.dot_dimension_numbers<[1], [0], [0], [1], [0, 0, 1, 1], [], []>} : vector<8x32xf32>, vector<32x256xf32>, vector<8x256xf32> -> vector<8x256xf32>
    %cst_116 = arith.constant dense<0.000000e+00> : vector<8x256xf32>
    %352 = tpu.matmul %302, %5, %cst_116 {dimension_numbers = #tpu.dot_dimension_numbers<[1], [0], [0], [1], [0, 0, 1, 1], [], []>} : vector<8x64xf32>, vector<64x256xf32>, vector<8x256xf32> -> vector<8x256xf32>
    %353 = arith.addf %351, %352 : vector<8x256xf32>
    %354 = arith.addf %353, %12 : vector<8x256xf32>
    %355 = arith.negf %354 : vector<8x256xf32>
    %356 = math.exp %355 : vector<8x256xf32>
    %cst_117 = arith.constant 1.000000e+00 : f32
    %357 = vector.broadcast %cst_117 : f32 to vector<8x256xf32>
    %358 = arith.addf %357, %356 : vector<8x256xf32>
    %359 = arith.divf %357, %358 : vector<8x256xf32>
    %360 = vector.extract_strided_slice %359 {offsets = [0, 0], sizes = [8, 64], strides = [1, 1]} : vector<8x256xf32> to vector<8x64xf32>
    %361 = vector.extract_strided_slice %359 {offsets = [0, 64], sizes = [8, 64], strides = [1, 1]} : vector<8x256xf32> to vector<8x64xf32>
    %362 = vector.extract_strided_slice %359 {offsets = [0, 128], sizes = [8, 64], strides = [1, 1]} : vector<8x256xf32> to vector<8x64xf32>
    %cst_118 = arith.constant 2.000000e+00 : f32
    %363 = vector.broadcast %cst_118 : f32 to vector<8x64xf32>
    %364 = arith.mulf %363, %362 : vector<8x64xf32>
    %cst_119 = arith.constant 1.000000e+00 : f32
    %365 = vector.broadcast %cst_119 : f32 to vector<8x64xf32>
    %366 = arith.subf %364, %365 : vector<8x64xf32>
    %367 = vector.extract_strided_slice %359 {offsets = [0, 192], sizes = [8, 64], strides = [1, 1]} : vector<8x256xf32> to vector<8x64xf32>
    %368 = arith.mulf %361, %300 : vector<8x64xf32>
    %369 = arith.mulf %360, %366 : vector<8x64xf32>
    %370 = arith.addf %368, %369 : vector<8x64xf32>
    %371 = math.tanh %370 : vector<8x64xf32>
    %372 = arith.mulf %367, %371 : vector<8x64xf32>
    %cst_120 = arith.constant dense<0.000000e+00> : vector<8x32xf32>
    %373 = tpu.matmul %372, %6, %cst_120 {dimension_numbers = #tpu.dot_dimension_numbers<[1], [0], [0], [1], [0, 0, 1, 1], [], []>} : vector<8x64xf32>, vector<64x32xf32>, vector<8x32xf32> -> vector<8x32xf32>
    %374 = arith.addf %373, %15 : vector<8x32xf32>
    %c4 = arith.constant 4 : index
    %c0_121 = arith.constant 0 : index
    %c0_122 = arith.constant 0 : index
    %375 = vector.load %arg13[%c4, %c0_121, %c0_122] : memref<8x8x32xf32, #tpu.memory_space<vmem>>, vector<1x8x32xf32>
    %376 = vector.shape_cast %375 : vector<1x8x32xf32> to vector<8x32xf32>
    %377 = vector.shape_cast %374 : vector<8x32xf32> to vector<1x8x32xf32>
    tpu.vector_store %arg13[%c4, %c0_121, %c0_122], %377 {strides = array<i32>} : memref<8x8x32xf32, #tpu.memory_space<vmem>>, vector<1x8x32xf32>,
    %c40 = arith.constant 40 : index
    %c0_123 = arith.constant 0 : index
    %378 = vector.load %arg14[%c40, %c0_123] : memref<64x128xf32, #tpu.memory_space<vmem>>, vector<8x128xf32>
    %cst_124 = arith.constant dense<0.000000e+00> : vector<8x128xf32>
    %379 = tpu.matmul %328, %1, %cst_124 {dimension_numbers = #tpu.dot_dimension_numbers<[1], [0], [0], [1], [0, 0, 1, 1], [], []>} : vector<8x32xf32>, vector<32x128xf32>, vector<8x128xf32> -> vector<8x128xf32>
    %380 = arith.addf %378, %379 : vector<8x128xf32>
    %381 = arith.negf %380 : vector<8x128xf32>
    %382 = math.exp %381 : vector<8x128xf32>
    %cst_125 = arith.constant 1.000000e+00 : f32
    %383 = vector.broadcast %cst_125 : f32 to vector<8x128xf32>
    %384 = arith.addf %383, %382 : vector<8x128xf32>
    %385 = arith.divf %383, %384 : vector<8x128xf32>
    %386 = vector.extract_strided_slice %385 {offsets = [0, 0], sizes = [8, 32], strides = [1, 1]} : vector<8x128xf32> to vector<8x32xf32>
    %387 = vector.extract_strided_slice %385 {offsets = [0, 32], sizes = [8, 32], strides = [1, 1]} : vector<8x128xf32> to vector<8x32xf32>
    %388 = vector.extract_strided_slice %385 {offsets = [0, 64], sizes = [8, 32], strides = [1, 1]} : vector<8x128xf32> to vector<8x32xf32>
    %cst_126 = arith.constant 2.000000e+00 : f32
    %389 = vector.broadcast %cst_126 : f32 to vector<8x32xf32>
    %390 = arith.mulf %389, %388 : vector<8x32xf32>
    %cst_127 = arith.constant 1.000000e+00 : f32
    %391 = vector.broadcast %cst_127 : f32 to vector<8x32xf32>
    %392 = arith.subf %390, %391 : vector<8x32xf32>
    %393 = vector.extract_strided_slice %385 {offsets = [0, 96], sizes = [8, 32], strides = [1, 1]} : vector<8x128xf32> to vector<8x32xf32>
    %394 = arith.mulf %387, %326 : vector<8x32xf32>
    %395 = arith.mulf %386, %392 : vector<8x32xf32>
    %396 = arith.addf %394, %395 : vector<8x32xf32>
    %397 = math.tanh %396 : vector<8x32xf32>
    %398 = arith.mulf %393, %397 : vector<8x32xf32>
    %cst_128 = arith.constant dense<0.000000e+00> : vector<8x128xf32>
    %399 = tpu.matmul %398, %2, %cst_128 {dimension_numbers = #tpu.dot_dimension_numbers<[1], [0], [0], [1], [0, 0, 1, 1], [], []>} : vector<8x32xf32>, vector<32x128xf32>, vector<8x128xf32> -> vector<8x128xf32>
    %cst_129 = arith.constant dense<0.000000e+00> : vector<8x128xf32>
    %400 = tpu.matmul %350, %3, %cst_129 {dimension_numbers = #tpu.dot_dimension_numbers<[1], [0], [0], [1], [0, 0, 1, 1], [], []>} : vector<8x32xf32>, vector<32x128xf32>, vector<8x128xf32> -> vector<8x128xf32>
    %401 = arith.addf %399, %400 : vector<8x128xf32>
    %402 = arith.addf %401, %9 : vector<8x128xf32>
    %403 = arith.negf %402 : vector<8x128xf32>
    %404 = math.exp %403 : vector<8x128xf32>
    %cst_130 = arith.constant 1.000000e+00 : f32
    %405 = vector.broadcast %cst_130 : f32 to vector<8x128xf32>
    %406 = arith.addf %405, %404 : vector<8x128xf32>
    %407 = arith.divf %405, %406 : vector<8x128xf32>
    %408 = vector.extract_strided_slice %407 {offsets = [0, 0], sizes = [8, 32], strides = [1, 1]} : vector<8x128xf32> to vector<8x32xf32>
    %409 = vector.extract_strided_slice %407 {offsets = [0, 32], sizes = [8, 32], strides = [1, 1]} : vector<8x128xf32> to vector<8x32xf32>
    %410 = vector.extract_strided_slice %407 {offsets = [0, 64], sizes = [8, 32], strides = [1, 1]} : vector<8x128xf32> to vector<8x32xf32>
    %cst_131 = arith.constant 2.000000e+00 : f32
    %411 = vector.broadcast %cst_131 : f32 to vector<8x32xf32>
    %412 = arith.mulf %411, %410 : vector<8x32xf32>
    %cst_132 = arith.constant 1.000000e+00 : f32
    %413 = vector.broadcast %cst_132 : f32 to vector<8x32xf32>
    %414 = arith.subf %412, %413 : vector<8x32xf32>
    %415 = vector.extract_strided_slice %407 {offsets = [0, 96], sizes = [8, 32], strides = [1, 1]} : vector<8x128xf32> to vector<8x32xf32>
    %416 = arith.mulf %409, %348 : vector<8x32xf32>
    %417 = arith.mulf %408, %414 : vector<8x32xf32>
    %418 = arith.addf %416, %417 : vector<8x32xf32>
    %419 = math.tanh %418 : vector<8x32xf32>
    %420 = arith.mulf %415, %419 : vector<8x32xf32>
    %cst_133 = arith.constant dense<0.000000e+00> : vector<8x256xf32>
    %421 = tpu.matmul %420, %4, %cst_133 {dimension_numbers = #tpu.dot_dimension_numbers<[1], [0], [0], [1], [0, 0, 1, 1], [], []>} : vector<8x32xf32>, vector<32x256xf32>, vector<8x256xf32> -> vector<8x256xf32>
    %cst_134 = arith.constant dense<0.000000e+00> : vector<8x256xf32>
    %422 = tpu.matmul %372, %5, %cst_134 {dimension_numbers = #tpu.dot_dimension_numbers<[1], [0], [0], [1], [0, 0, 1, 1], [], []>} : vector<8x64xf32>, vector<64x256xf32>, vector<8x256xf32> -> vector<8x256xf32>
    %423 = arith.addf %421, %422 : vector<8x256xf32>
    %424 = arith.addf %423, %12 : vector<8x256xf32>
    %425 = arith.negf %424 : vector<8x256xf32>
    %426 = math.exp %425 : vector<8x256xf32>
    %cst_135 = arith.constant 1.000000e+00 : f32
    %427 = vector.broadcast %cst_135 : f32 to vector<8x256xf32>
    %428 = arith.addf %427, %426 : vector<8x256xf32>
    %429 = arith.divf %427, %428 : vector<8x256xf32>
    %430 = vector.extract_strided_slice %429 {offsets = [0, 0], sizes = [8, 64], strides = [1, 1]} : vector<8x256xf32> to vector<8x64xf32>
    %431 = vector.extract_strided_slice %429 {offsets = [0, 64], sizes = [8, 64], strides = [1, 1]} : vector<8x256xf32> to vector<8x64xf32>
    %432 = vector.extract_strided_slice %429 {offsets = [0, 128], sizes = [8, 64], strides = [1, 1]} : vector<8x256xf32> to vector<8x64xf32>
    %cst_136 = arith.constant 2.000000e+00 : f32
    %433 = vector.broadcast %cst_136 : f32 to vector<8x64xf32>
    %434 = arith.mulf %433, %432 : vector<8x64xf32>
    %cst_137 = arith.constant 1.000000e+00 : f32
    %435 = vector.broadcast %cst_137 : f32 to vector<8x64xf32>
    %436 = arith.subf %434, %435 : vector<8x64xf32>
    %437 = vector.extract_strided_slice %429 {offsets = [0, 192], sizes = [8, 64], strides = [1, 1]} : vector<8x256xf32> to vector<8x64xf32>
    %438 = arith.mulf %431, %370 : vector<8x64xf32>
    %439 = arith.mulf %430, %436 : vector<8x64xf32>
    %440 = arith.addf %438, %439 : vector<8x64xf32>
    %441 = math.tanh %440 : vector<8x64xf32>
    %442 = arith.mulf %437, %441 : vector<8x64xf32>
    %cst_138 = arith.constant dense<0.000000e+00> : vector<8x32xf32>
    %443 = tpu.matmul %442, %6, %cst_138 {dimension_numbers = #tpu.dot_dimension_numbers<[1], [0], [0], [1], [0, 0, 1, 1], [], []>} : vector<8x64xf32>, vector<64x32xf32>, vector<8x32xf32> -> vector<8x32xf32>
    %444 = arith.addf %443, %15 : vector<8x32xf32>
    %c5 = arith.constant 5 : index
    %c0_139 = arith.constant 0 : index
    %c0_140 = arith.constant 0 : index
    %445 = vector.load %arg13[%c5, %c0_139, %c0_140] : memref<8x8x32xf32, #tpu.memory_space<vmem>>, vector<1x8x32xf32>
    %446 = vector.shape_cast %445 : vector<1x8x32xf32> to vector<8x32xf32>
    %447 = vector.shape_cast %444 : vector<8x32xf32> to vector<1x8x32xf32>
    tpu.vector_store %arg13[%c5, %c0_139, %c0_140], %447 {strides = array<i32>} : memref<8x8x32xf32, #tpu.memory_space<vmem>>, vector<1x8x32xf32>,
    %c48 = arith.constant 48 : index
    %c0_141 = arith.constant 0 : index
    %448 = vector.load %arg14[%c48, %c0_141] : memref<64x128xf32, #tpu.memory_space<vmem>>, vector<8x128xf32>
    %cst_142 = arith.constant dense<0.000000e+00> : vector<8x128xf32>
    %449 = tpu.matmul %398, %1, %cst_142 {dimension_numbers = #tpu.dot_dimension_numbers<[1], [0], [0], [1], [0, 0, 1, 1], [], []>} : vector<8x32xf32>, vector<32x128xf32>, vector<8x128xf32> -> vector<8x128xf32>
    %450 = arith.addf %448, %449 : vector<8x128xf32>
    %451 = arith.negf %450 : vector<8x128xf32>
    %452 = math.exp %451 : vector<8x128xf32>
    %cst_143 = arith.constant 1.000000e+00 : f32
    %453 = vector.broadcast %cst_143 : f32 to vector<8x128xf32>
    %454 = arith.addf %453, %452 : vector<8x128xf32>
    %455 = arith.divf %453, %454 : vector<8x128xf32>
    %456 = vector.extract_strided_slice %455 {offsets = [0, 0], sizes = [8, 32], strides = [1, 1]} : vector<8x128xf32> to vector<8x32xf32>
    %457 = vector.extract_strided_slice %455 {offsets = [0, 32], sizes = [8, 32], strides = [1, 1]} : vector<8x128xf32> to vector<8x32xf32>
    %458 = vector.extract_strided_slice %455 {offsets = [0, 64], sizes = [8, 32], strides = [1, 1]} : vector<8x128xf32> to vector<8x32xf32>
    %cst_144 = arith.constant 2.000000e+00 : f32
    %459 = vector.broadcast %cst_144 : f32 to vector<8x32xf32>
    %460 = arith.mulf %459, %458 : vector<8x32xf32>
    %cst_145 = arith.constant 1.000000e+00 : f32
    %461 = vector.broadcast %cst_145 : f32 to vector<8x32xf32>
    %462 = arith.subf %460, %461 : vector<8x32xf32>
    %463 = vector.extract_strided_slice %455 {offsets = [0, 96], sizes = [8, 32], strides = [1, 1]} : vector<8x128xf32> to vector<8x32xf32>
    %464 = arith.mulf %457, %396 : vector<8x32xf32>
    %465 = arith.mulf %456, %462 : vector<8x32xf32>
    %466 = arith.addf %464, %465 : vector<8x32xf32>
    %467 = math.tanh %466 : vector<8x32xf32>
    %468 = arith.mulf %463, %467 : vector<8x32xf32>
    %cst_146 = arith.constant dense<0.000000e+00> : vector<8x128xf32>
    %469 = tpu.matmul %468, %2, %cst_146 {dimension_numbers = #tpu.dot_dimension_numbers<[1], [0], [0], [1], [0, 0, 1, 1], [], []>} : vector<8x32xf32>, vector<32x128xf32>, vector<8x128xf32> -> vector<8x128xf32>
    %cst_147 = arith.constant dense<0.000000e+00> : vector<8x128xf32>
    %470 = tpu.matmul %420, %3, %cst_147 {dimension_numbers = #tpu.dot_dimension_numbers<[1], [0], [0], [1], [0, 0, 1, 1], [], []>} : vector<8x32xf32>, vector<32x128xf32>, vector<8x128xf32> -> vector<8x128xf32>
    %471 = arith.addf %469, %470 : vector<8x128xf32>
    %472 = arith.addf %471, %9 : vector<8x128xf32>
    %473 = arith.negf %472 : vector<8x128xf32>
    %474 = math.exp %473 : vector<8x128xf32>
    %cst_148 = arith.constant 1.000000e+00 : f32
    %475 = vector.broadcast %cst_148 : f32 to vector<8x128xf32>
    %476 = arith.addf %475, %474 : vector<8x128xf32>
    %477 = arith.divf %475, %476 : vector<8x128xf32>
    %478 = vector.extract_strided_slice %477 {offsets = [0, 0], sizes = [8, 32], strides = [1, 1]} : vector<8x128xf32> to vector<8x32xf32>
    %479 = vector.extract_strided_slice %477 {offsets = [0, 32], sizes = [8, 32], strides = [1, 1]} : vector<8x128xf32> to vector<8x32xf32>
    %480 = vector.extract_strided_slice %477 {offsets = [0, 64], sizes = [8, 32], strides = [1, 1]} : vector<8x128xf32> to vector<8x32xf32>
    %cst_149 = arith.constant 2.000000e+00 : f32
    %481 = vector.broadcast %cst_149 : f32 to vector<8x32xf32>
    %482 = arith.mulf %481, %480 : vector<8x32xf32>
    %cst_150 = arith.constant 1.000000e+00 : f32
    %483 = vector.broadcast %cst_150 : f32 to vector<8x32xf32>
    %484 = arith.subf %482, %483 : vector<8x32xf32>
    %485 = vector.extract_strided_slice %477 {offsets = [0, 96], sizes = [8, 32], strides = [1, 1]} : vector<8x128xf32> to vector<8x32xf32>
    %486 = arith.mulf %479, %418 : vector<8x32xf32>
    %487 = arith.mulf %478, %484 : vector<8x32xf32>
    %488 = arith.addf %486, %487 : vector<8x32xf32>
    %489 = math.tanh %488 : vector<8x32xf32>
    %490 = arith.mulf %485, %489 : vector<8x32xf32>
    %cst_151 = arith.constant dense<0.000000e+00> : vector<8x256xf32>
    %491 = tpu.matmul %490, %4, %cst_151 {dimension_numbers = #tpu.dot_dimension_numbers<[1], [0], [0], [1], [0, 0, 1, 1], [], []>} : vector<8x32xf32>, vector<32x256xf32>, vector<8x256xf32> -> vector<8x256xf32>
    %cst_152 = arith.constant dense<0.000000e+00> : vector<8x256xf32>
    %492 = tpu.matmul %442, %5, %cst_152 {dimension_numbers = #tpu.dot_dimension_numbers<[1], [0], [0], [1], [0, 0, 1, 1], [], []>} : vector<8x64xf32>, vector<64x256xf32>, vector<8x256xf32> -> vector<8x256xf32>
    %493 = arith.addf %491, %492 : vector<8x256xf32>
    %494 = arith.addf %493, %12 : vector<8x256xf32>
    %495 = arith.negf %494 : vector<8x256xf32>
    %496 = math.exp %495 : vector<8x256xf32>
    %cst_153 = arith.constant 1.000000e+00 : f32
    %497 = vector.broadcast %cst_153 : f32 to vector<8x256xf32>
    %498 = arith.addf %497, %496 : vector<8x256xf32>
    %499 = arith.divf %497, %498 : vector<8x256xf32>
    %500 = vector.extract_strided_slice %499 {offsets = [0, 0], sizes = [8, 64], strides = [1, 1]} : vector<8x256xf32> to vector<8x64xf32>
    %501 = vector.extract_strided_slice %499 {offsets = [0, 64], sizes = [8, 64], strides = [1, 1]} : vector<8x256xf32> to vector<8x64xf32>
    %502 = vector.extract_strided_slice %499 {offsets = [0, 128], sizes = [8, 64], strides = [1, 1]} : vector<8x256xf32> to vector<8x64xf32>
    %cst_154 = arith.constant 2.000000e+00 : f32
    %503 = vector.broadcast %cst_154 : f32 to vector<8x64xf32>
    %504 = arith.mulf %503, %502 : vector<8x64xf32>
    %cst_155 = arith.constant 1.000000e+00 : f32
    %505 = vector.broadcast %cst_155 : f32 to vector<8x64xf32>
    %506 = arith.subf %504, %505 : vector<8x64xf32>
    %507 = vector.extract_strided_slice %499 {offsets = [0, 192], sizes = [8, 64], strides = [1, 1]} : vector<8x256xf32> to vector<8x64xf32>
    %508 = arith.mulf %501, %440 : vector<8x64xf32>
    %509 = arith.mulf %500, %506 : vector<8x64xf32>
    %510 = arith.addf %508, %509 : vector<8x64xf32>
    %511 = math.tanh %510 : vector<8x64xf32>
    %512 = arith.mulf %507, %511 : vector<8x64xf32>
    %cst_156 = arith.constant dense<0.000000e+00> : vector<8x32xf32>
    %513 = tpu.matmul %512, %6, %cst_156 {dimension_numbers = #tpu.dot_dimension_numbers<[1], [0], [0], [1], [0, 0, 1, 1], [], []>} : vector<8x64xf32>, vector<64x32xf32>, vector<8x32xf32> -> vector<8x32xf32>
    %514 = arith.addf %513, %15 : vector<8x32xf32>
    %c6 = arith.constant 6 : index
    %c0_157 = arith.constant 0 : index
    %c0_158 = arith.constant 0 : index
    %515 = vector.load %arg13[%c6, %c0_157, %c0_158] : memref<8x8x32xf32, #tpu.memory_space<vmem>>, vector<1x8x32xf32>
    %516 = vector.shape_cast %515 : vector<1x8x32xf32> to vector<8x32xf32>
    %517 = vector.shape_cast %514 : vector<8x32xf32> to vector<1x8x32xf32>
    tpu.vector_store %arg13[%c6, %c0_157, %c0_158], %517 {strides = array<i32>} : memref<8x8x32xf32, #tpu.memory_space<vmem>>, vector<1x8x32xf32>,
    %c56 = arith.constant 56 : index
    %c0_159 = arith.constant 0 : index
    %518 = vector.load %arg14[%c56, %c0_159] : memref<64x128xf32, #tpu.memory_space<vmem>>, vector<8x128xf32>
    %cst_160 = arith.constant dense<0.000000e+00> : vector<8x128xf32>
    %519 = tpu.matmul %468, %1, %cst_160 {dimension_numbers = #tpu.dot_dimension_numbers<[1], [0], [0], [1], [0, 0, 1, 1], [], []>} : vector<8x32xf32>, vector<32x128xf32>, vector<8x128xf32> -> vector<8x128xf32>
    %520 = arith.addf %518, %519 : vector<8x128xf32>
    %521 = arith.negf %520 : vector<8x128xf32>
    %522 = math.exp %521 : vector<8x128xf32>
    %cst_161 = arith.constant 1.000000e+00 : f32
    %523 = vector.broadcast %cst_161 : f32 to vector<8x128xf32>
    %524 = arith.addf %523, %522 : vector<8x128xf32>
    %525 = arith.divf %523, %524 : vector<8x128xf32>
    %526 = vector.extract_strided_slice %525 {offsets = [0, 0], sizes = [8, 32], strides = [1, 1]} : vector<8x128xf32> to vector<8x32xf32>
    %527 = vector.extract_strided_slice %525 {offsets = [0, 32], sizes = [8, 32], strides = [1, 1]} : vector<8x128xf32> to vector<8x32xf32>
    %528 = vector.extract_strided_slice %525 {offsets = [0, 64], sizes = [8, 32], strides = [1, 1]} : vector<8x128xf32> to vector<8x32xf32>
    %cst_162 = arith.constant 2.000000e+00 : f32
    %529 = vector.broadcast %cst_162 : f32 to vector<8x32xf32>
    %530 = arith.mulf %529, %528 : vector<8x32xf32>
    %cst_163 = arith.constant 1.000000e+00 : f32
    %531 = vector.broadcast %cst_163 : f32 to vector<8x32xf32>
    %532 = arith.subf %530, %531 : vector<8x32xf32>
    %533 = vector.extract_strided_slice %525 {offsets = [0, 96], sizes = [8, 32], strides = [1, 1]} : vector<8x128xf32> to vector<8x32xf32>
    %534 = arith.mulf %527, %466 : vector<8x32xf32>
    %535 = arith.mulf %526, %532 : vector<8x32xf32>
    %536 = arith.addf %534, %535 : vector<8x32xf32>
    %537 = math.tanh %536 : vector<8x32xf32>
    %538 = arith.mulf %533, %537 : vector<8x32xf32>
    %cst_164 = arith.constant dense<0.000000e+00> : vector<8x128xf32>
    %539 = tpu.matmul %538, %2, %cst_164 {dimension_numbers = #tpu.dot_dimension_numbers<[1], [0], [0], [1], [0, 0, 1, 1], [], []>} : vector<8x32xf32>, vector<32x128xf32>, vector<8x128xf32> -> vector<8x128xf32>
    %cst_165 = arith.constant dense<0.000000e+00> : vector<8x128xf32>
    %540 = tpu.matmul %490, %3, %cst_165 {dimension_numbers = #tpu.dot_dimension_numbers<[1], [0], [0], [1], [0, 0, 1, 1], [], []>} : vector<8x32xf32>, vector<32x128xf32>, vector<8x128xf32> -> vector<8x128xf32>
    %541 = arith.addf %539, %540 : vector<8x128xf32>
    %542 = arith.addf %541, %9 : vector<8x128xf32>
    %543 = arith.negf %542 : vector<8x128xf32>
    %544 = math.exp %543 : vector<8x128xf32>
    %cst_166 = arith.constant 1.000000e+00 : f32
    %545 = vector.broadcast %cst_166 : f32 to vector<8x128xf32>
    %546 = arith.addf %545, %544 : vector<8x128xf32>
    %547 = arith.divf %545, %546 : vector<8x128xf32>
    %548 = vector.extract_strided_slice %547 {offsets = [0, 0], sizes = [8, 32], strides = [1, 1]} : vector<8x128xf32> to vector<8x32xf32>
    %549 = vector.extract_strided_slice %547 {offsets = [0, 32], sizes = [8, 32], strides = [1, 1]} : vector<8x128xf32> to vector<8x32xf32>
    %550 = vector.extract_strided_slice %547 {offsets = [0, 64], sizes = [8, 32], strides = [1, 1]} : vector<8x128xf32> to vector<8x32xf32>
    %cst_167 = arith.constant 2.000000e+00 : f32
    %551 = vector.broadcast %cst_167 : f32 to vector<8x32xf32>
    %552 = arith.mulf %551, %550 : vector<8x32xf32>
    %cst_168 = arith.constant 1.000000e+00 : f32
    %553 = vector.broadcast %cst_168 : f32 to vector<8x32xf32>
    %554 = arith.subf %552, %553 : vector<8x32xf32>
    %555 = vector.extract_strided_slice %547 {offsets = [0, 96], sizes = [8, 32], strides = [1, 1]} : vector<8x128xf32> to vector<8x32xf32>
    %556 = arith.mulf %549, %488 : vector<8x32xf32>
    %557 = arith.mulf %548, %554 : vector<8x32xf32>
    %558 = arith.addf %556, %557 : vector<8x32xf32>
    %559 = math.tanh %558 : vector<8x32xf32>
    %560 = arith.mulf %555, %559 : vector<8x32xf32>
    %cst_169 = arith.constant dense<0.000000e+00> : vector<8x256xf32>
    %561 = tpu.matmul %560, %4, %cst_169 {dimension_numbers = #tpu.dot_dimension_numbers<[1], [0], [0], [1], [0, 0, 1, 1], [], []>} : vector<8x32xf32>, vector<32x256xf32>, vector<8x256xf32> -> vector<8x256xf32>
    %cst_170 = arith.constant dense<0.000000e+00> : vector<8x256xf32>
    %562 = tpu.matmul %512, %5, %cst_170 {dimension_numbers = #tpu.dot_dimension_numbers<[1], [0], [0], [1], [0, 0, 1, 1], [], []>} : vector<8x64xf32>, vector<64x256xf32>, vector<8x256xf32> -> vector<8x256xf32>
    %563 = arith.addf %561, %562 : vector<8x256xf32>
    %564 = arith.addf %563, %12 : vector<8x256xf32>
    %565 = arith.negf %564 : vector<8x256xf32>
    %566 = math.exp %565 : vector<8x256xf32>
    %cst_171 = arith.constant 1.000000e+00 : f32
    %567 = vector.broadcast %cst_171 : f32 to vector<8x256xf32>
    %568 = arith.addf %567, %566 : vector<8x256xf32>
    %569 = arith.divf %567, %568 : vector<8x256xf32>
    %570 = vector.extract_strided_slice %569 {offsets = [0, 0], sizes = [8, 64], strides = [1, 1]} : vector<8x256xf32> to vector<8x64xf32>
    %571 = vector.extract_strided_slice %569 {offsets = [0, 64], sizes = [8, 64], strides = [1, 1]} : vector<8x256xf32> to vector<8x64xf32>
    %572 = vector.extract_strided_slice %569 {offsets = [0, 128], sizes = [8, 64], strides = [1, 1]} : vector<8x256xf32> to vector<8x64xf32>
    %cst_172 = arith.constant 2.000000e+00 : f32
    %573 = vector.broadcast %cst_172 : f32 to vector<8x64xf32>
    %574 = arith.mulf %573, %572 : vector<8x64xf32>
    %cst_173 = arith.constant 1.000000e+00 : f32
    %575 = vector.broadcast %cst_173 : f32 to vector<8x64xf32>
    %576 = arith.subf %574, %575 : vector<8x64xf32>
    %577 = vector.extract_strided_slice %569 {offsets = [0, 192], sizes = [8, 64], strides = [1, 1]} : vector<8x256xf32> to vector<8x64xf32>
    %578 = arith.mulf %571, %510 : vector<8x64xf32>
    %579 = arith.mulf %570, %576 : vector<8x64xf32>
    %580 = arith.addf %578, %579 : vector<8x64xf32>
    %581 = math.tanh %580 : vector<8x64xf32>
    %582 = arith.mulf %577, %581 : vector<8x64xf32>
    %cst_174 = arith.constant dense<0.000000e+00> : vector<8x32xf32>
    %583 = tpu.matmul %582, %6, %cst_174 {dimension_numbers = #tpu.dot_dimension_numbers<[1], [0], [0], [1], [0, 0, 1, 1], [], []>} : vector<8x64xf32>, vector<64x32xf32>, vector<8x32xf32> -> vector<8x32xf32>
    %584 = arith.addf %583, %15 : vector<8x32xf32>
    %c7 = arith.constant 7 : index
    %c0_175 = arith.constant 0 : index
    %c0_176 = arith.constant 0 : index
    %585 = vector.load %arg13[%c7, %c0_175, %c0_176] : memref<8x8x32xf32, #tpu.memory_space<vmem>>, vector<1x8x32xf32>
    %586 = vector.shape_cast %585 : vector<1x8x32xf32> to vector<8x32xf32>
    %587 = vector.shape_cast %584 : vector<8x32xf32> to vector<1x8x32xf32>
    tpu.vector_store %arg13[%c7, %c0_175, %c0_176], %587 {strides = array<i32>} : memref<8x8x32xf32, #tpu.memory_space<vmem>>, vector<1x8x32xf32>,
    return
  }
  func.func @transform_0(%arg0: i32) -> (i32, i32) {
    %c0_i32 = arith.constant 0 : i32
    %c0_i32_0 = arith.constant 0 : i32
    %c0_i32_1 = arith.constant 0 : i32
    return %c0_i32, %c0_i32_0 : i32, i32
  }
  func.func @transform_1(%arg0: i32) -> (i32, i32) {
    %c0_i32 = arith.constant 0 : i32
    %c0_i32_0 = arith.constant 0 : i32
    %c0_i32_1 = arith.constant 0 : i32
    return %c0_i32, %c0_i32_0 : i32, i32
  }
  func.func @transform_2(%arg0: i32) -> (i32, i32) {
    %c0_i32 = arith.constant 0 : i32
    %c0_i32_0 = arith.constant 0 : i32
    %c0_i32_1 = arith.constant 0 : i32
    return %c0_i32, %c0_i32_0 : i32, i32
  }
  func.func @transform_3(%arg0: i32) -> (i32, i32) {
    %c0_i32 = arith.constant 0 : i32
    %c0_i32_0 = arith.constant 0 : i32
    %c0_i32_1 = arith.constant 0 : i32
    return %c0_i32, %c0_i32_0 : i32, i32
  }
  func.func @transform_4(%arg0: i32) -> (i32, i32) {
    %c0_i32 = arith.constant 0 : i32
    %c0_i32_0 = arith.constant 0 : i32
    %c0_i32_1 = arith.constant 0 : i32
    return %c0_i32, %c0_i32_0 : i32, i32
  }
  func.func @transform_5(%arg0: i32) -> (i32, i32) {
    %c0_i32 = arith.constant 0 : i32
    %c0_i32_0 = arith.constant 0 : i32
    %c0_i32_1 = arith.constant 0 : i32
    return %c0_i32, %c0_i32_0 : i32, i32
  }
  func.func @transform_6(%arg0: i32) -> (i32, i32) {
    %c0_i32 = arith.constant 0 : i32
    %c0_i32_0 = arith.constant 0 : i32
    %c0_i32_1 = arith.constant 0 : i32
    return %c0_i32, %c0_i32_0 : i32, i32
  }
  func.func @transform_7(%arg0: i32) -> (i32, i32) {
    %c0_i32 = arith.constant 0 : i32
    %c0_i32_0 = arith.constant 0 : i32
    %c0_i32_1 = arith.constant 0 : i32
    return %c0_i32, %c0_i32_0 : i32, i32
  }
  func.func @transform_8(%arg0: i32) -> (i32, i32) {
    %c0_i32 = arith.constant 0 : i32
    %c0_i32_0 = arith.constant 0 : i32
    %c0_i32_1 = arith.constant 0 : i32
    return %c0_i32, %c0_i32_0 : i32, i32
  }
  func.func @transform_9(%arg0: i32) -> (i32, i32) {
    %c0_i32 = arith.constant 0 : i32
    %c0_i32_0 = arith.constant 0 : i32
    %c0_i32_1 = arith.constant 0 : i32
    return %c0_i32, %c0_i32_0 : i32, i32
  }
  func.func @transform_10(%arg0: i32) -> (i32, i32) {
    %c0_i32 = arith.constant 0 : i32
    %c0_i32_0 = arith.constant 0 : i32
    %c0_i32_1 = arith.constant 0 : i32
    return %c0_i32, %c0_i32_0 : i32, i32
  }
  func.func @transform_11(%arg0: i32) -> (i32, i32) {
    %c0_i32 = arith.constant 0 : i32
    %c0_i32_0 = arith.constant 0 : i32
    %c0_i32_1 = arith.constant 0 : i32
    return %c0_i32, %c0_i32_0 : i32, i32
  }
  func.func @transform_12(%arg0: i32) -> (i32, i32, i32) {
    %c0_i32 = arith.constant 0 : i32
    %c0_i32_0 = arith.constant 0 : i32
    %c0_i32_1 = arith.constant 0 : i32
    %c0_i32_2 = arith.constant 0 : i32
    return %c0_i32, %c0_i32_0, %c0_i32_1 : i32, i32, i32
  }
}

</mosaic_0001>

<llo_original>
// kernel: tpu_custom_call.1
$region0: #{tpu_custom_call.1}
  #allocation0 [shape = 'u32[]', space=smem, size = 0x4, offset = 0x4, fixed_abs, tag = 'smem constant byte address 0x4 - core index']
  #allocation1 [shape = 'u32[144,128]{1,0:T(1,128)}', space=vmem, size = 0x12000, scoped, tag = 'internal scratch']
  #allocation2 [shape = 'f32[64,128]{1,0:T(8,128)}', space=vmem, size = 0x8000, scoped, tag = 'scratch operand']
  %s0 = inlined_call_operand.vmem [shape: f32[64,32], index: 0, kind: input, shape index: {}]
  %s1 = inlined_call_operand.hbm [shape: f32[32,128], index: 1, kind: input, shape index: {}]
  %s2 = inlined_call_operand.hbm [shape: f32[32,128], index: 2, kind: input, shape index: {}]
  %s3 = inlined_call_operand.hbm [shape: f32[1,128], index: 3, kind: input, shape index: {}]
  %s4 = inlined_call_operand.hbm [shape: f32[32,128], index: 4, kind: input, shape index: {}]
  %s5 = inlined_call_operand.hbm [shape: f32[32,128], index: 5, kind: input, shape index: {}]
  %s6 = inlined_call_operand.hbm [shape: f32[1,128], index: 6, kind: input, shape index: {}]
  %s7 = inlined_call_operand.vmem [shape: f32[32,256], index: 7, kind: input, shape index: {}]
  %s8 = inlined_call_operand.vmem [shape: f32[64,256], index: 8, kind: input, shape index: {}]
  %s9 = inlined_call_operand.vmem [shape: f32[1,256], index: 9, kind: input, shape index: {}]
  %s10 = inlined_call_operand.vmem [shape: f32[64,32], index: 10, kind: input, shape index: {}]
  %s11 = inlined_call_operand.vmem [shape: f32[1,32], index: 11, kind: input, shape index: {}]
  %s12 = inlined_call_operand.hbm [shape: f32[8,8,32], index: 12, kind: output, shape index: {}]
  %s13 = sld [smem:[#allocation0]]
  $region82: #{tpu_custom_call.1} parent=0
    _
  %s15 = ssub.s32 1, %s13
  %s16 = scalar_select 0, %s15, %s13
  $region1: #{tpu_custom_call.1} parent=0
    #allocation3 [shape = 'u8[16384]{0}', space=vmem, size = 0x4000, scoped, tag = 'input window, operand 1, single buffered']
    #allocation4 [shape = 's32[1]{0}', space=sflag, size = 0x4, scoped, tag = 'scoped memory for tpu_custom_call.1']
    #allocation5 [shape = 's32[1]{0}', space=sflag, size = 0x4, scoped, tag = 'scoped memory for tpu_custom_call.1']
    #allocation6 [shape = 'u8[16384]{0}', space=vmem, size = 0x4000, scoped, tag = 'input window, operand 2, single buffered']
    #allocation7 [shape = 's32[1]{0}', space=sflag, size = 0x4, scoped, tag = 'scoped memory for tpu_custom_call.1']
    #allocation8 [shape = 'u8[512]{0}', space=vmem, size = 0x400, scoped, tag = 'input window, operand 3, single buffered']
    #allocation9 [shape = 'u8[16384]{0}', space=vmem, size = 0x4000, scoped, tag = 'input window, operand 4, single buffered']
    #allocation10 [shape = 's32[1]{0}', space=sflag, size = 0x4, scoped, tag = 'scoped memory for tpu_custom_call.1']
    #allocation11 [shape = 'u8[16384]{0}', space=vmem, size = 0x4000, scoped, tag = 'input window, operand 5, single buffered']
    #allocation12 [shape = 'u8[512]{0}', space=vmem, size = 0x400, scoped, tag = 'input window, operand 6, single buffered']
    #allocation13 [shape = 's32[1]{0}', space=sflag, size = 0x4, scoped, tag = 'scoped memory for tpu_custom_call.1']
    #allocation14 [shape = 'u8[32768]{0}', space=vmem, size = 0x8000, scoped, tag = 'output window, operand 0, single buffered']
    %17 = vsyncpa [#allocation4], 0
    %18 = vsyncpa [#allocation7], 0
    %19 = vsyncpa [#allocation10], 0
    %20 = vsyncpa [#allocation13], 0
    %21 = vsyncpa [#allocation5], 0
    // Predicated region
    $region2: #{tpu_custom_call.1} parent=1 // pred_check
      _
    $region3: #{tpu_custom_call.1} parent=1 // pred_check_branch
      %23 = sbr.rel (0) target = $region5
    $region4: #{tpu_custom_call.1} parent=1 // pred_region
      _
    $region5: #{tpu_custom_call.1} parent=1 // pred_fallthru
      _
    // Predicated region
    $region6: #{tpu_custom_call.1} parent=1 // pred_check
      _
    $region7: #{tpu_custom_call.1} parent=1 // pred_check_branch
      %25 = sbr.rel (0) target = $region9
    $region8: #{tpu_custom_call.1} parent=1 // pred_region
      %s27 = ssub.s32 512, 512
      %28 = vsyncadd [#allocation4], %s27
      %s29 = sshll.u32 [#allocation3], 4
      %s30 = int_to_ptr.vmem [resolvable:$true] %s29
      %35 = dma.hbm_to_vmem [thread:$0]  %s1, 512, %s30, [#allocation4], 128, 128, 8
    $region9: #{tpu_custom_call.1} parent=1 // pred_fallthru
      _
    // Predicated region
    $region10: #{tpu_custom_call.1} parent=1 // pred_check
      _
    $region11: #{tpu_custom_call.1} parent=1 // pred_check_branch
      %37 = sbr.rel (0) target = $region13
    $region12: #{tpu_custom_call.1} parent=1 // pred_region
      %s39 = ssub.s32 512, 512
      %40 = vsyncadd [#allocation7], %s39
      %s41 = sshll.u32 [#allocation6], 4
      %s42 = int_to_ptr.vmem [resolvable:$true] %s41
      %47 = dma.hbm_to_vmem [thread:$0]  %s2, 512, %s42, [#allocation7], 128, 128, 8
    $region13: #{tpu_custom_call.1} parent=1 // pred_fallthru
      _
    // Predicated region
    $region14: #{tpu_custom_call.1} parent=1 // pred_check
      _
    $region15: #{tpu_custom_call.1} parent=1 // pred_check_branch
      %49 = sbr.rel (0) target = $region17
    $region16: #{tpu_custom_call.1} parent=1 // pred_region
      %s51 = ssub.s32 16, 16
      %52 = vsyncadd [#allocation7], %s51
      %s54 = sshll.u32 [#allocation8], 4
      %s55 = int_to_ptr.vmem [resolvable:$true] %s54
      %57 = dma.hbm_to_vmem [thread:$0]  %s3, 16, %s55, [#allocation7]
    $region17: #{tpu_custom_call.1} parent=1 // pred_fallthru
      _
    // Predicated region
    $region18: #{tpu_custom_call.1} parent=1 // pred_check
      _
    $region19: #{tpu_custom_call.1} parent=1 // pred_check_branch
      %59 = sbr.rel (0) target = $region21
    $region20: #{tpu_custom_call.1} parent=1 // pred_region
      %s61 = ssub.s32 512, 512
      %62 = vsyncadd [#allocation10], %s61
      %s63 = sshll.u32 [#allocation9], 4
      %s64 = int_to_ptr.vmem [resolvable:$true] %s63
      %69 = dma.hbm_to_vmem [thread:$0]  %s4, 512, %s64, [#allocation10], 128, 128, 8
    $region21: #{tpu_custom_call.1} parent=1 // pred_fallthru
      _
    // Predicated region
    $region22: #{tpu_custom_call.1} parent=1 // pred_check
      _
    $region23: #{tpu_custom_call.1} parent=1 // pred_check_branch
      %71 = sbr.rel (0) target = $region25
    $region24: #{tpu_custom_call.1} parent=1 // pred_region
      %s73 = ssub.s32 512, 512
      %74 = vsyncadd [#allocation10], %s73
      %s75 = sshll.u32 [#allocation11], 4
      %s76 = int_to_ptr.vmem [resolvable:$true] %s75
      %81 = dma.hbm_to_vmem [thread:$0]  %s5, 512, %s76, [#allocation10], 128, 128, 8
    $region25: #{tpu_custom_call.1} parent=1 // pred_fallthru
      _
    // Predicated region
    $region26: #{tpu_custom_call.1} parent=1 // pred_check
      _
    $region27: #{tpu_custom_call.1} parent=1 // pred_check_branch
      %83 = sbr.rel (0) target = $region29
    $region28: #{tpu_custom_call.1} parent=1 // pred_region
      %s85 = ssub.s32 16, 16
      %86 = vsyncadd [#allocation13], %s85
      %s88 = sshll.u32 [#allocation12], 4
      %s89 = int_to_ptr.vmem [resolvable:$true] %s88
      %91 = dma.hbm_to_vmem [thread:$0]  %s6, 16, %s89, [#allocation13]
    $region29: #{tpu_custom_call.1} parent=1 // pred_fallthru
      _
    // Predicated region
    $region30: #{tpu_custom_call.1} parent=1 // pred_check
      _
    $region31: #{tpu_custom_call.1} parent=1 // pred_check_branch
      %93 = sbr.rel (0) target = $region33
    $region32: #{tpu_custom_call.1} parent=1 // pred_region
      _
    $region33: #{tpu_custom_call.1} parent=1 // pred_fallthru
      _
    // Predicated region
    $region34: #{tpu_custom_call.1} parent=1 // pred_check
      _
    $region35: #{tpu_custom_call.1} parent=1 // pred_check_branch
      %95 = sbr.rel (0) target = $region37
    $region36: #{tpu_custom_call.1} parent=1 // pred_region
      _
    $region37: #{tpu_custom_call.1} parent=1 // pred_fallthru
      _
    // Predicated region
    $region38: #{tpu_custom_call.1} parent=1 // pred_check
      _
    $region39: #{tpu_custom_call.1} parent=1 // pred_check_branch
      %97 = sbr.rel (0) target = $region41
    $region40: #{tpu_custom_call.1} parent=1 // pred_region
      _
    $region41: #{tpu_custom_call.1} parent=1 // pred_fallthru
      _
    // Predicated region
    $region42: #{tpu_custom_call.1} parent=1 // pred_check
      _
    $region43: #{tpu_custom_call.1} parent=1 // pred_check_branch
      %99 = sbr.rel (0) target = $region45
    $region44: #{tpu_custom_call.1} parent=1 // pred_region
      _
    $region45: #{tpu_custom_call.1} parent=1 // pred_fallthru
      _
    // Predicated region
    $region46: #{tpu_custom_call.1} parent=1 // pred_check
      _
    $region47: #{tpu_custom_call.1} parent=1 // pred_check_branch
      %101 = sbr.rel (0) target = $region49
    $region48: #{tpu_custom_call.1} parent=1 // pred_region
      _
    $region49: #{tpu_custom_call.1} parent=1 // pred_fallthru
      _
    // Predicated region
    $region50: #{tpu_custom_call.1} parent=1 // pred_check
      _
    $region51: #{tpu_custom_call.1} parent=1 // pred_check_branch
      %103 = sbr.rel (0) target = $region53
    $region52: #{tpu_custom_call.1} parent=1 // pred_region
      %104 = dma.done [#allocation4], 512
    $region53: #{tpu_custom_call.1} parent=1 // pred_fallthru
      _
    // Predicated region
    $region54: #{tpu_custom_call.1} parent=1 // pred_check
      _
    $region55: #{tpu_custom_call.1} parent=1 // pred_check_branch
      %106 = sbr.rel (0) target = $region57
    $region56: #{tpu_custom_call.1} parent=1 // pred_region
      %107 = dma.done [#allocation7], 512
    $region57: #{tpu_custom_call.1} parent=1 // pred_fallthru
      _
    // Predicated region
    $region58: #{tpu_custom_call.1} parent=1 // pred_check
      _
    $region59: #{tpu_custom_call.1} parent=1 // pred_check_branch
      %109 = sbr.rel (0) target = $region61
    $region60: #{tpu_custom_call.1} parent=1 // pred_region
      %110 = dma.done [#allocation7], 16
    $region61: #{tpu_custom_call.1} parent=1 // pred_fallthru
      _
    // Predicated region
    $region62: #{tpu_custom_call.1} parent=1 // pred_check
      _
    $region63: #{tpu_custom_call.1} parent=1 // pred_check_branch
      %112 = sbr.rel (0) target = $region65
    $region64: #{tpu_custom_call.1} parent=1 // pred_region
      %113 = dma.done [#allocation10], 512
    $region65: #{tpu_custom_call.1} parent=1 // pred_fallthru
      _
    // Predicated region
    $region66: #{tpu_custom_call.1} parent=1 // pred_check
      _
    $region67: #{tpu_custom_call.1} parent=1 // pred_check_branch
      %115 = sbr.rel (0) target = $region69
    $region68: #{tpu_custom_call.1} parent=1 // pred_region
      %116 = dma.done [#allocation10], 512
    $region69: #{tpu_custom_call.1} parent=1 // pred_fallthru
      _
    // Predicated region
    $region70: #{tpu_custom_call.1} parent=1 // pred_check
      _
    $region71: #{tpu_custom_call.1} parent=1 // pred_check_branch
      %118 = sbr.rel (0) target = $region73
    $region72: #{tpu_custom_call.1} parent=1 // pred_region
      %119 = dma.done [#allocation13], 16
    $region73: #{tpu_custom_call.1} parent=1 // pred_fallthru
      _
    %v120 = vld [vmem:[#allocation3] sm:$0xff]
    %v121 = vld [vmem:[#allocation3 + $0x8] sm:$0xff]
    %v122 = vld [vmem:[#allocation3 + $0x10] sm:$0xff]
    %v123 = vld [vmem:[#allocation3 + $0x18] sm:$0xff]
    %v124 = vld [vmem:[#allocation6] sm:$0xff]
    %v125 = vld [vmem:[#allocation6 + $0x8] sm:$0xff]
    %v126 = vld [vmem:[#allocation6 + $0x10] sm:$0xff]
    %v127 = vld [vmem:[#allocation6 + $0x18] sm:$0xff]
    %v128 = vld [vmem:[#allocation9] sm:$0xff]
    %v129 = vld [vmem:[#allocation9 + $0x8] sm:$0xff]
    %v130 = vld [vmem:[#allocation9 + $0x10] sm:$0xff]
    %v131 = vld [vmem:[#allocation9 + $0x18] sm:$0xff]
    %v132 = vld [vmem:[#allocation11] sm:$0xff]
    %v133 = vld [vmem:[#allocation11 + $0x8] sm:$0xff]
    %v134 = vld [vmem:[#allocation11 + $0x10] sm:$0xff]
    %v135 = vld [vmem:[#allocation11 + $0x18] sm:$0xff]
    %v136 = vld [vmem:[%s7] sm:$0xff]
    %v137 = vld [vmem:[%s7 + $0x8] sm:$0xff]
    %v138 = vld [vmem:[%s7 + $0x10] sm:$0xff]
    %v139 = vld [vmem:[%s7 + $0x18] sm:$0xff]
    %v140 = vld [vmem:[%s7 + $0x20] sm:$0xff]
    %v141 = vld [vmem:[%s7 + $0x28] sm:$0xff]
    %v142 = vld [vmem:[%s7 + $0x30] sm:$0xff]
    %v143 = vld [vmem:[%s7 + $0x38] sm:$0xff]
    %v144 = vld [vmem:[%s8] sm:$0xff]
    %v145 = vld [vmem:[%s8 + $0x8] sm:$0xff]
    %v146 = vld [vmem:[%s8 + $0x10] sm:$0xff]
    %v147 = vld [vmem:[%s8 + $0x18] sm:$0xff]
    %v148 = vld [vmem:[%s8 + $0x20] sm:$0xff]
    %v149 = vld [vmem:[%s8 + $0x28] sm:$0xff]
    %v150 = vld [vmem:[%s8 + $0x30] sm:$0xff]
    %v151 = vld [vmem:[%s8 + $0x38] sm:$0xff]
    %v152 = vld [vmem:[%s8 + $0x40] sm:$0xff]
    %v153 = vld [vmem:[%s8 + $0x48] sm:$0xff]
    %v154 = vld [vmem:[%s8 + $0x50] sm:$0xff]
    %v155 = vld [vmem:[%s8 + $0x58] sm:$0xff]
    %v156 = vld [vmem:[%s8 + $0x60] sm:$0xff]
    %v157 = vld [vmem:[%s8 + $0x68] sm:$0xff]
    %v158 = vld [vmem:[%s8 + $0x70] sm:$0xff]
    %v159 = vld [vmem:[%s8 + $0x78] sm:$0xff]
    %v160 = vld [vmem:[%s10] sm:$0xff]
    %v161 = vld [vmem:[%s10 + $0x8] sm:$0xff]
    %v162 = vld [vmem:[%s10 + $0x10] sm:$0xff]
    %v163 = vld [vmem:[%s10 + $0x18] sm:$0xff]
    %v164 = vld [vmem:[%s10 + $0x20] sm:$0xff]
    %v165 = vld [vmem:[%s10 + $0x28] sm:$0xff]
    %v166 = vld [vmem:[%s10 + $0x30] sm:$0xff]
    %v167 = vld [vmem:[%s10 + $0x38] sm:$0xff]
    %v168 = vld [vmem:[#allocation12] sm:$0x1]
    %v170 = vlaneseq
    %v171 = vshrl.u32 %v170, 7
    %v172 = vsub.s32 0, %v171
    %v173 = vrot.slane %v168, %v172
    %v175 = vld [vmem:[%s9] sm:$0x3]
    %v177 = vlaneseq
    %v178 = vshrl.u32 %v177, 7
    %v179 = vsub.s32 0, %v178
    %v180 = vrot.slane %v175, %v179
    %v181 = vlaneseq
    %v182 = vshrl.u32 %v181, 7
    %v183 = vsub.s32 1, %v182
    %v184 = vrot.slane %v175, %v183
    %v187 = vld [vmem:[%s11] sm:$0x1]
    %v189 = vlaneseq
    %v190 = vshrl.u32 %v189, 7
    %v191 = vsub.s32 0, %v190
    %v192 = vrot.slane %v187, %v191
    %v194 = vld [vmem:[%s0] sm:$0xff]
    %v195 = vld [vmem:[%s0 + $0x8] sm:$0xff]
    %v196 = vld [vmem:[%s0 + $0x10] sm:$0xff]
    %v197 = vld [vmem:[%s0 + $0x18] sm:$0xff]
    %v198 = vld [vmem:[%s0 + $0x20] sm:$0xff]
    %v199 = vld [vmem:[%s0 + $0x28] sm:$0xff]
    %v200 = vld [vmem:[%s0 + $0x30] sm:$0xff]
    %v201 = vld [vmem:[%s0 + $0x38] sm:$0xff]
    %v202 = vld [vmem:[#allocation8] sm:$0x1]
    %v204 = vlaneseq
    %v205 = vshrl.u32 %v204, 7
    %v206 = vsub.s32 0, %v205
    %v207 = vrot.slane %v202, %v206
    %vm209 = vcmask 261120
    %v211 = vsel %vm209, %v194, 0
    %v214 = vsel %vm209, %v195, 0
    %v217 = vsel %vm209, %v196, 0
    %v220 = vsel %vm209, %v197, 0
    %v223 = vsel %vm209, %v198, 0
    %v226 = vsel %vm209, %v199, 0
    %v229 = vsel %vm209, %v200, 0
    %v232 = vsel %vm209, %v201, 0
    %234 = vmatprep.subr.mxu0 0.0
    %235 = vmatpush1.msra.mxu0 %v120
    %236 = vmatprep.subr.mxu0 0.0
    %237 = vmatpush1.msra.mxu0 %v121
    %238 = vmatprep.subr.mxu0 0.0
    %239 = vmatpush1.msra.mxu0 %v122
    %240 = vmatprep.subr.mxu0 0.0
    %241 = vmatpush1.msra.mxu0 %v123
    %242 = vmatprep.subr.mxu0 0.0
    %243 = vmatpush1.msra.mxu0 0.0
    %244 = vmatprep.subr.mxu0 0.0
    %245 = vmatpush1.msra.mxu0 0.0
    %246 = vmatprep.subr.mxu0 0.0
    %247 = vmatpush1.msra.mxu0 0.0
    %248 = vmatprep.subr.mxu0 0.0
    %249 = vmatpush1.msra.mxu0 0.0
    %250 = vmatprep.subr.mxu0 0.0
    %251 = vmatpush1.msra.mxu0 0.0
    %252 = vmatprep.subr.mxu0 0.0
    %253 = vmatpush1.msra.mxu0 0.0
    %254 = vmatprep.subr.mxu0 0.0
    %255 = vmatpush1.msra.mxu0 0.0
    %256 = vmatprep.subr.mxu0 0.0
    %257 = vmatpush1.msra.mxu0 0.0
    %258 = vmatprep.subr.mxu0 0.0
    %259 = vmatpush1.msra.mxu0 0.0
    %260 = vmatprep.subr.mxu0 0.0
    %261 = vmatpush1.msra.mxu0 0.0
    %262 = vmatprep.subr.mxu0 0.0
    %263 = vmatpush1.msra.mxu0 0.0
    %264 = vmatprep.subr.mxu0 0.0
    %265 = vmatpush1.msra.mxu0 0.0
    %266 = vmatprep.subr.mxu0 0.0
    %267 = vmatpush1.msra.mxu0 0.0
    %268 = vmatprep.subr.mxu0 0.0
    %269 = vmatpush1.msra.mxu0 0.0
    %270 = vmatprep.subr.mxu0 0.0
    %271 = vmatpush1.msra.mxu0 0.0
    %272 = vmatprep.subr.mxu0 0.0
    %273 = vmatpush1.msra.mxu0 0.0
    %274 = vmatprep.subr.mxu0 0.0
    %275 = vmatpush1.msra.mxu0 0.0
    %276 = vmatprep.subr.mxu0 0.0
    %277 = vmatpush1.msra.mxu0 0.0
    %278 = vmatprep.subr.mxu0 0.0
    %279 = vmatpush1.msra.mxu0 0.0
    %280 = vmatprep.subr.mxu0 0.0
    %281 = vmatpush1.msra.mxu0 0.0
    %282 = vmatprep.subr.mxu0 0.0
    %283 = vmatpush1.msra.mxu0 0.0
    %284 = vmatprep.subr.mxu0 0.0
    %285 = vmatpush1.msra.mxu0 0.0
    %286 = vmatprep.subr.mxu0 0.0
    %287 = vmatpush1.msra.mxu0 0.0
    %288 = vmatprep.subr.mxu0 0.0
    %289 = vmatpush1.msra.mxu0 0.0
    %290 = vmatprep.subr.mxu0 0.0
    %291 = vmatpush1.msra.mxu0 0.0
    %292 = vmatprep.subr.mxu0 0.0
    %293 = vmatpush1.msra.mxu0 0.0
    %294 = vmatprep.subr.mxu0 0.0
    %295 = vmatpush1.msra.mxu0 0.0
    %296 = vmatprep.subr.mxu0 0.0
    %297 = vmatpush1.msra.mxu0 0.0
    %298 = vmatprep.mubr.f32.mxu0 0.0
    %299 = vmatmul.mubr.f32.gmra.mrb[0].mxu0 %v211
    %v300 = vpop.f32.mrb[0].mxu0
    %v301 = vadd.f32 %v207, %v300
    %v302 = vpop.f32.mrb[0].mxu0
    %303 = vmatprep.mubr.f32.mxu0 0.0
    %304 = vmatmul.mubr.f32.gmra.mrb[0].mxu0 %v214
    %v305 = vpop.f32.mrb[0].mxu0
    %v306 = vadd.f32 %v207, %v305
    %v307 = vpop.f32.mrb[0].mxu0
    %308 = vmatprep.mubr.f32.mxu0 0.0
    %309 = vmatmul.mubr.f32.gmra.mrb[0].mxu0 %v217
    %v310 = vpop.f32.mrb[0].mxu0
    %v311 = vadd.f32 %v207, %v310
    %v312 = vpop.f32.mrb[0].mxu0
    %313 = vmatprep.mubr.f32.mxu0 0.0
    %314 = vmatmul.mubr.f32.gmra.mrb[0].mxu0 %v220
    %v315 = vpop.f32.mrb[0].mxu0
    %v316 = vadd.f32 %v207, %v315
    %v317 = vpop.f32.mrb[0].mxu0
    %318 = vmatprep.mubr.f32.mxu0 0.0
    %319 = vmatmul.mubr.f32.gmra.mrb[0].mxu0 %v223
    %v320 = vpop.f32.mrb[0].mxu0
    %v321 = vadd.f32 %v207, %v320
    %v322 = vpop.f32.mrb[0].mxu0
    %323 = vmatprep.mubr.f32.mxu0 0.0
    %324 = vmatmul.mubr.f32.gmra.mrb[0].mxu0 %v226
    %v325 = vpop.f32.mrb[0].mxu0
    %v326 = vadd.f32 %v207, %v325
    %v327 = vpop.f32.mrb[0].mxu0
    %328 = vmatprep.mubr.f32.mxu0 0.0
    %329 = vmatmul.mubr.f32.gmra.mrb[0].mxu0 %v229
    %v330 = vpop.f32.mrb[0].mxu0
    %v331 = vadd.f32 %v207, %v330
    %v332 = vpop.f32.mrb[0].mxu0
    %333 = vmatprep.mubr.f32.mxu0 0.0
    %334 = vmatmul.mubr.f32.gmra.mrb[0].mxu0 %v232
    %v335 = vpop.f32.mrb[0].mxu0
    %v336 = vadd.f32 %v207, %v335
    %v337 = vpop.f32.mrb[0].mxu0
    %338 = vdwg.mxu0
    %339 = vst [vmem:[#allocation2] sm:$0xff] %v301
    %340 = vst [vmem:[#allocation2 + $0x8] sm:$0xff] %v306
    %341 = vst [vmem:[#allocation2 + $0x10] sm:$0xff] %v311
    %342 = vst [vmem:[#allocation2 + $0x18] sm:$0xff] %v316
    %343 = vst [vmem:[#allocation2 + $0x20] sm:$0xff] %v321
    %344 = vst [vmem:[#allocation2 + $0x28] sm:$0xff] %v326
    %345 = vst [vmem:[#allocation2 + $0x30] sm:$0xff] %v331
    %346 = vst [vmem:[#allocation2 + $0x38] sm:$0xff] %v336
    %v347 = vld [vmem:[#allocation2] sm:$0xff]
    %v349 = vsel %vm209, 0.0, 0
    %351 = vmatprep.subr.mxu0 0.0
    %352 = vmatpush1.msra.mxu0 %v124
    %353 = vmatprep.subr.mxu0 0.0
    %354 = vmatpush1.msra.mxu0 %v125
    %355 = vmatprep.subr.mxu0 0.0
    %356 = vmatpush1.msra.mxu0 %v126
    %357 = vmatprep.subr.mxu0 0.0
    %358 = vmatpush1.msra.mxu0 %v127
    %359 = vmatprep.subr.mxu0 0.0
    %360 = vmatpush1.msra.mxu0 0.0
    %361 = vmatprep.subr.mxu0 0.0
    %362 = vmatpush1.msra.mxu0 0.0
    %363 = vmatprep.subr.mxu0 0.0
    %364 = vmatpush1.msra.mxu0 0.0
    %365 = vmatprep.subr.mxu0 0.0
    %366 = vmatpush1.msra.mxu0 0.0
    %367 = vmatprep.subr.mxu0 0.0
    %368 = vmatpush1.msra.mxu0 0.0
    %369 = vmatprep.subr.mxu0 0.0
    %370 = vmatpush1.msra.mxu0 0.0
    %371 = vmatprep.subr.mxu0 0.0
    %372 = vmatpush1.msra.mxu0 0.0
    %373 = vmatprep.subr.mxu0 0.0
    %374 = vmatpush1.msra.mxu0 0.0
    %375 = vmatprep.subr.mxu0 0.0
    %376 = vmatpush1.msra.mxu0 0.0
    %377 = vmatprep.subr.mxu0 0.0
    %378 = vmatpush1.msra.mxu0 0.0
    %379 = vmatprep.subr.mxu0 0.0
    %380 = vmatpush1.msra.mxu0 0.0
    %381 = vmatprep.subr.mxu0 0.0
    %382 = vmatpush1.msra.mxu0 0.0
    %383 = vmatprep.subr.mxu0 0.0
    %384 = vmatpush1.msra.mxu0 0.0
    %385 = vmatprep.subr.mxu0 0.0
    %386 = vmatpush1.msra.mxu0 0.0
    %387 = vmatprep.subr.mxu0 0.0
    %388 = vmatpush1.msra.mxu0 0.0
    %389 = vmatprep.subr.mxu0 0.0
    %390 = vmatpush1.msra.mxu0 0.0
    %391 = vmatprep.subr.mxu0 0.0
    %392 = vmatpush1.msra.mxu0 0.0
    %393 = vmatprep.subr.mxu0 0.0
    %394 = vmatpush1.msra.mxu0 0.0
    %395 = vmatprep.subr.mxu0 0.0
    %396 = vmatpush1.msra.mxu0 0.0
    %397 = vmatprep.subr.mxu0 0.0
    %398 = vmatpush1.msra.mxu0 0.0
    %399 = vmatprep.subr.mxu0 0.0
    %400 = vmatpush1.msra.mxu0 0.0
    %401 = vmatprep.subr.mxu0 0.0
    %402 = vmatpush1.msra.mxu0 0.0
    %403 = vmatprep.subr.mxu0 0.0
    %404 = vmatpush1.msra.mxu0 0.0
    %405 = vmatprep.subr.mxu0 0.0
    %406 = vmatpush1.msra.mxu0 0.0
    %407 = vmatprep.subr.mxu0 0.0
    %408 = vmatpush1.msra.mxu0 0.0
    %409 = vmatprep.subr.mxu0 0.0
    %410 = vmatpush1.msra.mxu0 0.0
    %411 = vmatprep.subr.mxu0 0.0
    %412 = vmatpush1.msra.mxu0 0.0
    %413 = vmatprep.subr.mxu0 0.0
    %414 = vmatpush1.msra.mxu0 0.0
    %415 = vmatprep.mubr.f32.mxu0 0.0
    %416 = vmatmul.mubr.f32.gmra.mrb[0].mxu0 %v349
    %v417 = vpop.f32.mrb[0].mxu0
    %v418 = vadd.f32 0.0, %v417
    %v419 = vpop.f32.mrb[0].mxu0
    %420 = vdwg.mxu0
    %v421 = vadd.f32 %v347, %v418
    %v422 = vxor.u32 %v421, 2147483648
    %v423 = vmul.f32 %v422, 1.442695
    %v424 = vpow.pop %v423
    %v425 = vadd.f32 %v424, 1.0
    %v426 = vrcp.pop %v425
    %v427 = vmul.f32 1.0, %v426
    %v428 = vmul.f32 %v427, 2.0
    %v429 = vsub.f32 %v428, 1.0
    %v430 = vmul.f32 %v427, 0.0
    %432 = vrot.lane.b32.xlu0 %v429, 64
    %v433 = vpop.permute.xlu0 %432
    %v435 = vmul.f32 %v427, %v433
    %437 = vrot.lane.b32.xlu0 %v435, 32
    %v438 = vpop.permute.xlu0 %437
    %v440 = vadd.f32 %v430, %v438
    %v441 = vtanh.pop %v440
    %443 = vrot.lane.b32.xlu0 %v441, 64
    %v444 = vpop.permute.xlu0 %443
    %v446 = vmul.f32 %v427, %v444
    %447 = vmatprep.subr.mxu0 0.0
    %448 = vmatpush1.msra.mxu0 %v132
    %449 = vmatprep.subr.mxu0 0.0
    %450 = vmatpush1.msra.mxu0 %v133
    %451 = vmatprep.subr.mxu0 0.0
    %452 = vmatpush1.msra.mxu0 %v134
    %453 = vmatprep.subr.mxu0 0.0
    %454 = vmatpush1.msra.mxu0 %v135
    %455 = vmatprep.subr.mxu0 0.0
    %456 = vmatpush1.msra.mxu0 0.0
    %457 = vmatprep.subr.mxu0 0.0
    %458 = vmatpush1.msra.mxu0 0.0
    %459 = vmatprep.subr.mxu0 0.0
    %460 = vmatpush1.msra.mxu0 0.0
    %461 = vmatprep.subr.mxu0 0.0
    %462 = vmatpush1.msra.mxu0 0.0
    %463 = vmatprep.subr.mxu0 0.0
    %464 = vmatpush1.msra.mxu0 0.0
    %465 = vmatprep.subr.mxu0 0.0
    %466 = vmatpush1.msra.mxu0 0.0
    %467 = vmatprep.subr.mxu0 0.0
    %468 = vmatpush1.msra.mxu0 0.0
    %469 = vmatprep.subr.mxu0 0.0
    %470 = vmatpush1.msra.mxu0 0.0
    %471 = vmatprep.subr.mxu0 0.0
    %472 = vmatpush1.msra.mxu0 0.0
    %473 = vmatprep.subr.mxu0 0.0
    %474 = vmatpush1.msra.mxu0 0.0
    %475 = vmatprep.subr.mxu0 0.0
    %476 = vmatpush1.msra.mxu0 0.0
    %477 = vmatprep.subr.mxu0 0.0
    %478 = vmatpush1.msra.mxu0 0.0
    %479 = vmatprep.subr.mxu0 0.0
    %480 = vmatpush1.msra.mxu0 0.0
    %481 = vmatprep.subr.mxu0 0.0
    %482 = vmatpush1.msra.mxu0 0.0
    %483 = vmatprep.subr.mxu0 0.0
    %484 = vmatpush1.msra.mxu0 0.0
    %485 = vmatprep.subr.mxu0 0.0
    %486 = vmatpush1.msra.mxu0 0.0
    %487 = vmatprep.subr.mxu0 0.0
    %488 = vmatpush1.msra.mxu0 0.0
    %489 = vmatprep.subr.mxu0 0.0
    %490 = vmatpush1.msra.mxu0 0.0
    %491 = vmatprep.subr.mxu0 0.0
    %492 = vmatpush1.msra.mxu0 0.0
    %493 = vmatprep.subr.mxu0 0.0
    %494 = vmatpush1.msra.mxu0 0.0
    %495 = vmatprep.subr.mxu0 0.0
    %496 = vmatpush1.msra.mxu0 0.0
    %497 = vmatprep.subr.mxu0 0.0
    %498 = vmatpush1.msra.mxu0 0.0
    %499 = vmatprep.subr.mxu0 0.0
    %500 = vmatpush1.msra.mxu0 0.0
    %501 = vmatprep.subr.mxu0 0.0
    %502 = vmatpush1.msra.mxu0 0.0
    %503 = vmatprep.subr.mxu0 0.0
    %504 = vmatpush1.msra.mxu0 0.0
    %505 = vmatprep.subr.mxu0 0.0
    %506 = vmatpush1.msra.mxu0 0.0
    %507 = vmatprep.subr.mxu0 0.0
    %508 = vmatpush1.msra.mxu0 0.0
    %509 = vmatprep.subr.mxu0 0.0
    %510 = vmatpush1.msra.mxu0 0.0
    %511 = vmatprep.mubr.f32.mxu0 0.0
    %512 = vmatmul.mubr.f32.gmra.mrb[0].mxu0 %v349
    %v513 = vpop.f32.mrb[0].mxu0
    %v514 = vadd.f32 0.0, %v513
    %v515 = vpop.f32.mrb[0].mxu0
    %516 = vdwg.mxu0
    %518 = vrot.lane.b32.xlu0 %v446, 32
    %v519 = vpop.permute.xlu0 %518
    %v520 = vsel %vm209, %v519, 0
    %522 = vmatprep.subr.mxu0 0.0
    %523 = vmatpush1.msra.mxu0 %v128
    %524 = vmatprep.subr.mxu0 0.0
    %525 = vmatpush1.msra.mxu0 %v129
    %526 = vmatprep.subr.mxu0 0.0
    %527 = vmatpush1.msra.mxu0 %v130
    %528 = vmatprep.subr.mxu0 0.0
    %529 = vmatpush1.msra.mxu0 %v131
    %530 = vmatprep.subr.mxu0 0.0
    %531 = vmatpush1.msra.mxu0 0.0
    %532 = vmatprep.subr.mxu0 0.0
    %533 = vmatpush1.msra.mxu0 0.0
    %534 = vmatprep.subr.mxu0 0.0
    %535 = vmatpush1.msra.mxu0 0.0
    %536 = vmatprep.subr.mxu0 0.0
    %537 = vmatpush1.msra.mxu0 0.0
    %538 = vmatprep.subr.mxu0 0.0
    %539 = vmatpush1.msra.mxu0 0.0
    %540 = vmatprep.subr.mxu0 0.0
    %541 = vmatpush1.msra.mxu0 0.0
    %542 = vmatprep.subr.mxu0 0.0
    %543 = vmatpush1.msra.mxu0 0.0
    %544 = vmatprep.subr.mxu0 0.0
    %545 = vmatpush1.msra.mxu0 0.0
    %546 = vmatprep.subr.mxu0 0.0
    %547 = vmatpush1.msra.mxu0 0.0
    %548 = vmatprep.subr.mxu0 0.0
    %549 = vmatpush1.msra.mxu0 0.0
    %550 = vmatprep.subr.mxu0 0.0
    %551 = vmatpush1.msra.mxu0 0.0
    %552 = vmatprep.subr.mxu0 0.0
    %553 = vmatpush1.msra.mxu0 0.0
    %554 = vmatprep.subr.mxu0 0.0
    %555 = vmatpush1.msra.mxu0 0.0
    %556 = vmatprep.subr.mxu0 0.0
    %557 = vmatpush1.msra.mxu0 0.0
    %558 = vmatprep.subr.mxu0 0.0
    %559 = vmatpush1.msra.mxu0 0.0
    %560 = vmatprep.subr.mxu0 0.0
    %561 = vmatpush1.msra.mxu0 0.0
    %562 = vmatprep.subr.mxu0 0.0
    %563 = vmatpush1.msra.mxu0 0.0
    %564 = vmatprep.subr.mxu0 0.0
    %565 = vmatpush1.msra.mxu0 0.0
    %566 = vmatprep.subr.mxu0 0.0
    %567 = vmatpush1.msra.mxu0 0.0
    %568 = vmatprep.subr.mxu0 0.0
    %569 = vmatpush1.msra.mxu0 0.0
    %570 = vmatprep.subr.mxu0 0.0
    %571 = vmatpush1.msra.mxu0 0.0
    %572 = vmatprep.subr.mxu0 0.0
    %573 = vmatpush1.msra.mxu0 0.0
    %574 = vmatprep.subr.mxu0 0.0
    %575 = vmatpush1.msra.mxu0 0.0
    %576 = vmatprep.subr.mxu0 0.0
    %577 = vmatpush1.msra.mxu0 0.0
    %578 = vmatprep.subr.mxu0 0.0
    %579 = vmatpush1.msra.mxu0 0.0
    %580 = vmatprep.subr.mxu0 0.0
    %581 = vmatpush1.msra.mxu0 0.0
    %582 = vmatprep.subr.mxu0 0.0
    %583 = vmatpush1.msra.mxu0 0.0
    %584 = vmatprep.subr.mxu0 0.0
    %585 = vmatpush1.msra.mxu0 0.0
    %586 = vmatprep.mubr.f32.mxu0 0.0
    %587 = vmatmul.mubr.f32.gmra.mrb[0].mxu0 %v520
    %v588 = vpop.f32.mrb[0].mxu0
    %v589 = vadd.f32 %v514, %v588
    %v590 = vpop.f32.mrb[0].mxu0
    %591 = vdwg.mxu0
    %v592 = vadd.f32 %v589, %v173
    %v593 = vxor.u32 %v592, 2147483648
    %v594 = vmul.f32 %v593, 1.442695
    %v595 = vpow.pop %v594
    %v596 = vadd.f32 %v595, 1.0
    %v597 = vrcp.pop %v596
    %v598 = vmul.f32 1.0, %v597
    %v599 = vmul.f32 %v598, 2.0
    %v600 = vsub.f32 %v599, 1.0
    %v601 = vmul.f32 %v598, 0.0
    %603 = vrot.lane.b32.xlu0 %v600, 64
    %v604 = vpop.permute.xlu0 %603
    %v606 = vmul.f32 %v598, %v604
    %608 = vrot.lane.b32.xlu0 %v606, 32
    %v609 = vpop.permute.xlu0 %608
    %v611 = vadd.f32 %v601, %v609
    %v612 = vtanh.pop %v611
    %614 = vrot.lane.b32.xlu0 %v612, 64
    %v615 = vpop.permute.xlu0 %614
    %v617 = vmul.f32 %v598, %v615
    %vm618 = vcmask 523264
    %v619 = vsel %vm618, 0.0, 0
    %621 = vmatprep.subr.mxu0 %v145
    %622 = vmatpush1.msra.mxu0 %v144
    %623 = vmatprep.subr.mxu0 %v147
    %624 = vmatpush1.msra.mxu0 %v146
    %625 = vmatprep.subr.mxu0 %v149
    %626 = vmatpush1.msra.mxu0 %v148
    %627 = vmatprep.subr.mxu0 %v151
    %628 = vmatpush1.msra.mxu0 %v150
    %629 = vmatprep.subr.mxu0 %v153
    %630 = vmatpush1.msra.mxu0 %v152
    %631 = vmatprep.subr.mxu0 %v155
    %632 = vmatpush1.msra.mxu0 %v154
    %633 = vmatprep.subr.mxu0 %v157
    %634 = vmatpush1.msra.mxu0 %v156
    %635 = vmatprep.subr.mxu0 %v159
    %636 = vmatpush1.msra.mxu0 %v158
    %637 = vmatprep.subr.mxu0 0.0
    %638 = vmatpush1.msra.mxu0 0.0
    %639 = vmatprep.subr.mxu0 0.0
    %640 = vmatpush1.msra.mxu0 0.0
    %641 = vmatprep.subr.mxu0 0.0
    %642 = vmatpush1.msra.mxu0 0.0
    %643 = vmatprep.subr.mxu0 0.0
    %644 = vmatpush1.msra.mxu0 0.0
    %645 = vmatprep.subr.mxu0 0.0
    %646 = vmatpush1.msra.mxu0 0.0
    %647 = vmatprep.subr.mxu0 0.0
    %648 = vmatpush1.msra.mxu0 0.0
    %649 = vmatprep.subr.mxu0 0.0
    %650 = vmatpush1.msra.mxu0 0.0
    %651 = vmatprep.subr.mxu0 0.0
    %652 = vmatpush1.msra.mxu0 0.0
    %653 = vmatprep.subr.mxu0 0.0
    %654 = vmatpush1.msra.mxu0 0.0
    %655 = vmatprep.subr.mxu0 0.0
    %656 = vmatpush1.msra.mxu0 0.0
    %657 = vmatprep.subr.mxu0 0.0
    %658 = vmatpush1.msra.mxu0 0.0
    %659 = vmatprep.subr.mxu0 0.0
    %660 = vmatpush1.msra.mxu0 0.0
    %661 = vmatprep.subr.mxu0 0.0
    %662 = vmatpush1.msra.mxu0 0.0
    %663 = vmatprep.subr.mxu0 0.0
    %664 = vmatpush1.msra.mxu0 0.0
    %665 = vmatprep.subr.mxu0 0.0
    %666 = vmatpush1.msra.mxu0 0.0
    %667 = vmatprep.subr.mxu0 0.0
    %668 = vmatpush1.msra.mxu0 0.0
    %669 = vmatprep.subr.mxu0 0.0
    %670 = vmatpush1.msra.mxu0 0.0
    %671 = vmatprep.subr.mxu0 0.0
    %672 = vmatpush1.msra.mxu0 0.0
    %673 = vmatprep.subr.mxu0 0.0
    %674 = vmatpush1.msra.mxu0 0.0
    %675 = vmatprep.subr.mxu0 0.0
    %676 = vmatpush1.msra.mxu0 0.0
    %677 = vmatprep.subr.mxu0 0.0
    %678 = vmatpush1.msra.mxu0 0.0
    %679 = vmatprep.subr.mxu0 0.0
    %680 = vmatpush1.msra.mxu0 0.0
    %681 = vmatprep.subr.mxu0 0.0
    %682 = vmatpush1.msra.mxu0 0.0
    %683 = vmatprep.subr.mxu0 0.0
    %684 = vmatpush1.msra.mxu0 0.0
    %685 = vmatprep.mubr.f32.mxu0 0.0
    %686 = vmatmul.mubr.f32.gmra.mrb[0].mxu0 %v619
    %v687 = vpop.f32.mrb[0].mxu0
    %v688 = vadd.f32 0.0, %v687
    %v689 = vpop.f32.mrb[0].mxu0
    %v690 = vadd.f32 0.0, %v689
    %691 = vdwg.mxu0
    %693 = vrot.lane.b32.xlu0 %v617, 32
    %v694 = vpop.permute.xlu0 %693
    %v695 = vsel %vm209, %v694, 0
    %697 = vmatprep.subr.mxu0 %v137
    %698 = vmatpush1.msra.mxu0 %v136
    %699 = vmatprep.subr.mxu0 %v139
    %700 = vmatpush1.msra.mxu0 %v138
    %701 = vmatprep.subr.mxu0 %v141
    %702 = vmatpush1.msra.mxu0 %v140
    %703 = vmatprep.subr.mxu0 %v143
    %704 = vmatpush1.msra.mxu0 %v142
    %705 = vmatprep.subr.mxu0 0.0
    %706 = vmatpush1.msra.mxu0 0.0
    %707 = vmatprep.subr.mxu0 0.0
    %708 = vmatpush1.msra.mxu0 0.0
    %709 = vmatprep.subr.mxu0 0.0
    %710 = vmatpush1.msra.mxu0 0.0
    %711 = vmatprep.subr.mxu0 0.0
    %712 = vmatpush1.msra.mxu0 0.0
    %713 = vmatprep.subr.mxu0 0.0
    %714 = vmatpush1.msra.mxu0 0.0
    %715 = vmatprep.subr.mxu0 0.0
    %716 = vmatpush1.msra.mxu0 0.0
    %717 = vmatprep.subr.mxu0 0.0
    %718 = vmatpush1.msra.mxu0 0.0
    %719 = vmatprep.subr.mxu0 0.0
    %720 = vmatpush1.msra.mxu0 0.0
    %721 = vmatprep.subr.mxu0 0.0
    %722 = vmatpush1.msra.mxu0 0.0
    %723 = vmatprep.subr.mxu0 0.0
    %724 = vmatpush1.msra.mxu0 0.0
    %725 = vmatprep.subr.mxu0 0.0
    %726 = vmatpush1.msra.mxu0 0.0
    %727 = vmatprep.subr.mxu0 0.0
    %728 = vmatpush1.msra.mxu0 0.0
    %729 = vmatprep.subr.mxu0 0.0
    %730 = vmatpush1.msra.mxu0 0.0
    %731 = vmatprep.subr.mxu0 0.0
    %732 = vmatpush1.msra.mxu0 0.0
    %733 = vmatprep.subr.mxu0 0.0
    %734 = vmatpush1.msra.mxu0 0.0
    %735 = vmatprep.subr.mxu0 0.0
    %736 = vmatpush1.msra.mxu0 0.0
    %737 = vmatprep.subr.mxu0 0.0
    %738 = vmatpush1.msra.mxu0 0.0
    %739 = vmatprep.subr.mxu0 0.0
    %740 = vmatpush1.msra.mxu0 0.0
    %741 = vmatprep.subr.mxu0 0.0
    %742 = vmatpush1.msra.mxu0 0.0
    %743 = vmatprep.subr.mxu0 0.0
    %744 = vmatpush1.msra.mxu0 0.0
    %745 = vmatprep.subr.mxu0 0.0
    %746 = vmatpush1.msra.mxu0 0.0
    %747 = vmatprep.subr.mxu0 0.0
    %748 = vmatpush1.msra.mxu0 0.0
    %749 = vmatprep.subr.mxu0 0.0
    %750 = vmatpush1.msra.mxu0 0.0
    %751 = vmatprep.subr.mxu0 0.0
    %752 = vmatpush1.msra.mxu0 0.0
    %753 = vmatprep.subr.mxu0 0.0
    %754 = vmatpush1.msra.mxu0 0.0
    %755 = vmatprep.subr.mxu0 0.0
    %756 = vmatpush1.msra.mxu0 0.0
    %757 = vmatprep.subr.mxu0 0.0
    %758 = vmatpush1.msra.mxu0 0.0
    %759 = vmatprep.subr.mxu0 0.0
    %760 = vmatpush1.msra.mxu0 0.0
    %761 = vmatprep.mubr.f32.mxu0 0.0
    %762 = vmatmul.mubr.f32.gmra.mrb[0].mxu0 %v695
    %v763 = vpop.f32.mrb[0].mxu0
    %v764 = vadd.f32 %v688, %v763
    %v765 = vpop.f32.mrb[0].mxu0
    %v766 = vadd.f32 %v690, %v765
    %767 = vdwg.mxu0
    %v768 = vadd.f32 %v764, %v180
    %v769 = vadd.f32 %v766, %v184
    %v770 = vxor.u32 %v768, 2147483648
    %v771 = vxor.u32 %v769, 2147483648
    %v772 = vmul.f32 %v770, 1.442695
    %v773 = vpow.pop %v772
    %v774 = vmul.f32 %v771, 1.442695
    %v775 = vpow.pop %v774
    %v776 = vadd.f32 %v773, 1.0
    %v777 = vadd.f32 %v775, 1.0
    %v778 = vrcp.pop %v776
    %v779 = vmul.f32 1.0, %v778
    %v780 = vrcp.pop %v777
    %v781 = vmul.f32 1.0, %v780
    %v782 = vmul.f32 %v781, 2.0
    %v783 = vsub.f32 %v782, 1.0
    %v784 = vmul.f32 %v779, 0.0
    %v785 = vmul.f32 %v779, %v783
    %787 = vrot.lane.b32.xlu0 %v785, 64
    %v788 = vpop.permute.xlu0 %787
    %v790 = vadd.f32 %v784, %v788
    %v791 = vtanh.pop %v790
    %v792 = vmul.f32 %v781, %v791
    %794 = vrot.lane.b32.xlu0 %v792, 64
    %v795 = vpop.permute.xlu0 %794
    %v796 = vsel %vm618, %v795, 0
    %798 = vmatprep.subr.mxu0 0.0
    %799 = vmatpush1.msra.mxu0 %v160
    %800 = vmatprep.subr.mxu0 0.0
    %801 = vmatpush1.msra.mxu0 %v161
    %802 = vmatprep.subr.mxu0 0.0
    %803 = vmatpush1.msra.mxu0 %v162
    %804 = vmatprep.subr.mxu0 0.0
    %805 = vmatpush1.msra.mxu0 %v163
    %806 = vmatprep.subr.mxu0 0.0
    %807 = vmatpush1.msra.mxu0 %v164
    %808 = vmatprep.subr.mxu0 0.0
    %809 = vmatpush1.msra.mxu0 %v165
    %810 = vmatprep.subr.mxu0 0.0
    %811 = vmatpush1.msra.mxu0 %v166
    %812 = vmatprep.subr.mxu0 0.0
    %813 = vmatpush1.msra.mxu0 %v167
    %814 = vmatprep.subr.mxu0 0.0
    %815 = vmatpush1.msra.mxu0 0.0
    %816 = vmatprep.subr.mxu0 0.0
    %817 = vmatpush1.msra.mxu0 0.0
    %818 = vmatprep.subr.mxu0 0.0
    %819 = vmatpush1.msra.mxu0 0.0
    %820 = vmatprep.subr.mxu0 0.0
    %821 = vmatpush1.msra.mxu0 0.0
    %822 = vmatprep.subr.mxu0 0.0
    %823 = vmatpush1.msra.mxu0 0.0
    %824 = vmatprep.subr.mxu0 0.0
    %825 = vmatpush1.msra.mxu0 0.0
    %826 = vmatprep.subr.mxu0 0.0
    %827 = vmatpush1.msra.mxu0 0.0
    %828 = vmatprep.subr.mxu0 0.0
    %829 = vmatpush1.msra.mxu0 0.0
    %830 = vmatprep.subr.mxu0 0.0
    %831 = vmatpush1.msra.mxu0 0.0
    %832 = vmatprep.subr.mxu0 0.0
    %833 = vmatpush1.msra.mxu0 0.0
    %834 = vmatprep.subr.mxu0 0.0
    %835 = vmatpush1.msra.mxu0 0.0
    %836 = vmatprep.subr.mxu0 0.0
    %837 = vmatpush1.msra.mxu0 0.0
    %838 = vmatprep.subr.mxu0 0.0
    %839 = vmatpush1.msra.mxu0 0.0
    %840 = vmatprep.subr.mxu0 0.0
    %841 = vmatpush1.msra.mxu0 0.0
    %842 = vmatprep.subr.mxu0 0.0
    %843 = vmatpush1.msra.mxu0 0.0
    %844 = vmatprep.subr.mxu0 0.0
    %845 = vmatpush1.msra.mxu0 0.0
    %846 = vmatprep.subr.mxu0 0.0
    %847 = vmatpush1.msra.mxu0 0.0
    %848 = vmatprep.subr.mxu0 0.0
    %849 = vmatpush1.msra.mxu0 0.0
    %850 = vmatprep.subr.mxu0 0.0
    %851 = vmatpush1.msra.mxu0 0.0
    %852 = vmatprep.subr.mxu0 0.0
    %853 = vmatpush1.msra.mxu0 0.0
    %854 = vmatprep.subr.mxu0 0.0
    %855 = vmatpush1.msra.mxu0 0.0
    %856 = vmatprep.subr.mxu0 0.0
    %857 = vmatpush1.msra.mxu0 0.0
    %858 = vmatprep.subr.mxu0 0.0
    %859 = vmatpush1.msra.mxu0 0.0
    %860 = vmatprep.subr.mxu0 0.0
    %861 = vmatpush1.msra.mxu0 0.0
    %862 = vmatprep.mubr.f32.mxu0 0.0
    %863 = vmatmul.mubr.f32.gmra.mrb[0].mxu0 %v796
    %v864 = vpop.f32.mrb[0].mxu0
    %v865 = vadd.f32 %v192, %v864
    %v866 = vpop.f32.mrb[0].mxu0
    %867 = vdwg.mxu0
    %868 = vst.msk [vmem:[#allocation14] sm:$0xff] %vm209, %v865
    %v869 = vld [vmem:[#allocation2 + $0x8] sm:$0xff]
    %870 = vmatprep.subr.mxu0 0.0
    %871 = vmatpush1.msra.mxu0 %v124
    %872 = vmatprep.subr.mxu0 0.0
    %873 = vmatpush1.msra.mxu0 %v125
    %874 = vmatprep.subr.mxu0 0.0
    %875 = vmatpush1.msra.mxu0 %v126
    %876 = vmatprep.subr.mxu0 0.0
    %877 = vmatpush1.msra.mxu0 %v127
    %878 = vmatprep.subr.mxu0 0.0
    %879 = vmatpush1.msra.mxu0 0.0
    %880 = vmatprep.subr.mxu0 0.0
    %881 = vmatpush1.msra.mxu0 0.0
    %882 = vmatprep.subr.mxu0 0.0
    %883 = vmatpush1.msra.mxu0 0.0
    %884 = vmatprep.subr.mxu0 0.0
    %885 = vmatpush1.msra.mxu0 0.0
    %886 = vmatprep.subr.mxu0 0.0
    %887 = vmatpush1.msra.mxu0 0.0
    %888 = vmatprep.subr.mxu0 0.0
    %889 = vmatpush1.msra.mxu0 0.0
    %890 = vmatprep.subr.mxu0 0.0
    %891 = vmatpush1.msra.mxu0 0.0
    %892 = vmatprep.subr.mxu0 0.0
    %893 = vmatpush1.msra.mxu0 0.0
    %894 = vmatprep.subr.mxu0 0.0
    %895 = vmatpush1.msra.mxu0 0.0
    %896 = vmatprep.subr.mxu0 0.0
    %897 = vmatpush1.msra.mxu0 0.0
    %898 = vmatprep.subr.mxu0 0.0
    %899 = vmatpush1.msra.mxu0 0.0
    %900 = vmatprep.subr.mxu0 0.0
    %901 = vmatpush1.msra.mxu0 0.0
    %902 = vmatprep.subr.mxu0 0.0
    %903 = vmatpush1.msra.mxu0 0.0
    %904 = vmatprep.subr.mxu0 0.0
    %905 = vmatpush1.msra.mxu0 0.0
    %906 = vmatprep.subr.mxu0 0.0
    %907 = vmatpush1.msra.mxu0 0.0
    %908 = vmatprep.subr.mxu0 0.0
    %909 = vmatpush1.msra.mxu0 0.0
    %910 = vmatprep.subr.mxu0 0.0
    %911 = vmatpush1.msra.mxu0 0.0
    %912 = vmatprep.subr.mxu0 0.0
    %913 = vmatpush1.msra.mxu0 0.0
    %914 = vmatprep.subr.mxu0 0.0
    %915 = vmatpush1.msra.mxu0 0.0
    %916 = vmatprep.subr.mxu0 0.0
    %917 = vmatpush1.msra.mxu0 0.0
    %918 = vmatprep.subr.mxu0 0.0
    %919 = vmatpush1.msra.mxu0 0.0
    %920 = vmatprep.subr.mxu0 0.0
    %921 = vmatpush1.msra.mxu0 0.0
    %922 = vmatprep.subr.mxu0 0.0
    %923 = vmatpush1.msra.mxu0 0.0
    %924 = vmatprep.subr.mxu0 0.0
    %925 = vmatpush1.msra.mxu0 0.0
    %926 = vmatprep.subr.mxu0 0.0
    %927 = vmatpush1.msra.mxu0 0.0
    %928 = vmatprep.subr.mxu0 0.0
    %929 = vmatpush1.msra.mxu0 0.0
    %930 = vmatprep.subr.mxu0 0.0
    %931 = vmatpush1.msra.mxu0 0.0
    %932 = vmatprep.subr.mxu0 0.0
    %933 = vmatpush1.msra.mxu0 0.0
    %934 = vmatprep.mubr.f32.mxu0 0.0
    %935 = vmatmul.mubr.f32.gmra.mrb[0].mxu0 %v520
    %v936 = vpop.f32.mrb[0].mxu0
    %v937 = vadd.f32 0.0, %v936
    %v938 = vpop.f32.mrb[0].mxu0
    %939 = vdwg.mxu0
    %v940 = vadd.f32 %v869, %v937
    %v941 = vxor.u32 %v940, 2147483648
    %v942 = vmul.f32 %v941, 1.442695
    %v943 = vpow.pop %v942
    %v944 = vadd.f32 %v943, 1.0
    %v945 = vrcp.pop %v944
    %v946 = vmul.f32 1.0, %v945
    %v947 = vmul.f32 %v946, 2.0
    %v948 = vsub.f32 %v947, 1.0
    %v949 = vmul.f32 %v946, %v440
    %951 = vrot.lane.b32.xlu0 %v948, 64
    %v952 = vpop.permute.xlu0 %951
    %v954 = vmul.f32 %v946, %v952
    %956 = vrot.lane.b32.xlu0 %v954, 32
    %v957 = vpop.permute.xlu0 %956
    %v959 = vadd.f32 %v949, %v957
    %v960 = vtanh.pop %v959
    %962 = vrot.lane.b32.xlu0 %v960, 64
    %v963 = vpop.permute.xlu0 %962
    %v965 = vmul.f32 %v946, %v963
    %966 = vmatprep.subr.mxu0 0.0
    %967 = vmatpush1.msra.mxu0 %v132
    %968 = vmatprep.subr.mxu0 0.0
    %969 = vmatpush1.msra.mxu0 %v133
    %970 = vmatprep.subr.mxu0 0.0
    %971 = vmatpush1.msra.mxu0 %v134
    %972 = vmatprep.subr.mxu0 0.0
    %973 = vmatpush1.msra.mxu0 %v135
    %974 = vmatprep.subr.mxu0 0.0
    %975 = vmatpush1.msra.mxu0 0.0
    %976 = vmatprep.subr.mxu0 0.0
    %977 = vmatpush1.msra.mxu0 0.0
    %978 = vmatprep.subr.mxu0 0.0
    %979 = vmatpush1.msra.mxu0 0.0
    %980 = vmatprep.subr.mxu0 0.0
    %981 = vmatpush1.msra.mxu0 0.0
    %982 = vmatprep.subr.mxu0 0.0
    %983 = vmatpush1.msra.mxu0 0.0
    %984 = vmatprep.subr.mxu0 0.0
    %985 = vmatpush1.msra.mxu0 0.0
    %986 = vmatprep.subr.mxu0 0.0
    %987 = vmatpush1.msra.mxu0 0.0
    %988 = vmatprep.subr.mxu0 0.0
    %989 = vmatpush1.msra.mxu0 0.0
    %990 = vmatprep.subr.mxu0 0.0
    %991 = vmatpush1.msra.mxu0 0.0
    %992 = vmatprep.subr.mxu0 0.0
    %993 = vmatpush1.msra.mxu0 0.0
    %994 = vmatprep.subr.mxu0 0.0
    %995 = vmatpush1.msra.mxu0 0.0
    %996 = vmatprep.subr.mxu0 0.0
    %997 = vmatpush1.msra.mxu0 0.0
    %998 = vmatprep.subr.mxu0 0.0
    %999 = vmatpush1.msra.mxu0 0.0
    %1000 = vmatprep.subr.mxu0 0.0
    %1001 = vmatpush1.msra.mxu0 0.0
    %1002 = vmatprep.subr.mxu0 0.0
    %1003 = vmatpush1.msra.mxu0 0.0
    %1004 = vmatprep.subr.mxu0 0.0
    %1005 = vmatpush1.msra.mxu0 0.0
    %1006 = vmatprep.subr.mxu0 0.0
    %1007 = vmatpush1.msra.mxu0 0.0
    %1008 = vmatprep.subr.mxu0 0.0
    %1009 = vmatpush1.msra.mxu0 0.0
    %1010 = vmatprep.subr.mxu0 0.0
    %1011 = vmatpush1.msra.mxu0 0.0
    %1012 = vmatprep.subr.mxu0 0.0
    %1013 = vmatpush1.msra.mxu0 0.0
    %1014 = vmatprep.subr.mxu0 0.0
    %1015 = vmatpush1.msra.mxu0 0.0
    %1016 = vmatprep.subr.mxu0 0.0
    %1017 = vmatpush1.msra.mxu0 0.0
    %1018 = vmatprep.subr.mxu0 0.0
    %1019 = vmatpush1.msra.mxu0 0.0
    %1020 = vmatprep.subr.mxu0 0.0
    %1021 = vmatpush1.msra.mxu0 0.0
    %1022 = vmatprep.subr.mxu0 0.0
    %1023 = vmatpush1.msra.mxu0 0.0
    %1024 = vmatprep.subr.mxu0 0.0
    %1025 = vmatpush1.msra.mxu0 0.0
    %1026 = vmatprep.subr.mxu0 0.0
    %1027 = vmatpush1.msra.mxu0 0.0
    %1028 = vmatprep.subr.mxu0 0.0
    %1029 = vmatpush1.msra.mxu0 0.0
    %1030 = vmatprep.mubr.f32.mxu0 0.0
    %1031 = vmatmul.mubr.f32.gmra.mrb[0].mxu0 %v695
    %v1032 = vpop.f32.mrb[0].mxu0
    %v1033 = vadd.f32 0.0, %v1032
    %v1034 = vpop.f32.mrb[0].mxu0
    %1035 = vdwg.mxu0
    %1037 = vrot.lane.b32.xlu0 %v965, 32
    %v1038 = vpop.permute.xlu0 %1037
    %v1039 = vsel %vm209, %v1038, 0
    %1041 = vmatprep.subr.mxu0 0.0
    %1042 = vmatpush1.msra.mxu0 %v128
    %1043 = vmatprep.subr.mxu0 0.0
    %1044 = vmatpush1.msra.mxu0 %v129
    %1045 = vmatprep.subr.mxu0 0.0
    %1046 = vmatpush1.msra.mxu0 %v130
    %1047 = vmatprep.subr.mxu0 0.0
    %1048 = vmatpush1.msra.mxu0 %v131
    %1049 = vmatprep.subr.mxu0 0.0
    %1050 = vmatpush1.msra.mxu0 0.0
    %1051 = vmatprep.subr.mxu0 0.0
    %1052 = vmatpush1.msra.mxu0 0.0
    %1053 = vmatprep.subr.mxu0 0.0
    %1054 = vmatpush1.msra.mxu0 0.0
    %1055 = vmatprep.subr.mxu0 0.0
    %1056 = vmatpush1.msra.mxu0 0.0
    %1057 = vmatprep.subr.mxu0 0.0
    %1058 = vmatpush1.msra.mxu0 0.0
    %1059 = vmatprep.subr.mxu0 0.0
    %1060 = vmatpush1.msra.mxu0 0.0
    %1061 = vmatprep.subr.mxu0 0.0
    %1062 = vmatpush1.msra.mxu0 0.0
    %1063 = vmatprep.subr.mxu0 0.0
    %1064 = vmatpush1.msra.mxu0 0.0
    %1065 = vmatprep.subr.mxu0 0.0
    %1066 = vmatpush1.msra.mxu0 0.0
    %1067 = vmatprep.subr.mxu0 0.0
    %1068 = vmatpush1.msra.mxu0 0.0
    %1069 = vmatprep.subr.mxu0 0.0
    %1070 = vmatpush1.msra.mxu0 0.0
    %1071 = vmatprep.subr.mxu0 0.0
    %1072 = vmatpush1.msra.mxu0 0.0
    %1073 = vmatprep.subr.mxu0 0.0
    %1074 = vmatpush1.msra.mxu0 0.0
    %1075 = vmatprep.subr.mxu0 0.0
    %1076 = vmatpush1.msra.mxu0 0.0
    %1077 = vmatprep.subr.mxu0 0.0
    %1078 = vmatpush1.msra.mxu0 0.0
    %1079 = vmatprep.subr.mxu0 0.0
    %1080 = vmatpush1.msra.mxu0 0.0
    %1081 = vmatprep.subr.mxu0 0.0
    %1082 = vmatpush1.msra.mxu0 0.0
    %1083 = vmatprep.subr.mxu0 0.0
    %1084 = vmatpush1.msra.mxu0 0.0
    %1085 = vmatprep.subr.mxu0 0.0
    %1086 = vmatpush1.msra.mxu0 0.0
    %1087 = vmatprep.subr.mxu0 0.0
    %1088 = vmatpush1.msra.mxu0 0.0
    %1089 = vmatprep.subr.mxu0 0.0
    %1090 = vmatpush1.msra.mxu0 0.0
    %1091 = vmatprep.subr.mxu0 0.0
    %1092 = vmatpush1.msra.mxu0 0.0
    %1093 = vmatprep.subr.mxu0 0.0
    %1094 = vmatpush1.msra.mxu0 0.0
    %1095 = vmatprep.subr.mxu0 0.0
    %1096 = vmatpush1.msra.mxu0 0.0
    %1097 = vmatprep.subr.mxu0 0.0
    %1098 = vmatpush1.msra.mxu0 0.0
    %1099 = vmatprep.subr.mxu0 0.0
    %1100 = vmatpush1.msra.mxu0 0.0
    %1101 = vmatprep.subr.mxu0 0.0
    %1102 = vmatpush1.msra.mxu0 0.0
    %1103 = vmatprep.subr.mxu0 0.0
    %1104 = vmatpush1.msra.mxu0 0.0
    %1105 = vmatprep.mubr.f32.mxu0 0.0
    %1106 = vmatmul.mubr.f32.gmra.mrb[0].mxu0 %v1039
    %v1107 = vpop.f32.mrb[0].mxu0
    %v1108 = vadd.f32 %v1033, %v1107
    %v1109 = vpop.f32.mrb[0].mxu0
    %1110 = vdwg.mxu0
    %v1111 = vadd.f32 %v1108, %v173
    %v1112 = vxor.u32 %v1111, 2147483648
    %v1113 = vmul.f32 %v1112, 1.442695
    %v1114 = vpow.pop %v1113
    %v1115 = vadd.f32 %v1114, 1.0
    %v1116 = vrcp.pop %v1115
    %v1117 = vmul.f32 1.0, %v1116
    %v1118 = vmul.f32 %v1117, 2.0
    %v1119 = vsub.f32 %v1118, 1.0
    %v1120 = vmul.f32 %v1117, %v611
    %1122 = vrot.lane.b32.xlu0 %v1119, 64
    %v1123 = vpop.permute.xlu0 %1122
    %v1125 = vmul.f32 %v1117, %v1123
    %1127 = vrot.lane.b32.xlu0 %v1125, 32
    %v1128 = vpop.permute.xlu0 %1127
    %v1130 = vadd.f32 %v1120, %v1128
    %v1131 = vtanh.pop %v1130
    %1133 = vrot.lane.b32.xlu0 %v1131, 64
    %v1134 = vpop.permute.xlu0 %1133
    %v1136 = vmul.f32 %v1117, %v1134
    %1137 = vmatprep.subr.mxu0 %v145
    %1138 = vmatpush1.msra.mxu0 %v144
    %1139 = vmatprep.subr.mxu0 %v147
    %1140 = vmatpush1.msra.mxu0 %v146
    %1141 = vmatprep.subr.mxu0 %v149
    %1142 = vmatpush1.msra.mxu0 %v148
    %1143 = vmatprep.subr.mxu0 %v151
    %1144 = vmatpush1.msra.mxu0 %v150
    %1145 = vmatprep.subr.mxu0 %v153
    %1146 = vmatpush1.msra.mxu0 %v152
    %1147 = vmatprep.subr.mxu0 %v155
    %1148 = vmatpush1.msra.mxu0 %v154
    %1149 = vmatprep.subr.mxu0 %v157
    %1150 = vmatpush1.msra.mxu0 %v156
    %1151 = vmatprep.subr.mxu0 %v159
    %1152 = vmatpush1.msra.mxu0 %v158
    %1153 = vmatprep.subr.mxu0 0.0
    %1154 = vmatpush1.msra.mxu0 0.0
    %1155 = vmatprep.subr.mxu0 0.0
    %1156 = vmatpush1.msra.mxu0 0.0
    %1157 = vmatprep.subr.mxu0 0.0
    %1158 = vmatpush1.msra.mxu0 0.0
    %1159 = vmatprep.subr.mxu0 0.0
    %1160 = vmatpush1.msra.mxu0 0.0
    %1161 = vmatprep.subr.mxu0 0.0
    %1162 = vmatpush1.msra.mxu0 0.0
    %1163 = vmatprep.subr.mxu0 0.0
    %1164 = vmatpush1.msra.mxu0 0.0
    %1165 = vmatprep.subr.mxu0 0.0
    %1166 = vmatpush1.msra.mxu0 0.0
    %1167 = vmatprep.subr.mxu0 0.0
    %1168 = vmatpush1.msra.mxu0 0.0
    %1169 = vmatprep.subr.mxu0 0.0
    %1170 = vmatpush1.msra.mxu0 0.0
    %1171 = vmatprep.subr.mxu0 0.0
    %1172 = vmatpush1.msra.mxu0 0.0
    %1173 = vmatprep.subr.mxu0 0.0
    %1174 = vmatpush1.msra.mxu0 0.0
    %1175 = vmatprep.subr.mxu0 0.0
    %1176 = vmatpush1.msra.mxu0 0.0
    %1177 = vmatprep.subr.mxu0 0.0
    %1178 = vmatpush1.msra.mxu0 0.0
    %1179 = vmatprep.subr.mxu0 0.0
    %1180 = vmatpush1.msra.mxu0 0.0
    %1181 = vmatprep.subr.mxu0 0.0
    %1182 = vmatpush1.msra.mxu0 0.0
    %1183 = vmatprep.subr.mxu0 0.0
    %1184 = vmatpush1.msra.mxu0 0.0
    %1185 = vmatprep.subr.mxu0 0.0
    %1186 = vmatpush1.msra.mxu0 0.0
    %1187 = vmatprep.subr.mxu0 0.0
    %1188 = vmatpush1.msra.mxu0 0.0
    %1189 = vmatprep.subr.mxu0 0.0
    %1190 = vmatpush1.msra.mxu0 0.0
    %1191 = vmatprep.subr.mxu0 0.0
    %1192 = vmatpush1.msra.mxu0 0.0
    %1193 = vmatprep.subr.mxu0 0.0
    %1194 = vmatpush1.msra.mxu0 0.0
    %1195 = vmatprep.subr.mxu0 0.0
    %1196 = vmatpush1.msra.mxu0 0.0
    %1197 = vmatprep.subr.mxu0 0.0
    %1198 = vmatpush1.msra.mxu0 0.0
    %1199 = vmatprep.subr.mxu0 0.0
    %1200 = vmatpush1.msra.mxu0 0.0
    %1201 = vmatprep.mubr.f32.mxu0 0.0
    %1202 = vmatmul.mubr.f32.gmra.mrb[0].mxu0 %v796
    %v1203 = vpop.f32.mrb[0].mxu0
    %v1204 = vadd.f32 0.0, %v1203
    %v1205 = vpop.f32.mrb[0].mxu0
    %v1206 = vadd.f32 0.0, %v1205
    %1207 = vdwg.mxu0
    %1209 = vrot.lane.b32.xlu0 %v1136, 32
    %v1210 = vpop.permute.xlu0 %1209
    %v1211 = vsel %vm209, %v1210, 0
    %1213 = vmatprep.subr.mxu0 %v137
    %1214 = vmatpush1.msra.mxu0 %v136
    %1215 = vmatprep.subr.mxu0 %v139
    %1216 = vmatpush1.msra.mxu0 %v138
    %1217 = vmatprep.subr.mxu0 %v141
    %1218 = vmatpush1.msra.mxu0 %v140
    %1219 = vmatprep.subr.mxu0 %v143
    %1220 = vmatpush1.msra.mxu0 %v142
    %1221 = vmatprep.subr.mxu0 0.0
    %1222 = vmatpush1.msra.mxu0 0.0
    %1223 = vmatprep.subr.mxu0 0.0
    %1224 = vmatpush1.msra.mxu0 0.0
    %1225 = vmatprep.subr.mxu0 0.0
    %1226 = vmatpush1.msra.mxu0 0.0
    %1227 = vmatprep.subr.mxu0 0.0
    %1228 = vmatpush1.msra.mxu0 0.0
    %1229 = vmatprep.subr.mxu0 0.0
    %1230 = vmatpush1.msra.mxu0 0.0
    %1231 = vmatprep.subr.mxu0 0.0
    %1232 = vmatpush1.msra.mxu0 0.0
    %1233 = vmatprep.subr.mxu0 0.0
    %1234 = vmatpush1.msra.mxu0 0.0
    %1235 = vmatprep.subr.mxu0 0.0
    %1236 = vmatpush1.msra.mxu0 0.0
    %1237 = vmatprep.subr.mxu0 0.0
    %1238 = vmatpush1.msra.mxu0 0.0
    %1239 = vmatprep.subr.mxu0 0.0
    %1240 = vmatpush1.msra.mxu0 0.0
    %1241 = vmatprep.subr.mxu0 0.0
    %1242 = vmatpush1.msra.mxu0 0.0
    %1243 = vmatprep.subr.mxu0 0.0
    %1244 = vmatpush1.msra.mxu0 0.0
    %1245 = vmatprep.subr.mxu0 0.0
    %1246 = vmatpush1.msra.mxu0 0.0
    %1247 = vmatprep.subr.mxu0 0.0
    %1248 = vmatpush1.msra.mxu0 0.0
    %1249 = vmatprep.subr.mxu0 0.0
    %1250 = vmatpush1.msra.mxu0 0.0
    %1251 = vmatprep.subr.mxu0 0.0
    %1252 = vmatpush1.msra.mxu0 0.0
    %1253 = vmatprep.subr.mxu0 0.0
    %1254 = vmatpush1.msra.mxu0 0.0
    %1255 = vmatprep.subr.mxu0 0.0
    %1256 = vmatpush1.msra.mxu0 0.0
    %1257 = vmatprep.subr.mxu0 0.0
    %1258 = vmatpush1.msra.mxu0 0.0
    %1259 = vmatprep.subr.mxu0 0.0
    %1260 = vmatpush1.msra.mxu0 0.0
    %1261 = vmatprep.subr.mxu0 0.0
    %1262 = vmatpush1.msra.mxu0 0.0
    %1263 = vmatprep.subr.mxu0 0.0
    %1264 = vmatpush1.msra.mxu0 0.0
    %1265 = vmatprep.subr.mxu0 0.0
    %1266 = vmatpush1.msra.mxu0 0.0
    %1267 = vmatprep.subr.mxu0 0.0
    %1268 = vmatpush1.msra.mxu0 0.0
    %1269 = vmatprep.subr.mxu0 0.0
    %1270 = vmatpush1.msra.mxu0 0.0
    %1271 = vmatprep.subr.mxu0 0.0
    %1272 = vmatpush1.msra.mxu0 0.0
    %1273 = vmatprep.subr.mxu0 0.0
    %1274 = vmatpush1.msra.mxu0 0.0
    %1275 = vmatprep.subr.mxu0 0.0
    %1276 = vmatpush1.msra.mxu0 0.0
    %1277 = vmatprep.mubr.f32.mxu0 0.0
    %1278 = vmatmul.mubr.f32.gmra.mrb[0].mxu0 %v1211
    %v1279 = vpop.f32.mrb[0].mxu0
    %v1280 = vadd.f32 %v1204, %v1279
    %v1281 = vpop.f32.mrb[0].mxu0
    %v1282 = vadd.f32 %v1206, %v1281
    %1283 = vdwg.mxu0
    %v1284 = vadd.f32 %v1280, %v180
    %v1285 = vadd.f32 %v1282, %v184
    %v1286 = vxor.u32 %v1284, 2147483648
    %v1287 = vxor.u32 %v1285, 2147483648
    %v1288 = vmul.f32 %v1286, 1.442695
    %v1289 = vpow.pop %v1288
    %v1290 = vmul.f32 %v1287, 1.442695
    %v1291 = vpow.pop %v1290
    %v1292 = vadd.f32 %v1289, 1.0
    %v1293 = vadd.f32 %v1291, 1.0
    %v1294 = vrcp.pop %v1292
    %v1295 = vmul.f32 1.0, %v1294
    %v1296 = vrcp.pop %v1293
    %v1297 = vmul.f32 1.0, %v1296
    %v1298 = vmul.f32 %v1297, 2.0
    %v1299 = vsub.f32 %v1298, 1.0
    %v1300 = vmul.f32 %v1295, %v790
    %v1301 = vmul.f32 %v1295, %v1299
    %1303 = vrot.lane.b32.xlu0 %v1301, 64
    %v1304 = vpop.permute.xlu0 %1303
    %v1306 = vadd.f32 %v1300, %v1304
    %v1307 = vtanh.pop %v1306
    %v1308 = vmul.f32 %v1297, %v1307
    %1310 = vrot.lane.b32.xlu0 %v1308, 64
    %v1311 = vpop.permute.xlu0 %1310
    %v1312 = vsel %vm618, %v1311, 0
    %1314 = vmatprep.subr.mxu0 0.0
    %1315 = vmatpush1.msra.mxu0 %v160
    %1316 = vmatprep.subr.mxu0 0.0
    %1317 = vmatpush1.msra.mxu0 %v161
    %1318 = vmatprep.subr.mxu0 0.0
    %1319 = vmatpush1.msra.mxu0 %v162
    %1320 = vmatprep.subr.mxu0 0.0
    %1321 = vmatpush1.msra.mxu0 %v163
    %1322 = vmatprep.subr.mxu0 0.0
    %1323 = vmatpush1.msra.mxu0 %v164
    %1324 = vmatprep.subr.mxu0 0.0
    %1325 = vmatpush1.msra.mxu0 %v165
    %1326 = vmatprep.subr.mxu0 0.0
    %1327 = vmatpush1.msra.mxu0 %v166
    %1328 = vmatprep.subr.mxu0 0.0
    %1329 = vmatpush1.msra.mxu0 %v167
    %1330 = vmatprep.subr.mxu0 0.0
    %1331 = vmatpush1.msra.mxu0 0.0
    %1332 = vmatprep.subr.mxu0 0.0
    %1333 = vmatpush1.msra.mxu0 0.0
    %1334 = vmatprep.subr.mxu0 0.0
    %1335 = vmatpush1.msra.mxu0 0.0
    %1336 = vmatprep.subr.mxu0 0.0
    %1337 = vmatpush1.msra.mxu0 0.0
    %1338 = vmatprep.subr.mxu0 0.0
    %1339 = vmatpush1.msra.mxu0 0.0
    %1340 = vmatprep.subr.mxu0 0.0
    %1341 = vmatpush1.msra.mxu0 0.0
    %1342 = vmatprep.subr.mxu0 0.0
    %1343 = vmatpush1.msra.mxu0 0.0
    %1344 = vmatprep.subr.mxu0 0.0
    %1345 = vmatpush1.msra.mxu0 0.0
    %1346 = vmatprep.subr.mxu0 0.0
    %1347 = vmatpush1.msra.mxu0 0.0
    %1348 = vmatprep.subr.mxu0 0.0
    %1349 = vmatpush1.msra.mxu0 0.0
    %1350 = vmatprep.subr.mxu0 0.0
    %1351 = vmatpush1.msra.mxu0 0.0
    %1352 = vmatprep.subr.mxu0 0.0
    %1353 = vmatpush1.msra.mxu0 0.0
    %1354 = vmatprep.subr.mxu0 0.0
    %1355 = vmatpush1.msra.mxu0 0.0
    %1356 = vmatprep.subr.mxu0 0.0
    %1357 = vmatpush1.msra.mxu0 0.0
    %1358 = vmatprep.subr.mxu0 0.0
    %1359 = vmatpush1.msra.mxu0 0.0
    %1360 = vmatprep.subr.mxu0 0.0
    %1361 = vmatpush1.msra.mxu0 0.0
    %1362 = vmatprep.subr.mxu0 0.0
    %1363 = vmatpush1.msra.mxu0 0.0
    %1364 = vmatprep.subr.mxu0 0.0
    %1365 = vmatpush1.msra.mxu0 0.0
    %1366 = vmatprep.subr.mxu0 0.0
    %1367 = vmatpush1.msra.mxu0 0.0
    %1368 = vmatprep.subr.mxu0 0.0
    %1369 = vmatpush1.msra.mxu0 0.0
    %1370 = vmatprep.subr.mxu0 0.0
    %1371 = vmatpush1.msra.mxu0 0.0
    %1372 = vmatprep.subr.mxu0 0.0
    %1373 = vmatpush1.msra.mxu0 0.0
    %1374 = vmatprep.subr.mxu0 0.0
    %1375 = vmatpush1.msra.mxu0 0.0
    %1376 = vmatprep.subr.mxu0 0.0
    %1377 = vmatpush1.msra.mxu0 0.0
    %1378 = vmatprep.mubr.f32.mxu0 0.0
    %1379 = vmatmul.mubr.f32.gmra.mrb[0].mxu0 %v1312
    %v1380 = vpop.f32.mrb[0].mxu0
    %v1381 = vadd.f32 %v192, %v1380
    %v1382 = vpop.f32.mrb[0].mxu0
    %1383 = vdwg.mxu0
    %s1384 = scalar_lea.vmem [#allocation14], 8
    %1385 = vst.msk [vmem:[%s1384] sm:$0xff] %vm209, %v1381
    %v1386 = vld [vmem:[#allocation2 + $0x10] sm:$0xff]
    %1387 = vmatprep.subr.mxu0 0.0
    %1388 = vmatpush1.msra.mxu0 %v124
    %1389 = vmatprep.subr.mxu0 0.0
    %1390 = vmatpush1.msra.mxu0 %v125
    %1391 = vmatprep.subr.mxu0 0.0
    %1392 = vmatpush1.msra.mxu0 %v126
    %1393 = vmatprep.subr.mxu0 0.0
    %1394 = vmatpush1.msra.mxu0 %v127
    %1395 = vmatprep.subr.mxu0 0.0
    %1396 = vmatpush1.msra.mxu0 0.0
    %1397 = vmatprep.subr.mxu0 0.0
    %1398 = vmatpush1.msra.mxu0 0.0
    %1399 = vmatprep.subr.mxu0 0.0
    %1400 = vmatpush1.msra.mxu0 0.0
    %1401 = vmatprep.subr.mxu0 0.0
    %1402 = vmatpush1.msra.mxu0 0.0
    %1403 = vmatprep.subr.mxu0 0.0
    %1404 = vmatpush1.msra.mxu0 0.0
    %1405 = vmatprep.subr.mxu0 0.0
    %1406 = vmatpush1.msra.mxu0 0.0
    %1407 = vmatprep.subr.mxu0 0.0
    %1408 = vmatpush1.msra.mxu0 0.0
    %1409 = vmatprep.subr.mxu0 0.0
    %1410 = vmatpush1.msra.mxu0 0.0
    %1411 = vmatprep.subr.mxu0 0.0
    %1412 = vmatpush1.msra.mxu0 0.0
    %1413 = vmatprep.subr.mxu0 0.0
    %1414 = vmatpush1.msra.mxu0 0.0
    %1415 = vmatprep.subr.mxu0 0.0
    %1416 = vmatpush1.msra.mxu0 0.0
    %1417 = vmatprep.subr.mxu0 0.0
    %1418 = vmatpush1.msra.mxu0 0.0
    %1419 = vmatprep.subr.mxu0 0.0
    %1420 = vmatpush1.msra.mxu0 0.0
    %1421 = vmatprep.subr.mxu0 0.0
    %1422 = vmatpush1.msra.mxu0 0.0
    %1423 = vmatprep.subr.mxu0 0.0
    %1424 = vmatpush1.msra.mxu0 0.0
    %1425 = vmatprep.subr.mxu0 0.0
    %1426 = vmatpush1.msra.mxu0 0.0
    %1427 = vmatprep.subr.mxu0 0.0
    %1428 = vmatpush1.msra.mxu0 0.0
    %1429 = vmatprep.subr.mxu0 0.0
    %1430 = vmatpush1.msra.mxu0 0.0
    %1431 = vmatprep.subr.mxu0 0.0
    %1432 = vmatpush1.msra.mxu0 0.0
    %1433 = vmatprep.subr.mxu0 0.0
    %1434 = vmatpush1.msra.mxu0 0.0
    %1435 = vmatprep.subr.mxu0 0.0
    %1436 = vmatpush1.msra.mxu0 0.0
    %1437 = vmatprep.subr.mxu0 0.0
    %1438 = vmatpush1.msra.mxu0 0.0
    %1439 = vmatprep.subr.mxu0 0.0
    %1440 = vmatpush1.msra.mxu0 0.0
    %1441 = vmatprep.subr.mxu0 0.0
    %1442 = vmatpush1.msra.mxu0 0.0
    %1443 = vmatprep.subr.mxu0 0.0
    %1444 = vmatpush1.msra.mxu0 0.0
    %1445 = vmatprep.subr.mxu0 0.0
    %1446 = vmatpush1.msra.mxu0 0.0
    %1447 = vmatprep.subr.mxu0 0.0
    %1448 = vmatpush1.msra.mxu0 0.0
    %1449 = vmatprep.subr.mxu0 0.0
    %1450 = vmatpush1.msra.mxu0 0.0
    %1451 = vmatprep.mubr.f32.mxu0 0.0
    %1452 = vmatmul.mubr.f32.gmra.mrb[0].mxu0 %v1039
    %v1453 = vpop.f32.mrb[0].mxu0
    %v1454 = vadd.f32 0.0, %v1453
    %v1455 = vpop.f32.mrb[0].mxu0
    %1456 = vdwg.mxu0
    %v1457 = vadd.f32 %v1386, %v1454
    %v1458 = vxor.u32 %v1457, 2147483648
    %v1459 = vmul.f32 %v1458, 1.442695
    %v1460 = vpow.pop %v1459
    %v1461 = vadd.f32 %v1460, 1.0
    %v1462 = vrcp.pop %v1461
    %v1463 = vmul.f32 1.0, %v1462
    %v1464 = vmul.f32 %v1463, 2.0
    %v1465 = vsub.f32 %v1464, 1.0
    %v1466 = vmul.f32 %v1463, %v959
    %1468 = vrot.lane.b32.xlu0 %v1465, 64
    %v1469 = vpop.permute.xlu0 %1468
    %v1471 = vmul.f32 %v1463, %v1469
    %1473 = vrot.lane.b32.xlu0 %v1471, 32
    %v1474 = vpop.permute.xlu0 %1473
    %v1476 = vadd.f32 %v1466, %v1474
    %v1477 = vtanh.pop %v1476
    %1479 = vrot.lane.b32.xlu0 %v1477, 64
    %v1480 = vpop.permute.xlu0 %1479
    %v1482 = vmul.f32 %v1463, %v1480
    %1483 = vmatprep.subr.mxu0 0.0
    %1484 = vmatpush1.msra.mxu0 %v132
    %1485 = vmatprep.subr.mxu0 0.0
    %1486 = vmatpush1.msra.mxu0 %v133
    %1487 = vmatprep.subr.mxu0 0.0
    %1488 = vmatpush1.msra.mxu0 %v134
    %1489 = vmatprep.subr.mxu0 0.0
    %1490 = vmatpush1.msra.mxu0 %v135
    %1491 = vmatprep.subr.mxu0 0.0
    %1492 = vmatpush1.msra.mxu0 0.0
    %1493 = vmatprep.subr.mxu0 0.0
    %1494 = vmatpush1.msra.mxu0 0.0
    %1495 = vmatprep.subr.mxu0 0.0
    %1496 = vmatpush1.msra.mxu0 0.0
    %1497 = vmatprep.subr.mxu0 0.0
    %1498 = vmatpush1.msra.mxu0 0.0
    %1499 = vmatprep.subr.mxu0 0.0
    %1500 = vmatpush1.msra.mxu0 0.0
    %1501 = vmatprep.subr.mxu0 0.0
    %1502 = vmatpush1.msra.mxu0 0.0
    %1503 = vmatprep.subr.mxu0 0.0
    %1504 = vmatpush1.msra.mxu0 0.0
    %1505 = vmatprep.subr.mxu0 0.0
    %1506 = vmatpush1.msra.mxu0 0.0
    %1507 = vmatprep.subr.mxu0 0.0
    %1508 = vmatpush1.msra.mxu0 0.0
    %1509 = vmatprep.subr.mxu0 0.0
    %1510 = vmatpush1.msra.mxu0 0.0
    %1511 = vmatprep.subr.mxu0 0.0
    %1512 = vmatpush1.msra.mxu0 0.0
    %1513 = vmatprep.subr.mxu0 0.0
    %1514 = vmatpush1.msra.mxu0 0.0
    %1515 = vmatprep.subr.mxu0 0.0
    %1516 = vmatpush1.msra.mxu0 0.0
    %1517 = vmatprep.subr.mxu0 0.0
    %1518 = vmatpush1.msra.mxu0 0.0
    %1519 = vmatprep.subr.mxu0 0.0
    %1520 = vmatpush1.msra.mxu0 0.0
    %1521 = vmatprep.subr.mxu0 0.0
    %1522 = vmatpush1.msra.mxu0 0.0
    %1523 = vmatprep.subr.mxu0 0.0
    %1524 = vmatpush1.msra.mxu0 0.0
    %1525 = vmatprep.subr.mxu0 0.0
    %1526 = vmatpush1.msra.mxu0 0.0
    %1527 = vmatprep.subr.mxu0 0.0
    %1528 = vmatpush1.msra.mxu0 0.0
    %1529 = vmatprep.subr.mxu0 0.0
    %1530 = vmatpush1.msra.mxu0 0.0
    %1531 = vmatprep.subr.mxu0 0.0
    %1532 = vmatpush1.msra.mxu0 0.0
    %1533 = vmatprep.subr.mxu0 0.0
    %1534 = vmatpush1.msra.mxu0 0.0
    %1535 = vmatprep.subr.mxu0 0.0
    %1536 = vmatpush1.msra.mxu0 0.0
    %1537 = vmatprep.subr.mxu0 0.0
    %1538 = vmatpush1.msra.mxu0 0.0
    %1539 = vmatprep.subr.mxu0 0.0
    %1540 = vmatpush1.msra.mxu0 0.0
    %1541 = vmatprep.subr.mxu0 0.0
    %1542 = vmatpush1.msra.mxu0 0.0
    %1543 = vmatprep.subr.mxu0 0.0
    %1544 = vmatpush1.msra.mxu0 0.0
    %1545 = vmatprep.subr.mxu0 0.0
    %1546 = vmatpush1.msra.mxu0 0.0
    %1547 = vmatprep.mubr.f32.mxu0 0.0
    %1548 = vmatmul.mubr.f32.gmra.mrb[0].mxu0 %v1211
    %v1549 = vpop.f32.mrb[0].mxu0
    %v1550 = vadd.f32 0.0, %v1549
    %v1551 = vpop.f32.mrb[0].mxu0
    %1552 = vdwg.mxu0
    %1554 = vrot.lane.b32.xlu0 %v1482, 32
    %v1555 = vpop.permute.xlu0 %1554
    %v1556 = vsel %vm209, %v1555, 0
    %1558 = vmatprep.subr.mxu0 0.0
    %1559 = vmatpush1.msra.mxu0 %v128
    %1560 = vmatprep.subr.mxu0 0.0
    %1561 = vmatpush1.msra.mxu0 %v129
    %1562 = vmatprep.subr.mxu0 0.0
    %1563 = vmatpush1.msra.mxu0 %v130
    %1564 = vmatprep.subr.mxu0 0.0
    %1565 = vmatpush1.msra.mxu0 %v131
    %1566 = vmatprep.subr.mxu0 0.0
    %1567 = vmatpush1.msra.mxu0 0.0
    %1568 = vmatprep.subr.mxu0 0.0
    %1569 = vmatpush1.msra.mxu0 0.0
    %1570 = vmatprep.subr.mxu0 0.0
    %1571 = vmatpush1.msra.mxu0 0.0
    %1572 = vmatprep.subr.mxu0 0.0
    %1573 = vmatpush1.msra.mxu0 0.0
    %1574 = vmatprep.subr.mxu0 0.0
    %1575 = vmatpush1.msra.mxu0 0.0
    %1576 = vmatprep.subr.mxu0 0.0
    %1577 = vmatpush1.msra.mxu0 0.0
    %1578 = vmatprep.subr.mxu0 0.0
    %1579 = vmatpush1.msra.mxu0 0.0
    %1580 = vmatprep.subr.mxu0 0.0
    %1581 = vmatpush1.msra.mxu0 0.0
    %1582 = vmatprep.subr.mxu0 0.0
    %1583 = vmatpush1.msra.mxu0 0.0
    %1584 = vmatprep.subr.mxu0 0.0
    %1585 = vmatpush1.msra.mxu0 0.0
    %1586 = vmatprep.subr.mxu0 0.0
    %1587 = vmatpush1.msra.mxu0 0.0
    %1588 = vmatprep.subr.mxu0 0.0
    %1589 = vmatpush1.msra.mxu0 0.0
    %1590 = vmatprep.subr.mxu0 0.0
    %1591 = vmatpush1.msra.mxu0 0.0
    %1592 = vmatprep.subr.mxu0 0.0
    %1593 = vmatpush1.msra.mxu0 0.0
    %1594 = vmatprep.subr.mxu0 0.0
    %1595 = vmatpush1.msra.mxu0 0.0
    %1596 = vmatprep.subr.mxu0 0.0
    %1597 = vmatpush1.msra.mxu0 0.0
    %1598 = vmatprep.subr.mxu0 0.0
    %1599 = vmatpush1.msra.mxu0 0.0
    %1600 = vmatprep.subr.mxu0 0.0
    %1601 = vmatpush1.msra.mxu0 0.0
    %1602 = vmatprep.subr.mxu0 0.0
    %1603 = vmatpush1.msra.mxu0 0.0
    %1604 = vmatprep.subr.mxu0 0.0
    %1605 = vmatpush1.msra.mxu0 0.0
    %1606 = vmatprep.subr.mxu0 0.0
    %1607 = vmatpush1.msra.mxu0 0.0
    %1608 = vmatprep.subr.mxu0 0.0
    %1609 = vmatpush1.msra.mxu0 0.0
    %1610 = vmatprep.subr.mxu0 0.0
    %1611 = vmatpush1.msra.mxu0 0.0
    %1612 = vmatprep.subr.mxu0 0.0
    %1613 = vmatpush1.msra.mxu0 0.0
    %1614 = vmatprep.subr.mxu0 0.0
    %1615 = vmatpush1.msra.mxu0 0.0
    %1616 = vmatprep.subr.mxu0 0.0
    %1617 = vmatpush1.msra.mxu0 0.0
    %1618 = vmatprep.subr.mxu0 0.0
    %1619 = vmatpush1.msra.mxu0 0.0
    %1620 = vmatprep.subr.mxu0 0.0
    %1621 = vmatpush1.msra.mxu0 0.0
    %1622 = vmatprep.mubr.f32.mxu0 0.0
    %1623 = vmatmul.mubr.f32.gmra.mrb[0].mxu0 %v1556
    %v1624 = vpop.f32.mrb[0].mxu0
    %v1625 = vadd.f32 %v1550, %v1624
    %v1626 = vpop.f32.mrb[0].mxu0
    %1627 = vdwg.mxu0
    %v1628 = vadd.f32 %v1625, %v173
    %v1629 = vxor.u32 %v1628, 2147483648
    %v1630 = vmul.f32 %v1629, 1.442695
    %v1631 = vpow.pop %v1630
    %v1632 = vadd.f32 %v1631, 1.0
    %v1633 = vrcp.pop %v1632
    %v1634 = vmul.f32 1.0, %v1633
    %v1635 = vmul.f32 %v1634, 2.0
    %v1636 = vsub.f32 %v1635, 1.0
    %v1637 = vmul.f32 %v1634, %v1130
    %1639 = vrot.lane.b32.xlu0 %v1636, 64
    %v1640 = vpop.permute.xlu0 %1639
    %v1642 = vmul.f32 %v1634, %v1640
    %1644 = vrot.lane.b32.xlu0 %v1642, 32
    %v1645 = vpop.permute.xlu0 %1644
    %v1647 = vadd.f32 %v1637, %v1645
    %v1648 = vtanh.pop %v1647
    %1650 = vrot.lane.b32.xlu0 %v1648, 64
    %v1651 = vpop.permute.xlu0 %1650
    %v1653 = vmul.f32 %v1634, %v1651
    %1654 = vmatprep.subr.mxu0 %v145
    %1655 = vmatpush1.msra.mxu0 %v144
    %1656 = vmatprep.subr.mxu0 %v147
    %1657 = vmatpush1.msra.mxu0 %v146
    %1658 = vmatprep.subr.mxu0 %v149
    %1659 = vmatpush1.msra.mxu0 %v148
    %1660 = vmatprep.subr.mxu0 %v151
    %1661 = vmatpush1.msra.mxu0 %v150
    %1662 = vmatprep.subr.mxu0 %v153
    %1663 = vmatpush1.msra.mxu0 %v152
    %1664 = vmatprep.subr.mxu0 %v155
    %1665 = vmatpush1.msra.mxu0 %v154
    %1666 = vmatprep.subr.mxu0 %v157
    %1667 = vmatpush1.msra.mxu0 %v156
    %1668 = vmatprep.subr.mxu0 %v159
    %1669 = vmatpush1.msra.mxu0 %v158
    %1670 = vmatprep.subr.mxu0 0.0
    %1671 = vmatpush1.msra.mxu0 0.0
    %1672 = vmatprep.subr.mxu0 0.0
    %1673 = vmatpush1.msra.mxu0 0.0
    %1674 = vmatprep.subr.mxu0 0.0
    %1675 = vmatpush1.msra.mxu0 0.0
    %1676 = vmatprep.subr.mxu0 0.0
    %1677 = vmatpush1.msra.mxu0 0.0
    %1678 = vmatprep.subr.mxu0 0.0
    %1679 = vmatpush1.msra.mxu0 0.0
    %1680 = vmatprep.subr.mxu0 0.0
    %1681 = vmatpush1.msra.mxu0 0.0
    %1682 = vmatprep.subr.mxu0 0.0
    %1683 = vmatpush1.msra.mxu0 0.0
    %1684 = vmatprep.subr.mxu0 0.0
    %1685 = vmatpush1.msra.mxu0 0.0
    %1686 = vmatprep.subr.mxu0 0.0
    %1687 = vmatpush1.msra.mxu0 0.0
    %1688 = vmatprep.subr.mxu0 0.0
    %1689 = vmatpush1.msra.mxu0 0.0
    %1690 = vmatprep.subr.mxu0 0.0
    %1691 = vmatpush1.msra.mxu0 0.0
    %1692 = vmatprep.subr.mxu0 0.0
    %1693 = vmatpush1.msra.mxu0 0.0
    %1694 = vmatprep.subr.mxu0 0.0
    %1695 = vmatpush1.msra.mxu0 0.0
    %1696 = vmatprep.subr.mxu0 0.0
    %1697 = vmatpush1.msra.mxu0 0.0
    %1698 = vmatprep.subr.mxu0 0.0
    %1699 = vmatpush1.msra.mxu0 0.0
    %1700 = vmatprep.subr.mxu0 0.0
    %1701 = vmatpush1.msra.mxu0 0.0
    %1702 = vmatprep.subr.mxu0 0.0
    %1703 = vmatpush1.msra.mxu0 0.0
    %1704 = vmatprep.subr.mxu0 0.0
    %1705 = vmatpush1.msra.mxu0 0.0
    %1706 = vmatprep.subr.mxu0 0.0
    %1707 = vmatpush1.msra.mxu0 0.0
    %1708 = vmatprep.subr.mxu0 0.0
    %1709 = vmatpush1.msra.mxu0 0.0
    %1710 = vmatprep.subr.mxu0 0.0
    %1711 = vmatpush1.msra.mxu0 0.0
    %1712 = vmatprep.subr.mxu0 0.0
    %1713 = vmatpush1.msra.mxu0 0.0
    %1714 = vmatprep.subr.mxu0 0.0
    %1715 = vmatpush1.msra.mxu0 0.0
    %1716 = vmatprep.subr.mxu0 0.0
    %1717 = vmatpush1.msra.mxu0 0.0
    %1718 = vmatprep.mubr.f32.mxu0 0.0
    %1719 = vmatmul.mubr.f32.gmra.mrb[0].mxu0 %v1312
    %v1720 = vpop.f32.mrb[0].mxu0
    %v1721 = vadd.f32 0.0, %v1720
    %v1722 = vpop.f32.mrb[0].mxu0
    %v1723 = vadd.f32 0.0, %v1722
    %1724 = vdwg.mxu0
    %1726 = vrot.lane.b32.xlu0 %v1653, 32
    %v1727 = vpop.permute.xlu0 %1726
    %v1728 = vsel %vm209, %v1727, 0
    %1730 = vmatprep.subr.mxu0 %v137
    %1731 = vmatpush1.msra.mxu0 %v136
    %1732 = vmatprep.subr.mxu0 %v139
    %1733 = vmatpush1.msra.mxu0 %v138
    %1734 = vmatprep.subr.mxu0 %v141
    %1735 = vmatpush1.msra.mxu0 %v140
    %1736 = vmatprep.subr.mxu0 %v143
    %1737 = vmatpush1.msra.mxu0 %v142
    %1738 = vmatprep.subr.mxu0 0.0
    %1739 = vmatpush1.msra.mxu0 0.0
    %1740 = vmatprep.subr.mxu0 0.0
    %1741 = vmatpush1.msra.mxu0 0.0
    %1742 = vmatprep.subr.mxu0 0.0
    %1743 = vmatpush1.msra.mxu0 0.0
    %1744 = vmatprep.subr.mxu0 0.0
    %1745 = vmatpush1.msra.mxu0 0.0
    %1746 = vmatprep.subr.mxu0 0.0
    %1747 = vmatpush1.msra.mxu0 0.0
    %1748 = vmatprep.subr.mxu0 0.0
    %1749 = vmatpush1.msra.mxu0 0.0
    %1750 = vmatprep.subr.mxu0 0.0
    %1751 = vmatpush1.msra.mxu0 0.0
    %1752 = vmatprep.subr.mxu0 0.0
    %1753 = vmatpush1.msra.mxu0 0.0
    %1754 = vmatprep.subr.mxu0 0.0
    %1755 = vmatpush1.msra.mxu0 0.0
    %1756 = vmatprep.subr.mxu0 0.0
    %1757 = vmatpush1.msra.mxu0 0.0
    %1758 = vmatprep.subr.mxu0 0.0
    %1759 = vmatpush1.msra.mxu0 0.0
    %1760 = vmatprep.subr.mxu0 0.0
    %1761 = vmatpush1.msra.mxu0 0.0
    %1762 = vmatprep.subr.mxu0 0.0
    %1763 = vmatpush1.msra.mxu0 0.0
    %1764 = vmatprep.subr.mxu0 0.0
    %1765 = vmatpush1.msra.mxu0 0.0
    %1766 = vmatprep.subr.mxu0 0.0
    %1767 = vmatpush1.msra.mxu0 0.0
    %1768 = vmatprep.subr.mxu0 0.0
    %1769 = vmatpush1.msra.mxu0 0.0
    %1770 = vmatprep.subr.mxu0 0.0
    %1771 = vmatpush1.msra.mxu0 0.0
    %1772 = vmatprep.subr.mxu0 0.0
    %1773 = vmatpush1.msra.mxu0 0.0
    %1774 = vmatprep.subr.mxu0 0.0
    %1775 = vmatpush1.msra.mxu0 0.0
    %1776 = vmatprep.subr.mxu0 0.0
    %1777 = vmatpush1.msra.mxu0 0.0
    %1778 = vmatprep.subr.mxu0 0.0
    %1779 = vmatpush1.msra.mxu0 0.0
    %1780 = vmatprep.subr.mxu0 0.0
    %1781 = vmatpush1.msra.mxu0 0.0
    %1782 = vmatprep.subr.mxu0 0.0
    %1783 = vmatpush1.msra.mxu0 0.0
    %1784 = vmatprep.subr.mxu0 0.0
    %1785 = vmatpush1.msra.mxu0 0.0
    %1786 = vmatprep.subr.mxu0 0.0
    %1787 = vmatpush1.msra.mxu0 0.0
    %1788 = vmatprep.subr.mxu0 0.0
    %1789 = vmatpush1.msra.mxu0 0.0
    %1790 = vmatprep.subr.mxu0 0.0
    %1791 = vmatpush1.msra.mxu0 0.0
    %1792 = vmatprep.subr.mxu0 0.0
    %1793 = vmatpush1.msra.mxu0 0.0
    %1794 = vmatprep.mubr.f32.mxu0 0.0
    %1795 = vmatmul.mubr.f32.gmra.mrb[0].mxu0 %v1728
    %v1796 = vpop.f32.mrb[0].mxu0
    %v1797 = vadd.f32 %v1721, %v1796
    %v1798 = vpop.f32.mrb[0].mxu0
    %v1799 = vadd.f32 %v1723, %v1798
    %1800 = vdwg.mxu0
    %v1801 = vadd.f32 %v1797, %v180
    %v1802 = vadd.f32 %v1799, %v184
    %v1803 = vxor.u32 %v1801, 2147483648
    %v1804 = vxor.u32 %v1802, 2147483648
    %v1805 = vmul.f32 %v1803, 1.442695
    %v1806 = vpow.pop %v1805
    %v1807 = vmul.f32 %v1804, 1.442695
    %v1808 = vpow.pop %v1807
    %v1809 = vadd.f32 %v1806, 1.0
    %v1810 = vadd.f32 %v1808, 1.0
    %v1811 = vrcp.pop %v1809
    %v1812 = vmul.f32 1.0, %v1811
    %v1813 = vrcp.pop %v1810
    %v1814 = vmul.f32 1.0, %v1813
    %v1815 = vmul.f32 %v1814, 2.0
    %v1816 = vsub.f32 %v1815, 1.0
    %v1817 = vmul.f32 %v1812, %v1306
    %v1818 = vmul.f32 %v1812, %v1816
    %1820 = vrot.lane.b32.xlu0 %v1818, 64
    %v1821 = vpop.permute.xlu0 %1820
    %v1823 = vadd.f32 %v1817, %v1821
    %v1824 = vtanh.pop %v1823
    %v1825 = vmul.f32 %v1814, %v1824
    %1827 = vrot.lane.b32.xlu0 %v1825, 64
    %v1828 = vpop.permute.xlu0 %1827
    %v1829 = vsel %vm618, %v1828, 0
    %1831 = vmatprep.subr.mxu0 0.0
    %1832 = vmatpush1.msra.mxu0 %v160
    %1833 = vmatprep.subr.mxu0 0.0
    %1834 = vmatpush1.msra.mxu0 %v161
    %1835 = vmatprep.subr.mxu0 0.0
    %1836 = vmatpush1.msra.mxu0 %v162
    %1837 = vmatprep.subr.mxu0 0.0
    %1838 = vmatpush1.msra.mxu0 %v163
    %1839 = vmatprep.subr.mxu0 0.0
    %1840 = vmatpush1.msra.mxu0 %v164
    %1841 = vmatprep.subr.mxu0 0.0
    %1842 = vmatpush1.msra.mxu0 %v165
    %1843 = vmatprep.subr.mxu0 0.0
    %1844 = vmatpush1.msra.mxu0 %v166
    %1845 = vmatprep.subr.mxu0 0.0
    %1846 = vmatpush1.msra.mxu0 %v167
    %1847 = vmatprep.subr.mxu0 0.0
    %1848 = vmatpush1.msra.mxu0 0.0
    %1849 = vmatprep.subr.mxu0 0.0
    %1850 = vmatpush1.msra.mxu0 0.0
    %1851 = vmatprep.subr.mxu0 0.0
    %1852 = vmatpush1.msra.mxu0 0.0
    %1853 = vmatprep.subr.mxu0 0.0
    %1854 = vmatpush1.msra.mxu0 0.0
    %1855 = vmatprep.subr.mxu0 0.0
    %1856 = vmatpush1.msra.mxu0 0.0
    %1857 = vmatprep.subr.mxu0 0.0
    %1858 = vmatpush1.msra.mxu0 0.0
    %1859 = vmatprep.subr.mxu0 0.0
    %1860 = vmatpush1.msra.mxu0 0.0
    %1861 = vmatprep.subr.mxu0 0.0
    %1862 = vmatpush1.msra.mxu0 0.0
    %1863 = vmatprep.subr.mxu0 0.0
    %1864 = vmatpush1.msra.mxu0 0.0
    %1865 = vmatprep.subr.mxu0 0.0
    %1866 = vmatpush1.msra.mxu0 0.0
    %1867 = vmatprep.subr.mxu0 0.0
    %1868 = vmatpush1.msra.mxu0 0.0
    %1869 = vmatprep.subr.mxu0 0.0
    %1870 = vmatpush1.msra.mxu0 0.0
    %1871 = vmatprep.subr.mxu0 0.0
    %1872 = vmatpush1.msra.mxu0 0.0
    %1873 = vmatprep.subr.mxu0 0.0
    %1874 = vmatpush1.msra.mxu0 0.0
    %1875 = vmatprep.subr.mxu0 0.0
    %1876 = vmatpush1.msra.mxu0 0.0
    %1877 = vmatprep.subr.mxu0 0.0
    %1878 = vmatpush1.msra.mxu0 0.0
    %1879 = vmatprep.subr.mxu0 0.0
    %1880 = vmatpush1.msra.mxu0 0.0
    %1881 = vmatprep.subr.mxu0 0.0
    %1882 = vmatpush1.msra.mxu0 0.0
    %1883 = vmatprep.subr.mxu0 0.0
    %1884 = vmatpush1.msra.mxu0 0.0
    %1885 = vmatprep.subr.mxu0 0.0
    %1886 = vmatpush1.msra.mxu0 0.0
    %1887 = vmatprep.subr.mxu0 0.0
    %1888 = vmatpush1.msra.mxu0 0.0
    %1889 = vmatprep.subr.mxu0 0.0
    %1890 = vmatpush1.msra.mxu0 0.0
    %1891 = vmatprep.subr.mxu0 0.0
    %1892 = vmatpush1.msra.mxu0 0.0
    %1893 = vmatprep.subr.mxu0 0.0
    %1894 = vmatpush1.msra.mxu0 0.0
    %1895 = vmatprep.mubr.f32.mxu0 0.0
    %1896 = vmatmul.mubr.f32.gmra.mrb[0].mxu0 %v1829
    %v1897 = vpop.f32.mrb[0].mxu0
    %v1898 = vadd.f32 %v192, %v1897
    %v1899 = vpop.f32.mrb[0].mxu0
    %1900 = vdwg.mxu0
    %s1901 = scalar_lea.vmem [#allocation14], 16
    %1902 = vst.msk [vmem:[%s1901] sm:$0xff] %vm209, %v1898
    %v1903 = vld [vmem:[#allocation2 + $0x18] sm:$0xff]
    %1904 = vmatprep.subr.mxu0 0.0
    %1905 = vmatpush1.msra.mxu0 %v124
    %1906 = vmatprep.subr.mxu0 0.0
    %1907 = vmatpush1.msra.mxu0 %v125
    %1908 = vmatprep.subr.mxu0 0.0
    %1909 = vmatpush1.msra.mxu0 %v126
    %1910 = vmatprep.subr.mxu0 0.0
    %1911 = vmatpush1.msra.mxu0 %v127
    %1912 = vmatprep.subr.mxu0 0.0
    %1913 = vmatpush1.msra.mxu0 0.0
    %1914 = vmatprep.subr.mxu0 0.0
    %1915 = vmatpush1.msra.mxu0 0.0
    %1916 = vmatprep.subr.mxu0 0.0
    %1917 = vmatpush1.msra.mxu0 0.0
    %1918 = vmatprep.subr.mxu0 0.0
    %1919 = vmatpush1.msra.mxu0 0.0
    %1920 = vmatprep.subr.mxu0 0.0
    %1921 = vmatpush1.msra.mxu0 0.0
    %1922 = vmatprep.subr.mxu0 0.0
    %1923 = vmatpush1.msra.mxu0 0.0
    %1924 = vmatprep.subr.mxu0 0.0
    %1925 = vmatpush1.msra.mxu0 0.0
    %1926 = vmatprep.subr.mxu0 0.0
    %1927 = vmatpush1.msra.mxu0 0.0
    %1928 = vmatprep.subr.mxu0 0.0
    %1929 = vmatpush1.msra.mxu0 0.0
    %1930 = vmatprep.subr.mxu0 0.0
    %1931 = vmatpush1.msra.mxu0 0.0
    %1932 = vmatprep.subr.mxu0 0.0
    %1933 = vmatpush1.msra.mxu0 0.0
    %1934 = vmatprep.subr.mxu0 0.0
    %1935 = vmatpush1.msra.mxu0 0.0
    %1936 = vmatprep.subr.mxu0 0.0
    %1937 = vmatpush1.msra.mxu0 0.0
    %1938 = vmatprep.subr.mxu0 0.0
    %1939 = vmatpush1.msra.mxu0 0.0
    %1940 = vmatprep.subr.mxu0 0.0
    %1941 = vmatpush1.msra.mxu0 0.0
    %1942 = vmatprep.subr.mxu0 0.0
    %1943 = vmatpush1.msra.mxu0 0.0
    %1944 = vmatprep.subr.mxu0 0.0
    %1945 = vmatpush1.msra.mxu0 0.0
    %1946 = vmatprep.subr.mxu0 0.0
    %1947 = vmatpush1.msra.mxu0 0.0
    %1948 = vmatprep.subr.mxu0 0.0
    %1949 = vmatpush1.msra.mxu0 0.0
    %1950 = vmatprep.subr.mxu0 0.0
    %1951 = vmatpush1.msra.mxu0 0.0
    %1952 = vmatprep.subr.mxu0 0.0
    %1953 = vmatpush1.msra.mxu0 0.0
    %1954 = vmatprep.subr.mxu0 0.0
    %1955 = vmatpush1.msra.mxu0 0.0
    %1956 = vmatprep.subr.mxu0 0.0
    %1957 = vmatpush1.msra.mxu0 0.0
    %1958 = vmatprep.subr.mxu0 0.0
    %1959 = vmatpush1.msra.mxu0 0.0
    %1960 = vmatprep.subr.mxu0 0.0
    %1961 = vmatpush1.msra.mxu0 0.0
    %1962 = vmatprep.subr.mxu0 0.0
    %1963 = vmatpush1.msra.mxu0 0.0
    %1964 = vmatprep.subr.mxu0 0.0
    %1965 = vmatpush1.msra.mxu0 0.0
    %1966 = vmatprep.subr.mxu0 0.0
    %1967 = vmatpush1.msra.mxu0 0.0
    %1968 = vmatprep.mubr.f32.mxu0 0.0
    %1969 = vmatmul.mubr.f32.gmra.mrb[0].mxu0 %v1556
    %v1970 = vpop.f32.mrb[0].mxu0
    %v1971 = vadd.f32 0.0, %v1970
    %v1972 = vpop.f32.mrb[0].mxu0
    %1973 = vdwg.mxu0
    %v1974 = vadd.f32 %v1903, %v1971
    %v1975 = vxor.u32 %v1974, 2147483648
    %v1976 = vmul.f32 %v1975, 1.442695
    %v1977 = vpow.pop %v1976
    %v1978 = vadd.f32 %v1977, 1.0
    %v1979 = vrcp.pop %v1978
    %v1980 = vmul.f32 1.0, %v1979
    %v1981 = vmul.f32 %v1980, 2.0
    %v1982 = vsub.f32 %v1981, 1.0
    %v1983 = vmul.f32 %v1980, %v1476
    %1985 = vrot.lane.b32.xlu0 %v1982, 64
    %v1986 = vpop.permute.xlu0 %1985
    %v1988 = vmul.f32 %v1980, %v1986
    %1990 = vrot.lane.b32.xlu0 %v1988, 32
    %v1991 = vpop.permute.xlu0 %1990
    %v1993 = vadd.f32 %v1983, %v1991
    %v1994 = vtanh.pop %v1993
    %1996 = vrot.lane.b32.xlu0 %v1994, 64
    %v1997 = vpop.permute.xlu0 %1996
    %v1999 = vmul.f32 %v1980, %v1997
    %2000 = vmatprep.subr.mxu0 0.0
    %2001 = vmatpush1.msra.mxu0 %v132
    %2002 = vmatprep.subr.mxu0 0.0
    %2003 = vmatpush1.msra.mxu0 %v133
    %2004 = vmatprep.subr.mxu0 0.0
    %2005 = vmatpush1.msra.mxu0 %v134
    %2006 = vmatprep.subr.mxu0 0.0
    %2007 = vmatpush1.msra.mxu0 %v135
    %2008 = vmatprep.subr.mxu0 0.0
    %2009 = vmatpush1.msra.mxu0 0.0
    %2010 = vmatprep.subr.mxu0 0.0
    %2011 = vmatpush1.msra.mxu0 0.0
    %2012 = vmatprep.subr.mxu0 0.0
    %2013 = vmatpush1.msra.mxu0 0.0
    %2014 = vmatprep.subr.mxu0 0.0
    %2015 = vmatpush1.msra.mxu0 0.0
    %2016 = vmatprep.subr.mxu0 0.0
    %2017 = vmatpush1.msra.mxu0 0.0
    %2018 = vmatprep.subr.mxu0 0.0
    %2019 = vmatpush1.msra.mxu0 0.0
    %2020 = vmatprep.subr.mxu0 0.0
    %2021 = vmatpush1.msra.mxu0 0.0
    %2022 = vmatprep.subr.mxu0 0.0
    %2023 = vmatpush1.msra.mxu0 0.0
    %2024 = vmatprep.subr.mxu0 0.0
    %2025 = vmatpush1.msra.mxu0 0.0
    %2026 = vmatprep.subr.mxu0 0.0
    %2027 = vmatpush1.msra.mxu0 0.0
    %2028 = vmatprep.subr.mxu0 0.0
    %2029 = vmatpush1.msra.mxu0 0.0
    %2030 = vmatprep.subr.mxu0 0.0
    %2031 = vmatpush1.msra.mxu0 0.0
    %2032 = vmatprep.subr.mxu0 0.0
    %2033 = vmatpush1.msra.mxu0 0.0
    %2034 = vmatprep.subr.mxu0 0.0
    %2035 = vmatpush1.msra.mxu0 0.0
    %2036 = vmatprep.subr.mxu0 0.0
    %2037 = vmatpush1.msra.mxu0 0.0
    %2038 = vmatprep.subr.mxu0 0.0
    %2039 = vmatpush1.msra.mxu0 0.0
    %2040 = vmatprep.subr.mxu0 0.0
    %2041 = vmatpush1.msra.mxu0 0.0
    %2042 = vmatprep.subr.mxu0 0.0
    %2043 = vmatpush1.msra.mxu0 0.0
    %2044 = vmatprep.subr.mxu0 0.0
    %2045 = vmatpush1.msra.mxu0 0.0
    %2046 = vmatprep.subr.mxu0 0.0
    %2047 = vmatpush1.msra.mxu0 0.0
    %2048 = vmatprep.subr.mxu0 0.0
    %2049 = vmatpush1.msra.mxu0 0.0
    %2050 = vmatprep.subr.mxu0 0.0
    %2051 = vmatpush1.msra.mxu0 0.0
    %2052 = vmatprep.subr.mxu0 0.0
    %2053 = vmatpush1.msra.mxu0 0.0
    %2054 = vmatprep.subr.mxu0 0.0
    %2055 = vmatpush1.msra.mxu0 0.0
    %2056 = vmatprep.subr.mxu0 0.0
    %2057 = vmatpush1.msra.mxu0 0.0
    %2058 = vmatprep.subr.mxu0 0.0
    %2059 = vmatpush1.msra.mxu0 0.0
    %2060 = vmatprep.subr.mxu0 0.0
    %2061 = vmatpush1.msra.mxu0 0.0
    %2062 = vmatprep.subr.mxu0 0.0
    %2063 = vmatpush1.msra.mxu0 0.0
    %2064 = vmatprep.mubr.f32.mxu0 0.0
    %2065 = vmatmul.mubr.f32.gmra.mrb[0].mxu0 %v1728
    %v2066 = vpop.f32.mrb[0].mxu0
    %v2067 = vadd.f32 0.0, %v2066
    %v2068 = vpop.f32.mrb[0].mxu0
    %2069 = vdwg.mxu0
    %2071 = vrot.lane.b32.xlu0 %v1999, 32
    %v2072 = vpop.permute.xlu0 %2071
    %v2073 = vsel %vm209, %v2072, 0
    %2075 = vmatprep.subr.mxu0 0.0
    %2076 = vmatpush1.msra.mxu0 %v128
    %2077 = vmatprep.subr.mxu0 0.0
    %2078 = vmatpush1.msra.mxu0 %v129
    %2079 = vmatprep.subr.mxu0 0.0
    %2080 = vmatpush1.msra.mxu0 %v130
    %2081 = vmatprep.subr.mxu0 0.0
    %2082 = vmatpush1.msra.mxu0 %v131
    %2083 = vmatprep.subr.mxu0 0.0
    %2084 = vmatpush1.msra.mxu0 0.0
    %2085 = vmatprep.subr.mxu0 0.0
    %2086 = vmatpush1.msra.mxu0 0.0
    %2087 = vmatprep.subr.mxu0 0.0
    %2088 = vmatpush1.msra.mxu0 0.0
    %2089 = vmatprep.subr.mxu0 0.0
    %2090 = vmatpush1.msra.mxu0 0.0
    %2091 = vmatprep.subr.mxu0 0.0
    %2092 = vmatpush1.msra.mxu0 0.0
    %2093 = vmatprep.subr.mxu0 0.0
    %2094 = vmatpush1.msra.mxu0 0.0
    %2095 = vmatprep.subr.mxu0 0.0
    %2096 = vmatpush1.msra.mxu0 0.0
    %2097 = vmatprep.subr.mxu0 0.0
    %2098 = vmatpush1.msra.mxu0 0.0
    %2099 = vmatprep.subr.mxu0 0.0
    %2100 = vmatpush1.msra.mxu0 0.0
    %2101 = vmatprep.subr.mxu0 0.0
    %2102 = vmatpush1.msra.mxu0 0.0
    %2103 = vmatprep.subr.mxu0 0.0
    %2104 = vmatpush1.msra.mxu0 0.0
    %2105 = vmatprep.subr.mxu0 0.0
    %2106 = vmatpush1.msra.mxu0 0.0
    %2107 = vmatprep.subr.mxu0 0.0
    %2108 = vmatpush1.msra.mxu0 0.0
    %2109 = vmatprep.subr.mxu0 0.0
    %2110 = vmatpush1.msra.mxu0 0.0
    %2111 = vmatprep.subr.mxu0 0.0
    %2112 = vmatpush1.msra.mxu0 0.0
    %2113 = vmatprep.subr.mxu0 0.0
    %2114 = vmatpush1.msra.mxu0 0.0
    %2115 = vmatprep.subr.mxu0 0.0
    %2116 = vmatpush1.msra.mxu0 0.0
    %2117 = vmatprep.subr.mxu0 0.0
    %2118 = vmatpush1.msra.mxu0 0.0
    %2119 = vmatprep.subr.mxu0 0.0
    %2120 = vmatpush1.msra.mxu0 0.0
    %2121 = vmatprep.subr.mxu0 0.0
    %2122 = vmatpush1.msra.mxu0 0.0
    %2123 = vmatprep.subr.mxu0 0.0
    %2124 = vmatpush1.msra.mxu0 0.0
    %2125 = vmatprep.subr.mxu0 0.0
    %2126 = vmatpush1.msra.mxu0 0.0
    %2127 = vmatprep.subr.mxu0 0.0
    %2128 = vmatpush1.msra.mxu0 0.0
    %2129 = vmatprep.subr.mxu0 0.0
    %2130 = vmatpush1.msra.mxu0 0.0
    %2131 = vmatprep.subr.mxu0 0.0
    %2132 = vmatpush1.msra.mxu0 0.0
    %2133 = vmatprep.subr.mxu0 0.0
    %2134 = vmatpush1.msra.mxu0 0.0
    %2135 = vmatprep.subr.mxu0 0.0
    %2136 = vmatpush1.msra.mxu0 0.0
    %2137 = vmatprep.subr.mxu0 0.0
    %2138 = vmatpush1.msra.mxu0 0.0
    %2139 = vmatprep.mubr.f32.mxu0 0.0
    %2140 = vmatmul.mubr.f32.gmra.mrb[0].mxu0 %v2073
    %v2141 = vpop.f32.mrb[0].mxu0
    %v2142 = vadd.f32 %v2067, %v2141
    %v2143 = vpop.f32.mrb[0].mxu0
    %2144 = vdwg.mxu0
    %v2145 = vadd.f32 %v2142, %v173
    %v2146 = vxor.u32 %v2145, 2147483648
    %v2147 = vmul.f32 %v2146, 1.442695
    %v2148 = vpow.pop %v2147
    %v2149 = vadd.f32 %v2148, 1.0
    %v2150 = vrcp.pop %v2149
    %v2151 = vmul.f32 1.0, %v2150
    %v2152 = vmul.f32 %v2151, 2.0
    %v2153 = vsub.f32 %v2152, 1.0
    %v2154 = vmul.f32 %v2151, %v1647
    %2156 = vrot.lane.b32.xlu0 %v2153, 64
    %v2157 = vpop.permute.xlu0 %2156
    %v2159 = vmul.f32 %v2151, %v2157
    %2161 = vrot.lane.b32.xlu0 %v2159, 32
    %v2162 = vpop.permute.xlu0 %2161
    %v2164 = vadd.f32 %v2154, %v2162
    %v2165 = vtanh.pop %v2164
    %2167 = vrot.lane.b32.xlu0 %v2165, 64
    %v2168 = vpop.permute.xlu0 %2167
    %v2170 = vmul.f32 %v2151, %v2168
    %2171 = vmatprep.subr.mxu0 %v145
    %2172 = vmatpush1.msra.mxu0 %v144
    %2173 = vmatprep.subr.mxu0 %v147
    %2174 = vmatpush1.msra.mxu0 %v146
    %2175 = vmatprep.subr.mxu0 %v149
    %2176 = vmatpush1.msra.mxu0 %v148
    %2177 = vmatprep.subr.mxu0 %v151
    %2178 = vmatpush1.msra.mxu0 %v150
    %2179 = vmatprep.subr.mxu0 %v153
    %2180 = vmatpush1.msra.mxu0 %v152
    %2181 = vmatprep.subr.mxu0 %v155
    %2182 = vmatpush1.msra.mxu0 %v154
    %2183 = vmatprep.subr.mxu0 %v157
    %2184 = vmatpush1.msra.mxu0 %v156
    %2185 = vmatprep.subr.mxu0 %v159
    %2186 = vmatpush1.msra.mxu0 %v158
    %2187 = vmatprep.subr.mxu0 0.0
    %2188 = vmatpush1.msra.mxu0 0.0
    %2189 = vmatprep.subr.mxu0 0.0
    %2190 = vmatpush1.msra.mxu0 0.0
    %2191 = vmatprep.subr.mxu0 0.0
    %2192 = vmatpush1.msra.mxu0 0.0
    %2193 = vmatprep.subr.mxu0 0.0
    %2194 = vmatpush1.msra.mxu0 0.0
    %2195 = vmatprep.subr.mxu0 0.0
    %2196 = vmatpush1.msra.mxu0 0.0
    %2197 = vmatprep.subr.mxu0 0.0
    %2198 = vmatpush1.msra.mxu0 0.0
    %2199 = vmatprep.subr.mxu0 0.0
    %2200 = vmatpush1.msra.mxu0 0.0
    %2201 = vmatprep.subr.mxu0 0.0
    %2202 = vmatpush1.msra.mxu0 0.0
    %2203 = vmatprep.subr.mxu0 0.0
    %2204 = vmatpush1.msra.mxu0 0.0
    %2205 = vmatprep.subr.mxu0 0.0
    %2206 = vmatpush1.msra.mxu0 0.0
    %2207 = vmatprep.subr.mxu0 0.0
    %2208 = vmatpush1.msra.mxu0 0.0
    %2209 = vmatprep.subr.mxu0 0.0
    %2210 = vmatpush1.msra.mxu0 0.0
    %2211 = vmatprep.subr.mxu0 0.0
    %2212 = vmatpush1.msra.mxu0 0.0
    %2213 = vmatprep.subr.mxu0 0.0
    %2214 = vmatpush1.msra.mxu0 0.0
    %2215 = vmatprep.subr.mxu0 0.0
    %2216 = vmatpush1.msra.mxu0 0.0
    %2217 = vmatprep.subr.mxu0 0.0
    %2218 = vmatpush1.msra.mxu0 0.0
    %2219 = vmatprep.subr.mxu0 0.0
    %2220 = vmatpush1.msra.mxu0 0.0
    %2221 = vmatprep.subr.mxu0 0.0
    %2222 = vmatpush1.msra.mxu0 0.0
    %2223 = vmatprep.subr.mxu0 0.0
    %2224 = vmatpush1.msra.mxu0 0.0
    %2225 = vmatprep.subr.mxu0 0.0
    %2226 = vmatpush1.msra.mxu0 0.0
    %2227 = vmatprep.subr.mxu0 0.0
    %2228 = vmatpush1.msra.mxu0 0.0
    %2229 = vmatprep.subr.mxu0 0.0
    %2230 = vmatpush1.msra.mxu0 0.0
    %2231 = vmatprep.subr.mxu0 0.0
    %2232 = vmatpush1.msra.mxu0 0.0
    %2233 = vmatprep.subr.mxu0 0.0
    %2234 = vmatpush1.msra.mxu0 0.0
    %2235 = vmatprep.mubr.f32.mxu0 0.0
    %2236 = vmatmul.mubr.f32.gmra.mrb[0].mxu0 %v1829
    %v2237 = vpop.f32.mrb[0].mxu0
    %v2238 = vadd.f32 0.0, %v2237
    %v2239 = vpop.f32.mrb[0].mxu0
    %v2240 = vadd.f32 0.0, %v2239
    %2241 = vdwg.mxu0
    %2243 = vrot.lane.b32.xlu0 %v2170, 32
    %v2244 = vpop.permute.xlu0 %2243
    %v2245 = vsel %vm209, %v2244, 0
    %2247 = vmatprep.subr.mxu0 %v137
    %2248 = vmatpush1.msra.mxu0 %v136
    %2249 = vmatprep.subr.mxu0 %v139
    %2250 = vmatpush1.msra.mxu0 %v138
    %2251 = vmatprep.subr.mxu0 %v141
    %2252 = vmatpush1.msra.mxu0 %v140
    %2253 = vmatprep.subr.mxu0 %v143
    %2254 = vmatpush1.msra.mxu0 %v142
    %2255 = vmatprep.subr.mxu0 0.0
    %2256 = vmatpush1.msra.mxu0 0.0
    %2257 = vmatprep.subr.mxu0 0.0
    %2258 = vmatpush1.msra.mxu0 0.0
    %2259 = vmatprep.subr.mxu0 0.0
    %2260 = vmatpush1.msra.mxu0 0.0
    %2261 = vmatprep.subr.mxu0 0.0
    %2262 = vmatpush1.msra.mxu0 0.0
    %2263 = vmatprep.subr.mxu0 0.0
    %2264 = vmatpush1.msra.mxu0 0.0
    %2265 = vmatprep.subr.mxu0 0.0
    %2266 = vmatpush1.msra.mxu0 0.0
    %2267 = vmatprep.subr.mxu0 0.0
    %2268 = vmatpush1.msra.mxu0 0.0
    %2269 = vmatprep.subr.mxu0 0.0
    %2270 = vmatpush1.msra.mxu0 0.0
    %2271 = vmatprep.subr.mxu0 0.0
    %2272 = vmatpush1.msra.mxu0 0.0
    %2273 = vmatprep.subr.mxu0 0.0
    %2274 = vmatpush1.msra.mxu0 0.0
    %2275 = vmatprep.subr.mxu0 0.0
    %2276 = vmatpush1.msra.mxu0 0.0
    %2277 = vmatprep.subr.mxu0 0.0
    %2278 = vmatpush1.msra.mxu0 0.0
    %2279 = vmatprep.subr.mxu0 0.0
    %2280 = vmatpush1.msra.mxu0 0.0
    %2281 = vmatprep.subr.mxu0 0.0
    %2282 = vmatpush1.msra.mxu0 0.0
    %2283 = vmatprep.subr.mxu0 0.0
    %2284 = vmatpush1.msra.mxu0 0.0
    %2285 = vmatprep.subr.mxu0 0.0
    %2286 = vmatpush1.msra.mxu0 0.0
    %2287 = vmatprep.subr.mxu0 0.0
    %2288 = vmatpush1.msra.mxu0 0.0
    %2289 = vmatprep.subr.mxu0 0.0
    %2290 = vmatpush1.msra.mxu0 0.0
    %2291 = vmatprep.subr.mxu0 0.0
    %2292 = vmatpush1.msra.mxu0 0.0
    %2293 = vmatprep.subr.mxu0 0.0
    %2294 = vmatpush1.msra.mxu0 0.0
    %2295 = vmatprep.subr.mxu0 0.0
    %2296 = vmatpush1.msra.mxu0 0.0
    %2297 = vmatprep.subr.mxu0 0.0
    %2298 = vmatpush1.msra.mxu0 0.0
    %2299 = vmatprep.subr.mxu0 0.0
    %2300 = vmatpush1.msra.mxu0 0.0
    %2301 = vmatprep.subr.mxu0 0.0
    %2302 = vmatpush1.msra.mxu0 0.0
    %2303 = vmatprep.subr.mxu0 0.0
    %2304 = vmatpush1.msra.mxu0 0.0
    %2305 = vmatprep.subr.mxu0 0.0
    %2306 = vmatpush1.msra.mxu0 0.0
    %2307 = vmatprep.subr.mxu0 0.0
    %2308 = vmatpush1.msra.mxu0 0.0
    %2309 = vmatprep.subr.mxu0 0.0
    %2310 = vmatpush1.msra.mxu0 0.0
    %2311 = vmatprep.mubr.f32.mxu0 0.0
    %2312 = vmatmul.mubr.f32.gmra.mrb[0].mxu0 %v2245
    %v2313 = vpop.f32.mrb[0].mxu0
    %v2314 = vadd.f32 %v2238, %v2313
    %v2315 = vpop.f32.mrb[0].mxu0
    %v2316 = vadd.f32 %v2240, %v2315
    %2317 = vdwg.mxu0
    %v2318 = vadd.f32 %v2314, %v180
    %v2319 = vadd.f32 %v2316, %v184
    %v2320 = vxor.u32 %v2318, 2147483648
    %v2321 = vxor.u32 %v2319, 2147483648
    %v2322 = vmul.f32 %v2320, 1.442695
    %v2323 = vpow.pop %v2322
    %v2324 = vmul.f32 %v2321, 1.442695
    %v2325 = vpow.pop %v2324
    %v2326 = vadd.f32 %v2323, 1.0
    %v2327 = vadd.f32 %v2325, 1.0
    %v2328 = vrcp.pop %v2326
    %v2329 = vmul.f32 1.0, %v2328
    %v2330 = vrcp.pop %v2327
    %v2331 = vmul.f32 1.0, %v2330
    %v2332 = vmul.f32 %v2331, 2.0
    %v2333 = vsub.f32 %v2332, 1.0
    %v2334 = vmul.f32 %v2329, %v1823
    %v2335 = vmul.f32 %v2329, %v2333
    %2337 = vrot.lane.b32.xlu0 %v2335, 64
    %v2338 = vpop.permute.xlu0 %2337
    %v2340 = vadd.f32 %v2334, %v2338
    %v2341 = vtanh.pop %v2340
    %v2342 = vmul.f32 %v2331, %v2341
    %2344 = vrot.lane.b32.xlu0 %v2342, 64
    %v2345 = vpop.permute.xlu0 %2344
    %v2346 = vsel %vm618, %v2345, 0
    %2348 = vmatprep.subr.mxu0 0.0
    %2349 = vmatpush1.msra.mxu0 %v160
    %2350 = vmatprep.subr.mxu0 0.0
    %2351 = vmatpush1.msra.mxu0 %v161
    %2352 = vmatprep.subr.mxu0 0.0
    %2353 = vmatpush1.msra.mxu0 %v162
    %2354 = vmatprep.subr.mxu0 0.0
    %2355 = vmatpush1.msra.mxu0 %v163
    %2356 = vmatprep.subr.mxu0 0.0
    %2357 = vmatpush1.msra.mxu0 %v164
    %2358 = vmatprep.subr.mxu0 0.0
    %2359 = vmatpush1.msra.mxu0 %v165
    %2360 = vmatprep.subr.mxu0 0.0
    %2361 = vmatpush1.msra.mxu0 %v166
    %2362 = vmatprep.subr.mxu0 0.0
    %2363 = vmatpush1.msra.mxu0 %v167
    %2364 = vmatprep.subr.mxu0 0.0
    %2365 = vmatpush1.msra.mxu0 0.0
    %2366 = vmatprep.subr.mxu0 0.0
    %2367 = vmatpush1.msra.mxu0 0.0
    %2368 = vmatprep.subr.mxu0 0.0
    %2369 = vmatpush1.msra.mxu0 0.0
    %2370 = vmatprep.subr.mxu0 0.0
    %2371 = vmatpush1.msra.mxu0 0.0
    %2372 = vmatprep.subr.mxu0 0.0
    %2373 = vmatpush1.msra.mxu0 0.0
    %2374 = vmatprep.subr.mxu0 0.0
    %2375 = vmatpush1.msra.mxu0 0.0
    %2376 = vmatprep.subr.mxu0 0.0
    %2377 = vmatpush1.msra.mxu0 0.0
    %2378 = vmatprep.subr.mxu0 0.0
    %2379 = vmatpush1.msra.mxu0 0.0
    %2380 = vmatprep.subr.mxu0 0.0
    %2381 = vmatpush1.msra.mxu0 0.0
    %2382 = vmatprep.subr.mxu0 0.0
    %2383 = vmatpush1.msra.mxu0 0.0
    %2384 = vmatprep.subr.mxu0 0.0
    %2385 = vmatpush1.msra.mxu0 0.0
    %2386 = vmatprep.subr.mxu0 0.0
    %2387 = vmatpush1.msra.mxu0 0.0
    %2388 = vmatprep.subr.mxu0 0.0
    %2389 = vmatpush1.msra.mxu0 0.0
    %2390 = vmatprep.subr.mxu0 0.0
    %2391 = vmatpush1.msra.mxu0 0.0
    %2392 = vmatprep.subr.mxu0 0.0
    %2393 = vmatpush1.msra.mxu0 0.0
    %2394 = vmatprep.subr.mxu0 0.0
    %2395 = vmatpush1.msra.mxu0 0.0
    %2396 = vmatprep.subr.mxu0 0.0
    %2397 = vmatpush1.msra.mxu0 0.0
    %2398 = vmatprep.subr.mxu0 0.0
    %2399 = vmatpush1.msra.mxu0 0.0
    %2400 = vmatprep.subr.mxu0 0.0
    %2401 = vmatpush1.msra.mxu0 0.0
    %2402 = vmatprep.subr.mxu0 0.0
    %2403 = vmatpush1.msra.mxu0 0.0
    %2404 = vmatprep.subr.mxu0 0.0
    %2405 = vmatpush1.msra.mxu0 0.0
    %2406 = vmatprep.subr.mxu0 0.0
    %2407 = vmatpush1.msra.mxu0 0.0
    %2408 = vmatprep.subr.mxu0 0.0
    %2409 = vmatpush1.msra.mxu0 0.0
    %2410 = vmatprep.subr.mxu0 0.0
    %2411 = vmatpush1.msra.mxu0 0.0
    %2412 = vmatprep.mubr.f32.mxu0 0.0
    %2413 = vmatmul.mubr.f32.gmra.mrb[0].mxu0 %v2346
    %v2414 = vpop.f32.mrb[0].mxu0
    %v2415 = vadd.f32 %v192, %v2414
    %v2416 = vpop.f32.mrb[0].mxu0
    %2417 = vdwg.mxu0
    %s2418 = scalar_lea.vmem [#allocation14], 24
    %2419 = vst.msk [vmem:[%s2418] sm:$0xff] %vm209, %v2415
    %v2420 = vld [vmem:[#allocation2 + $0x20] sm:$0xff]
    %2421 = vmatprep.subr.mxu0 0.0
    %2422 = vmatpush1.msra.mxu0 %v124
    %2423 = vmatprep.subr.mxu0 0.0
    %2424 = vmatpush1.msra.mxu0 %v125
    %2425 = vmatprep.subr.mxu0 0.0
    %2426 = vmatpush1.msra.mxu0 %v126
    %2427 = vmatprep.subr.mxu0 0.0
    %2428 = vmatpush1.msra.mxu0 %v127
    %2429 = vmatprep.subr.mxu0 0.0
    %2430 = vmatpush1.msra.mxu0 0.0
    %2431 = vmatprep.subr.mxu0 0.0
    %2432 = vmatpush1.msra.mxu0 0.0
    %2433 = vmatprep.subr.mxu0 0.0
    %2434 = vmatpush1.msra.mxu0 0.0
    %2435 = vmatprep.subr.mxu0 0.0
    %2436 = vmatpush1.msra.mxu0 0.0
    %2437 = vmatprep.subr.mxu0 0.0
    %2438 = vmatpush1.msra.mxu0 0.0
    %2439 = vmatprep.subr.mxu0 0.0
    %2440 = vmatpush1.msra.mxu0 0.0
    %2441 = vmatprep.subr.mxu0 0.0
    %2442 = vmatpush1.msra.mxu0 0.0
    %2443 = vmatprep.subr.mxu0 0.0
    %2444 = vmatpush1.msra.mxu0 0.0
    %2445 = vmatprep.subr.mxu0 0.0
    %2446 = vmatpush1.msra.mxu0 0.0
    %2447 = vmatprep.subr.mxu0 0.0
    %2448 = vmatpush1.msra.mxu0 0.0
    %2449 = vmatprep.subr.mxu0 0.0
    %2450 = vmatpush1.msra.mxu0 0.0
    %2451 = vmatprep.subr.mxu0 0.0
    %2452 = vmatpush1.msra.mxu0 0.0
    %2453 = vmatprep.subr.mxu0 0.0
    %2454 = vmatpush1.msra.mxu0 0.0
    %2455 = vmatprep.subr.mxu0 0.0
    %2456 = vmatpush1.msra.mxu0 0.0
    %2457 = vmatprep.subr.mxu0 0.0
    %2458 = vmatpush1.msra.mxu0 0.0
    %2459 = vmatprep.subr.mxu0 0.0
    %2460 = vmatpush1.msra.mxu0 0.0
    %2461 = vmatprep.subr.mxu0 0.0
    %2462 = vmatpush1.msra.mxu0 0.0
    %2463 = vmatprep.subr.mxu0 0.0
    %2464 = vmatpush1.msra.mxu0 0.0
    %2465 = vmatprep.subr.mxu0 0.0
    %2466 = vmatpush1.msra.mxu0 0.0
    %2467 = vmatprep.subr.mxu0 0.0
    %2468 = vmatpush1.msra.mxu0 0.0
    %2469 = vmatprep.subr.mxu0 0.0
    %2470 = vmatpush1.msra.mxu0 0.0
    %2471 = vmatprep.subr.mxu0 0.0
    %2472 = vmatpush1.msra.mxu0 0.0
    %2473 = vmatprep.subr.mxu0 0.0
    %2474 = vmatpush1.msra.mxu0 0.0
    %2475 = vmatprep.subr.mxu0 0.0
    %2476 = vmatpush1.msra.mxu0 0.0
    %2477 = vmatprep.subr.mxu0 0.0
    %2478 = vmatpush1.msra.mxu0 0.0
    %2479 = vmatprep.subr.mxu0 0.0
    %2480 = vmatpush1.msra.mxu0 0.0
    %2481 = vmatprep.subr.mxu0 0.0
    %2482 = vmatpush1.msra.mxu0 0.0
    %2483 = vmatprep.subr.mxu0 0.0
    %2484 = vmatpush1.msra.mxu0 0.0
    %2485 = vmatprep.mubr.f32.mxu0 0.0
    %2486 = vmatmul.mubr.f32.gmra.mrb[0].mxu0 %v2073
    %v2487 = vpop.f32.mrb[0].mxu0
    %v2488 = vadd.f32 0.0, %v2487
    %v2489 = vpop.f32.mrb[0].mxu0
    %2490 = vdwg.mxu0
    %v2491 = vadd.f32 %v2420, %v2488
    %v2492 = vxor.u32 %v2491, 2147483648
    %v2493 = vmul.f32 %v2492, 1.442695
    %v2494 = vpow.pop %v2493
    %v2495 = vadd.f32 %v2494, 1.0
    %v2496 = vrcp.pop %v2495
    %v2497 = vmul.f32 1.0, %v2496
    %v2498 = vmul.f32 %v2497, 2.0
    %v2499 = vsub.f32 %v2498, 1.0
    %v2500 = vmul.f32 %v2497, %v1993
    %2502 = vrot.lane.b32.xlu0 %v2499, 64
    %v2503 = vpop.permute.xlu0 %2502
    %v2505 = vmul.f32 %v2497, %v2503
    %2507 = vrot.lane.b32.xlu0 %v2505, 32
    %v2508 = vpop.permute.xlu0 %2507
    %v2510 = vadd.f32 %v2500, %v2508
    %v2511 = vtanh.pop %v2510
    %2513 = vrot.lane.b32.xlu0 %v2511, 64
    %v2514 = vpop.permute.xlu0 %2513
    %v2516 = vmul.f32 %v2497, %v2514
    %2517 = vmatprep.subr.mxu0 0.0
    %2518 = vmatpush1.msra.mxu0 %v132
    %2519 = vmatprep.subr.mxu0 0.0
    %2520 = vmatpush1.msra.mxu0 %v133
    %2521 = vmatprep.subr.mxu0 0.0
    %2522 = vmatpush1.msra.mxu0 %v134
    %2523 = vmatprep.subr.mxu0 0.0
    %2524 = vmatpush1.msra.mxu0 %v135
    %2525 = vmatprep.subr.mxu0 0.0
    %2526 = vmatpush1.msra.mxu0 0.0
    %2527 = vmatprep.subr.mxu0 0.0
    %2528 = vmatpush1.msra.mxu0 0.0
    %2529 = vmatprep.subr.mxu0 0.0
    %2530 = vmatpush1.msra.mxu0 0.0
    %2531 = vmatprep.subr.mxu0 0.0
    %2532 = vmatpush1.msra.mxu0 0.0
    %2533 = vmatprep.subr.mxu0 0.0
    %2534 = vmatpush1.msra.mxu0 0.0
    %2535 = vmatprep.subr.mxu0 0.0
    %2536 = vmatpush1.msra.mxu0 0.0
    %2537 = vmatprep.subr.mxu0 0.0
    %2538 = vmatpush1.msra.mxu0 0.0
    %2539 = vmatprep.subr.mxu0 0.0
    %2540 = vmatpush1.msra.mxu0 0.0
    %2541 = vmatprep.subr.mxu0 0.0
    %2542 = vmatpush1.msra.mxu0 0.0
    %2543 = vmatprep.subr.mxu0 0.0
    %2544 = vmatpush1.msra.mxu0 0.0
    %2545 = vmatprep.subr.mxu0 0.0
    %2546 = vmatpush1.msra.mxu0 0.0
    %2547 = vmatprep.subr.mxu0 0.0
    %2548 = vmatpush1.msra.mxu0 0.0
    %2549 = vmatprep.subr.mxu0 0.0
    %2550 = vmatpush1.msra.mxu0 0.0
    %2551 = vmatprep.subr.mxu0 0.0
    %2552 = vmatpush1.msra.mxu0 0.0
    %2553 = vmatprep.subr.mxu0 0.0
    %2554 = vmatpush1.msra.mxu0 0.0
    %2555 = vmatprep.subr.mxu0 0.0
    %2556 = vmatpush1.msra.mxu0 0.0
    %2557 = vmatprep.subr.mxu0 0.0
    %2558 = vmatpush1.msra.mxu0 0.0
    %2559 = vmatprep.subr.mxu0 0.0
    %2560 = vmatpush1.msra.mxu0 0.0
    %2561 = vmatprep.subr.mxu0 0.0
    %2562 = vmatpush1.msra.mxu0 0.0
    %2563 = vmatprep.subr.mxu0 0.0
    %2564 = vmatpush1.msra.mxu0 0.0
    %2565 = vmatprep.subr.mxu0 0.0
    %2566 = vmatpush1.msra.mxu0 0.0
    %2567 = vmatprep.subr.mxu0 0.0
    %2568 = vmatpush1.msra.mxu0 0.0
    %2569 = vmatprep.subr.mxu0 0.0
    %2570 = vmatpush1.msra.mxu0 0.0
    %2571 = vmatprep.subr.mxu0 0.0
    %2572 = vmatpush1.msra.mxu0 0.0
    %2573 = vmatprep.subr.mxu0 0.0
    %2574 = vmatpush1.msra.mxu0 0.0
    %2575 = vmatprep.subr.mxu0 0.0
    %2576 = vmatpush1.msra.mxu0 0.0
    %2577 = vmatprep.subr.mxu0 0.0
    %2578 = vmatpush1.msra.mxu0 0.0
    %2579 = vmatprep.subr.mxu0 0.0
    %2580 = vmatpush1.msra.mxu0 0.0
    %2581 = vmatprep.mubr.f32.mxu0 0.0
    %2582 = vmatmul.mubr.f32.gmra.mrb[0].mxu0 %v2245
    %v2583 = vpop.f32.mrb[0].mxu0
    %v2584 = vadd.f32 0.0, %v2583
    %v2585 = vpop.f32.mrb[0].mxu0
    %2586 = vdwg.mxu0
    %2588 = vrot.lane.b32.xlu0 %v2516, 32
    %v2589 = vpop.permute.xlu0 %2588
    %v2590 = vsel %vm209, %v2589, 0
    %2592 = vmatprep.subr.mxu0 0.0
    %2593 = vmatpush1.msra.mxu0 %v128
    %2594 = vmatprep.subr.mxu0 0.0
    %2595 = vmatpush1.msra.mxu0 %v129
    %2596 = vmatprep.subr.mxu0 0.0
    %2597 = vmatpush1.msra.mxu0 %v130
    %2598 = vmatprep.subr.mxu0 0.0
    %2599 = vmatpush1.msra.mxu0 %v131
    %2600 = vmatprep.subr.mxu0 0.0
    %2601 = vmatpush1.msra.mxu0 0.0
    %2602 = vmatprep.subr.mxu0 0.0
    %2603 = vmatpush1.msra.mxu0 0.0
    %2604 = vmatprep.subr.mxu0 0.0
    %2605 = vmatpush1.msra.mxu0 0.0
    %2606 = vmatprep.subr.mxu0 0.0
    %2607 = vmatpush1.msra.mxu0 0.0
    %2608 = vmatprep.subr.mxu0 0.0
    %2609 = vmatpush1.msra.mxu0 0.0
    %2610 = vmatprep.subr.mxu0 0.0
    %2611 = vmatpush1.msra.mxu0 0.0
    %2612 = vmatprep.subr.mxu0 0.0
    %2613 = vmatpush1.msra.mxu0 0.0
    %2614 = vmatprep.subr.mxu0 0.0
    %2615 = vmatpush1.msra.mxu0 0.0
    %2616 = vmatprep.subr.mxu0 0.0
    %2617 = vmatpush1.msra.mxu0 0.0
    %2618 = vmatprep.subr.mxu0 0.0
    %2619 = vmatpush1.msra.mxu0 0.0
    %2620 = vmatprep.subr.mxu0 0.0
    %2621 = vmatpush1.msra.mxu0 0.0
    %2622 = vmatprep.subr.mxu0 0.0
    %2623 = vmatpush1.msra.mxu0 0.0
    %2624 = vmatprep.subr.mxu0 0.0
    %2625 = vmatpush1.msra.mxu0 0.0
    %2626 = vmatprep.subr.mxu0 0.0
    %2627 = vmatpush1.msra.mxu0 0.0
    %2628 = vmatprep.subr.mxu0 0.0
    %2629 = vmatpush1.msra.mxu0 0.0
    %2630 = vmatprep.subr.mxu0 0.0
    %2631 = vmatpush1.msra.mxu0 0.0
    %2632 = vmatprep.subr.mxu0 0.0
    %2633 = vmatpush1.msra.mxu0 0.0
    %2634 = vmatprep.subr.mxu0 0.0
    %2635 = vmatpush1.msra.mxu0 0.0
    %2636 = vmatprep.subr.mxu0 0.0
    %2637 = vmatpush1.msra.mxu0 0.0
    %2638 = vmatprep.subr.mxu0 0.0
    %2639 = vmatpush1.msra.mxu0 0.0
    %2640 = vmatprep.subr.mxu0 0.0
    %2641 = vmatpush1.msra.mxu0 0.0
    %2642 = vmatprep.subr.mxu0 0.0
    %2643 = vmatpush1.msra.mxu0 0.0
    %2644 = vmatprep.subr.mxu0 0.0
    %2645 = vmatpush1.msra.mxu0 0.0
    %2646 = vmatprep.subr.mxu0 0.0
    %2647 = vmatpush1.msra.mxu0 0.0
    %2648 = vmatprep.subr.mxu0 0.0
    %2649 = vmatpush1.msra.mxu0 0.0
    %2650 = vmatprep.subr.mxu0 0.0
    %2651 = vmatpush1.msra.mxu0 0.0
    %2652 = vmatprep.subr.mxu0 0.0
    %2653 = vmatpush1.msra.mxu0 0.0
    %2654 = vmatprep.subr.mxu0 0.0
    %2655 = vmatpush1.msra.mxu0 0.0
    %2656 = vmatprep.mubr.f32.mxu0 0.0
    %2657 = vmatmul.mubr.f32.gmra.mrb[0].mxu0 %v2590
    %v2658 = vpop.f32.mrb[0].mxu0
    %v2659 = vadd.f32 %v2584, %v2658
    %v2660 = vpop.f32.mrb[0].mxu0
    %2661 = vdwg.mxu0
    %v2662 = vadd.f32 %v2659, %v173
    %v2663 = vxor.u32 %v2662, 2147483648
    %v2664 = vmul.f32 %v2663, 1.442695
    %v2665 = vpow.pop %v2664
    %v2666 = vadd.f32 %v2665, 1.0
    %v2667 = vrcp.pop %v2666
    %v2668 = vmul.f32 1.0, %v2667
    %v2669 = vmul.f32 %v2668, 2.0
    %v2670 = vsub.f32 %v2669, 1.0
    %v2671 = vmul.f32 %v2668, %v2164
    %2673 = vrot.lane.b32.xlu0 %v2670, 64
    %v2674 = vpop.permute.xlu0 %2673
    %v2676 = vmul.f32 %v2668, %v2674
    %2678 = vrot.lane.b32.xlu0 %v2676, 32
    %v2679 = vpop.permute.xlu0 %2678
    %v2681 = vadd.f32 %v2671, %v2679
    %v2682 = vtanh.pop %v2681
    %2684 = vrot.lane.b32.xlu0 %v2682, 64
    %v2685 = vpop.permute.xlu0 %2684
    %v2687 = vmul.f32 %v2668, %v2685
    %2688 = vmatprep.subr.mxu0 %v145
    %2689 = vmatpush1.msra.mxu0 %v144
    %2690 = vmatprep.subr.mxu0 %v147
    %2691 = vmatpush1.msra.mxu0 %v146
    %2692 = vmatprep.subr.mxu0 %v149
    %2693 = vmatpush1.msra.mxu0 %v148
    %2694 = vmatprep.subr.mxu0 %v151
    %2695 = vmatpush1.msra.mxu0 %v150
    %2696 = vmatprep.subr.mxu0 %v153
    %2697 = vmatpush1.msra.mxu0 %v152
    %2698 = vmatprep.subr.mxu0 %v155
    %2699 = vmatpush1.msra.mxu0 %v154
    %2700 = vmatprep.subr.mxu0 %v157
    %2701 = vmatpush1.msra.mxu0 %v156
    %2702 = vmatprep.subr.mxu0 %v159
    %2703 = vmatpush1.msra.mxu0 %v158
    %2704 = vmatprep.subr.mxu0 0.0
    %2705 = vmatpush1.msra.mxu0 0.0
    %2706 = vmatprep.subr.mxu0 0.0
    %2707 = vmatpush1.msra.mxu0 0.0
    %2708 = vmatprep.subr.mxu0 0.0
    %2709 = vmatpush1.msra.mxu0 0.0
    %2710 = vmatprep.subr.mxu0 0.0
    %2711 = vmatpush1.msra.mxu0 0.0
    %2712 = vmatprep.subr.mxu0 0.0
    %2713 = vmatpush1.msra.mxu0 0.0
    %2714 = vmatprep.subr.mxu0 0.0
    %2715 = vmatpush1.msra.mxu0 0.0
    %2716 = vmatprep.subr.mxu0 0.0
    %2717 = vmatpush1.msra.mxu0 0.0
    %2718 = vmatprep.subr.mxu0 0.0
    %2719 = vmatpush1.msra.mxu0 0.0
    %2720 = vmatprep.subr.mxu0 0.0
    %2721 = vmatpush1.msra.mxu0 0.0
    %2722 = vmatprep.subr.mxu0 0.0
    %2723 = vmatpush1.msra.mxu0 0.0
    %2724 = vmatprep.subr.mxu0 0.0
    %2725 = vmatpush1.msra.mxu0 0.0
    %2726 = vmatprep.subr.mxu0 0.0
    %2727 = vmatpush1.msra.mxu0 0.0
    %2728 = vmatprep.subr.mxu0 0.0
    %2729 = vmatpush1.msra.mxu0 0.0
    %2730 = vmatprep.subr.mxu0 0.0
    %2731 = vmatpush1.msra.mxu0 0.0
    %2732 = vmatprep.subr.mxu0 0.0
    %2733 = vmatpush1.msra.mxu0 0.0
    %2734 = vmatprep.subr.mxu0 0.0
    %2735 = vmatpush1.msra.mxu0 0.0
    %2736 = vmatprep.subr.mxu0 0.0
    %2737 = vmatpush1.msra.mxu0 0.0
    %2738 = vmatprep.subr.mxu0 0.0
    %2739 = vmatpush1.msra.mxu0 0.0
    %2740 = vmatprep.subr.mxu0 0.0
    %2741 = vmatpush1.msra.mxu0 0.0
    %2742 = vmatprep.subr.mxu0 0.0
    %2743 = vmatpush1.msra.mxu0 0.0
    %2744 = vmatprep.subr.mxu0 0.0
    %2745 = vmatpush1.msra.mxu0 0.0
    %2746 = vmatprep.subr.mxu0 0.0
    %2747 = vmatpush1.msra.mxu0 0.0
    %2748 = vmatprep.subr.mxu0 0.0
    %2749 = vmatpush1.msra.mxu0 0.0
    %2750 = vmatprep.subr.mxu0 0.0
    %2751 = vmatpush1.msra.mxu0 0.0
    %2752 = vmatprep.mubr.f32.mxu0 0.0
    %2753 = vmatmul.mubr.f32.gmra.mrb[0].mxu0 %v2346
    %v2754 = vpop.f32.mrb[0].mxu0
    %v2755 = vadd.f32 0.0, %v2754
    %v2756 = vpop.f32.mrb[0].mxu0
    %v2757 = vadd.f32 0.0, %v2756
    %2758 = vdwg.mxu0
    %2760 = vrot.lane.b32.xlu0 %v2687, 32
    %v2761 = vpop.permute.xlu0 %2760
    %v2762 = vsel %vm209, %v2761, 0
    %2764 = vmatprep.subr.mxu0 %v137
    %2765 = vmatpush1.msra.mxu0 %v136
    %2766 = vmatprep.subr.mxu0 %v139
    %2767 = vmatpush1.msra.mxu0 %v138
    %2768 = vmatprep.subr.mxu0 %v141
    %2769 = vmatpush1.msra.mxu0 %v140
    %2770 = vmatprep.subr.mxu0 %v143
    %2771 = vmatpush1.msra.mxu0 %v142
    %2772 = vmatprep.subr.mxu0 0.0
    %2773 = vmatpush1.msra.mxu0 0.0
    %2774 = vmatprep.subr.mxu0 0.0
    %2775 = vmatpush1.msra.mxu0 0.0
    %2776 = vmatprep.subr.mxu0 0.0
    %2777 = vmatpush1.msra.mxu0 0.0
    %2778 = vmatprep.subr.mxu0 0.0
    %2779 = vmatpush1.msra.mxu0 0.0
    %2780 = vmatprep.subr.mxu0 0.0
    %2781 = vmatpush1.msra.mxu0 0.0
    %2782 = vmatprep.subr.mxu0 0.0
    %2783 = vmatpush1.msra.mxu0 0.0
    %2784 = vmatprep.subr.mxu0 0.0
    %2785 = vmatpush1.msra.mxu0 0.0
    %2786 = vmatprep.subr.mxu0 0.0
    %2787 = vmatpush1.msra.mxu0 0.0
    %2788 = vmatprep.subr.mxu0 0.0
    %2789 = vmatpush1.msra.mxu0 0.0
    %2790 = vmatprep.subr.mxu0 0.0
    %2791 = vmatpush1.msra.mxu0 0.0
    %2792 = vmatprep.subr.mxu0 0.0
    %2793 = vmatpush1.msra.mxu0 0.0
    %2794 = vmatprep.subr.mxu0 0.0
    %2795 = vmatpush1.msra.mxu0 0.0
    %2796 = vmatprep.subr.mxu0 0.0
    %2797 = vmatpush1.msra.mxu0 0.0
    %2798 = vmatprep.subr.mxu0 0.0
    %2799 = vmatpush1.msra.mxu0 0.0
    %2800 = vmatprep.subr.mxu0 0.0
    %2801 = vmatpush1.msra.mxu0 0.0
    %2802 = vmatprep.subr.mxu0 0.0
    %2803 = vmatpush1.msra.mxu0 0.0
    %2804 = vmatprep.subr.mxu0 0.0
    %2805 = vmatpush1.msra.mxu0 0.0
    %2806 = vmatprep.subr.mxu0 0.0
    %2807 = vmatpush1.msra.mxu0 0.0
    %2808 = vmatprep.subr.mxu0 0.0
    %2809 = vmatpush1.msra.mxu0 0.0
    %2810 = vmatprep.subr.mxu0 0.0
    %2811 = vmatpush1.msra.mxu0 0.0
    %2812 = vmatprep.subr.mxu0 0.0
    %2813 = vmatpush1.msra.mxu0 0.0
    %2814 = vmatprep.subr.mxu0 0.0
    %2815 = vmatpush1.msra.mxu0 0.0
    %2816 = vmatprep.subr.mxu0 0.0
    %2817 = vmatpush1.msra.mxu0 0.0
    %2818 = vmatprep.subr.mxu0 0.0
    %2819 = vmatpush1.msra.mxu0 0.0
    %2820 = vmatprep.subr.mxu0 0.0
    %2821 = vmatpush1.msra.mxu0 0.0
    %2822 = vmatprep.subr.mxu0 0.0
    %2823 = vmatpush1.msra.mxu0 0.0
    %2824 = vmatprep.subr.mxu0 0.0
    %2825 = vmatpush1.msra.mxu0 0.0
    %2826 = vmatprep.subr.mxu0 0.0
    %2827 = vmatpush1.msra.mxu0 0.0
    %2828 = vmatprep.mubr.f32.mxu0 0.0
    %2829 = vmatmul.mubr.f32.gmra.mrb[0].mxu0 %v2762
    %v2830 = vpop.f32.mrb[0].mxu0
    %v2831 = vadd.f32 %v2755, %v2830
    %v2832 = vpop.f32.mrb[0].mxu0
    %v2833 = vadd.f32 %v2757, %v2832
    %2834 = vdwg.mxu0
    %v2835 = vadd.f32 %v2831, %v180
    %v2836 = vadd.f32 %v2833, %v184
    %v2837 = vxor.u32 %v2835, 2147483648
    %v2838 = vxor.u32 %v2836, 2147483648
    %v2839 = vmul.f32 %v2837, 1.442695
    %v2840 = vpow.pop %v2839
    %v2841 = vmul.f32 %v2838, 1.442695
    %v2842 = vpow.pop %v2841
    %v2843 = vadd.f32 %v2840, 1.0
    %v2844 = vadd.f32 %v2842, 1.0
    %v2845 = vrcp.pop %v2843
    %v2846 = vmul.f32 1.0, %v2845
    %v2847 = vrcp.pop %v2844
    %v2848 = vmul.f32 1.0, %v2847
    %v2849 = vmul.f32 %v2848, 2.0
    %v2850 = vsub.f32 %v2849, 1.0
    %v2851 = vmul.f32 %v2846, %v2340
    %v2852 = vmul.f32 %v2846, %v2850
    %2854 = vrot.lane.b32.xlu0 %v2852, 64
    %v2855 = vpop.permute.xlu0 %2854
    %v2857 = vadd.f32 %v2851, %v2855
    %v2858 = vtanh.pop %v2857
    %v2859 = vmul.f32 %v2848, %v2858
    %2861 = vrot.lane.b32.xlu0 %v2859, 64
    %v2862 = vpop.permute.xlu0 %2861
    %v2863 = vsel %vm618, %v2862, 0
    %2865 = vmatprep.subr.mxu0 0.0
    %2866 = vmatpush1.msra.mxu0 %v160
    %2867 = vmatprep.subr.mxu0 0.0
    %2868 = vmatpush1.msra.mxu0 %v161
    %2869 = vmatprep.subr.mxu0 0.0
    %2870 = vmatpush1.msra.mxu0 %v162
    %2871 = vmatprep.subr.mxu0 0.0
    %2872 = vmatpush1.msra.mxu0 %v163
    %2873 = vmatprep.subr.mxu0 0.0
    %2874 = vmatpush1.msra.mxu0 %v164
    %2875 = vmatprep.subr.mxu0 0.0
    %2876 = vmatpush1.msra.mxu0 %v165
    %2877 = vmatprep.subr.mxu0 0.0
    %2878 = vmatpush1.msra.mxu0 %v166
    %2879 = vmatprep.subr.mxu0 0.0
    %2880 = vmatpush1.msra.mxu0 %v167
    %2881 = vmatprep.subr.mxu0 0.0
    %2882 = vmatpush1.msra.mxu0 0.0
    %2883 = vmatprep.subr.mxu0 0.0
    %2884 = vmatpush1.msra.mxu0 0.0
    %2885 = vmatprep.subr.mxu0 0.0
    %2886 = vmatpush1.msra.mxu0 0.0
    %2887 = vmatprep.subr.mxu0 0.0
    %2888 = vmatpush1.msra.mxu0 0.0
    %2889 = vmatprep.subr.mxu0 0.0
    %2890 = vmatpush1.msra.mxu0 0.0
    %2891 = vmatprep.subr.mxu0 0.0
    %2892 = vmatpush1.msra.mxu0 0.0
    %2893 = vmatprep.subr.mxu0 0.0
    %2894 = vmatpush1.msra.mxu0 0.0
    %2895 = vmatprep.subr.mxu0 0.0
    %2896 = vmatpush1.msra.mxu0 0.0
    %2897 = vmatprep.subr.mxu0 0.0
    %2898 = vmatpush1.msra.mxu0 0.0
    %2899 = vmatprep.subr.mxu0 0.0
    %2900 = vmatpush1.msra.mxu0 0.0
    %2901 = vmatprep.subr.mxu0 0.0
    %2902 = vmatpush1.msra.mxu0 0.0
    %2903 = vmatprep.subr.mxu0 0.0
    %2904 = vmatpush1.msra.mxu0 0.0
    %2905 = vmatprep.subr.mxu0 0.0
    %2906 = vmatpush1.msra.mxu0 0.0
    %2907 = vmatprep.subr.mxu0 0.0
    %2908 = vmatpush1.msra.mxu0 0.0
    %2909 = vmatprep.subr.mxu0 0.0
    %2910 = vmatpush1.msra.mxu0 0.0
    %2911 = vmatprep.subr.mxu0 0.0
    %2912 = vmatpush1.msra.mxu0 0.0
    %2913 = vmatprep.subr.mxu0 0.0
    %2914 = vmatpush1.msra.mxu0 0.0
    %2915 = vmatprep.subr.mxu0 0.0
    %2916 = vmatpush1.msra.mxu0 0.0
    %2917 = vmatprep.subr.mxu0 0.0
    %2918 = vmatpush1.msra.mxu0 0.0
    %2919 = vmatprep.subr.mxu0 0.0
    %2920 = vmatpush1.msra.mxu0 0.0
    %2921 = vmatprep.subr.mxu0 0.0
    %2922 = vmatpush1.msra.mxu0 0.0
    %2923 = vmatprep.subr.mxu0 0.0
    %2924 = vmatpush1.msra.mxu0 0.0
    %2925 = vmatprep.subr.mxu0 0.0
    %2926 = vmatpush1.msra.mxu0 0.0
    %2927 = vmatprep.subr.mxu0 0.0
    %2928 = vmatpush1.msra.mxu0 0.0
    %2929 = vmatprep.mubr.f32.mxu0 0.0
    %2930 = vmatmul.mubr.f32.gmra.mrb[0].mxu0 %v2863
    %v2931 = vpop.f32.mrb[0].mxu0
    %v2932 = vadd.f32 %v192, %v2931
    %v2933 = vpop.f32.mrb[0].mxu0
    %2934 = vdwg.mxu0
    %s2935 = scalar_lea.vmem [#allocation14], 32
    %2936 = vst.msk [vmem:[%s2935] sm:$0xff] %vm209, %v2932
    %v2937 = vld [vmem:[#allocation2 + $0x28] sm:$0xff]
    %2938 = vmatprep.subr.mxu0 0.0
    %2939 = vmatpush1.msra.mxu0 %v124
    %2940 = vmatprep.subr.mxu0 0.0
    %2941 = vmatpush1.msra.mxu0 %v125
    %2942 = vmatprep.subr.mxu0 0.0
    %2943 = vmatpush1.msra.mxu0 %v126
    %2944 = vmatprep.subr.mxu0 0.0
    %2945 = vmatpush1.msra.mxu0 %v127
    %2946 = vmatprep.subr.mxu0 0.0
    %2947 = vmatpush1.msra.mxu0 0.0
    %2948 = vmatprep.subr.mxu0 0.0
    %2949 = vmatpush1.msra.mxu0 0.0
    %2950 = vmatprep.subr.mxu0 0.0
    %2951 = vmatpush1.msra.mxu0 0.0
    %2952 = vmatprep.subr.mxu0 0.0
    %2953 = vmatpush1.msra.mxu0 0.0
    %2954 = vmatprep.subr.mxu0 0.0
    %2955 = vmatpush1.msra.mxu0 0.0
    %2956 = vmatprep.subr.mxu0 0.0
    %2957 = vmatpush1.msra.mxu0 0.0
    %2958 = vmatprep.subr.mxu0 0.0
    %2959 = vmatpush1.msra.mxu0 0.0
    %2960 = vmatprep.subr.mxu0 0.0
    %2961 = vmatpush1.msra.mxu0 0.0
    %2962 = vmatprep.subr.mxu0 0.0
    %2963 = vmatpush1.msra.mxu0 0.0
    %2964 = vmatprep.subr.mxu0 0.0
    %2965 = vmatpush1.msra.mxu0 0.0
    %2966 = vmatprep.subr.mxu0 0.0
    %2967 = vmatpush1.msra.mxu0 0.0
    %2968 = vmatprep.subr.mxu0 0.0
    %2969 = vmatpush1.msra.mxu0 0.0
    %2970 = vmatprep.subr.mxu0 0.0
    %2971 = vmatpush1.msra.mxu0 0.0
    %2972 = vmatprep.subr.mxu0 0.0
    %2973 = vmatpush1.msra.mxu0 0.0
    %2974 = vmatprep.subr.mxu0 0.0
    %2975 = vmatpush1.msra.mxu0 0.0
    %2976 = vmatprep.subr.mxu0 0.0
    %2977 = vmatpush1.msra.mxu0 0.0
    %2978 = vmatprep.subr.mxu0 0.0
    %2979 = vmatpush1.msra.mxu0 0.0
    %2980 = vmatprep.subr.mxu0 0.0
    %2981 = vmatpush1.msra.mxu0 0.0
    %2982 = vmatprep.subr.mxu0 0.0
    %2983 = vmatpush1.msra.mxu0 0.0
    %2984 = vmatprep.subr.mxu0 0.0
    %2985 = vmatpush1.msra.mxu0 0.0
    %2986 = vmatprep.subr.mxu0 0.0
    %2987 = vmatpush1.msra.mxu0 0.0
    %2988 = vmatprep.subr.mxu0 0.0
    %2989 = vmatpush1.msra.mxu0 0.0
    %2990 = vmatprep.subr.mxu0 0.0
    %2991 = vmatpush1.msra.mxu0 0.0
    %2992 = vmatprep.subr.mxu0 0.0
    %2993 = vmatpush1.msra.mxu0 0.0
    %2994 = vmatprep.subr.mxu0 0.0
    %2995 = vmatpush1.msra.mxu0 0.0
    %2996 = vmatprep.subr.mxu0 0.0
    %2997 = vmatpush1.msra.mxu0 0.0
    %2998 = vmatprep.subr.mxu0 0.0
    %2999 = vmatpush1.msra.mxu0 0.0
    %3000 = vmatprep.subr.mxu0 0.0
    %3001 = vmatpush1.msra.mxu0 0.0
    %3002 = vmatprep.mubr.f32.mxu0 0.0
    %3003 = vmatmul.mubr.f32.gmra.mrb[0].mxu0 %v2590
    %v3004 = vpop.f32.mrb[0].mxu0
    %v3005 = vadd.f32 0.0, %v3004
    %v3006 = vpop.f32.mrb[0].mxu0
    %3007 = vdwg.mxu0
    %v3008 = vadd.f32 %v2937, %v3005
    %v3009 = vxor.u32 %v3008, 2147483648
    %v3010 = vmul.f32 %v3009, 1.442695
    %v3011 = vpow.pop %v3010
    %v3012 = vadd.f32 %v3011, 1.0
    %v3013 = vrcp.pop %v3012
    %v3014 = vmul.f32 1.0, %v3013
    %v3015 = vmul.f32 %v3014, 2.0
    %v3016 = vsub.f32 %v3015, 1.0
    %v3017 = vmul.f32 %v3014, %v2510
    %3019 = vrot.lane.b32.xlu0 %v3016, 64
    %v3020 = vpop.permute.xlu0 %3019
    %v3022 = vmul.f32 %v3014, %v3020
    %3024 = vrot.lane.b32.xlu0 %v3022, 32
    %v3025 = vpop.permute.xlu0 %3024
    %v3027 = vadd.f32 %v3017, %v3025
    %v3028 = vtanh.pop %v3027
    %3030 = vrot.lane.b32.xlu0 %v3028, 64
    %v3031 = vpop.permute.xlu0 %3030
    %v3033 = vmul.f32 %v3014, %v3031
    %3034 = vmatprep.subr.mxu0 0.0
    %3035 = vmatpush1.msra.mxu0 %v132
    %3036 = vmatprep.subr.mxu0 0.0
    %3037 = vmatpush1.msra.mxu0 %v133
    %3038 = vmatprep.subr.mxu0 0.0
    %3039 = vmatpush1.msra.mxu0 %v134
    %3040 = vmatprep.subr.mxu0 0.0
    %3041 = vmatpush1.msra.mxu0 %v135
    %3042 = vmatprep.subr.mxu0 0.0
    %3043 = vmatpush1.msra.mxu0 0.0
    %3044 = vmatprep.subr.mxu0 0.0
    %3045 = vmatpush1.msra.mxu0 0.0
    %3046 = vmatprep.subr.mxu0 0.0
    %3047 = vmatpush1.msra.mxu0 0.0
    %3048 = vmatprep.subr.mxu0 0.0
    %3049 = vmatpush1.msra.mxu0 0.0
    %3050 = vmatprep.subr.mxu0 0.0
    %3051 = vmatpush1.msra.mxu0 0.0
    %3052 = vmatprep.subr.mxu0 0.0
    %3053 = vmatpush1.msra.mxu0 0.0
    %3054 = vmatprep.subr.mxu0 0.0
    %3055 = vmatpush1.msra.mxu0 0.0
    %3056 = vmatprep.subr.mxu0 0.0
    %3057 = vmatpush1.msra.mxu0 0.0
    %3058 = vmatprep.subr.mxu0 0.0
    %3059 = vmatpush1.msra.mxu0 0.0
    %3060 = vmatprep.subr.mxu0 0.0
    %3061 = vmatpush1.msra.mxu0 0.0
    %3062 = vmatprep.subr.mxu0 0.0
    %3063 = vmatpush1.msra.mxu0 0.0
    %3064 = vmatprep.subr.mxu0 0.0
    %3065 = vmatpush1.msra.mxu0 0.0
    %3066 = vmatprep.subr.mxu0 0.0
    %3067 = vmatpush1.msra.mxu0 0.0
    %3068 = vmatprep.subr.mxu0 0.0
    %3069 = vmatpush1.msra.mxu0 0.0
    %3070 = vmatprep.subr.mxu0 0.0
    %3071 = vmatpush1.msra.mxu0 0.0
    %3072 = vmatprep.subr.mxu0 0.0
    %3073 = vmatpush1.msra.mxu0 0.0
    %3074 = vmatprep.subr.mxu0 0.0
    %3075 = vmatpush1.msra.mxu0 0.0
    %3076 = vmatprep.subr.mxu0 0.0
    %3077 = vmatpush1.msra.mxu0 0.0
    %3078 = vmatprep.subr.mxu0 0.0
    %3079 = vmatpush1.msra.mxu0 0.0
    %3080 = vmatprep.subr.mxu0 0.0
    %3081 = vmatpush1.msra.mxu0 0.0
    %3082 = vmatprep.subr.mxu0 0.0
    %3083 = vmatpush1.msra.mxu0 0.0
    %3084 = vmatprep.subr.mxu0 0.0
    %3085 = vmatpush1.msra.mxu0 0.0
    %3086 = vmatprep.subr.mxu0 0.0
    %3087 = vmatpush1.msra.mxu0 0.0
    %3088 = vmatprep.subr.mxu0 0.0
    %3089 = vmatpush1.msra.mxu0 0.0
    %3090 = vmatprep.subr.mxu0 0.0
    %3091 = vmatpush1.msra.mxu0 0.0
    %3092 = vmatprep.subr.mxu0 0.0
    %3093 = vmatpush1.msra.mxu0 0.0
    %3094 = vmatprep.subr.mxu0 0.0
    %3095 = vmatpush1.msra.mxu0 0.0
    %3096 = vmatprep.subr.mxu0 0.0
    %3097 = vmatpush1.msra.mxu0 0.0
    %3098 = vmatprep.mubr.f32.mxu0 0.0
    %3099 = vmatmul.mubr.f32.gmra.mrb[0].mxu0 %v2762
    %v3100 = vpop.f32.mrb[0].mxu0
    %v3101 = vadd.f32 0.0, %v3100
    %v3102 = vpop.f32.mrb[0].mxu0
    %3103 = vdwg.mxu0
    %3105 = vrot.lane.b32.xlu0 %v3033, 32
    %v3106 = vpop.permute.xlu0 %3105
    %v3107 = vsel %vm209, %v3106, 0
    %3109 = vmatprep.subr.mxu0 0.0
    %3110 = vmatpush1.msra.mxu0 %v128
    %3111 = vmatprep.subr.mxu0 0.0
    %3112 = vmatpush1.msra.mxu0 %v129
    %3113 = vmatprep.subr.mxu0 0.0
    %3114 = vmatpush1.msra.mxu0 %v130
    %3115 = vmatprep.subr.mxu0 0.0
    %3116 = vmatpush1.msra.mxu0 %v131
    %3117 = vmatprep.subr.mxu0 0.0
    %3118 = vmatpush1.msra.mxu0 0.0
    %3119 = vmatprep.subr.mxu0 0.0
    %3120 = vmatpush1.msra.mxu0 0.0
    %3121 = vmatprep.subr.mxu0 0.0
    %3122 = vmatpush1.msra.mxu0 0.0
    %3123 = vmatprep.subr.mxu0 0.0
    %3124 = vmatpush1.msra.mxu0 0.0
    %3125 = vmatprep.subr.mxu0 0.0
    %3126 = vmatpush1.msra.mxu0 0.0
    %3127 = vmatprep.subr.mxu0 0.0
    %3128 = vmatpush1.msra.mxu0 0.0
    %3129 = vmatprep.subr.mxu0 0.0
    %3130 = vmatpush1.msra.mxu0 0.0
    %3131 = vmatprep.subr.mxu0 0.0
    %3132 = vmatpush1.msra.mxu0 0.0
    %3133 = vmatprep.subr.mxu0 0.0
    %3134 = vmatpush1.msra.mxu0 0.0
    %3135 = vmatprep.subr.mxu0 0.0
    %3136 = vmatpush1.msra.mxu0 0.0
    %3137 = vmatprep.subr.mxu0 0.0
    %3138 = vmatpush1.msra.mxu0 0.0
    %3139 = vmatprep.subr.mxu0 0.0
    %3140 = vmatpush1.msra.mxu0 0.0
    %3141 = vmatprep.subr.mxu0 0.0
    %3142 = vmatpush1.msra.mxu0 0.0
    %3143 = vmatprep.subr.mxu0 0.0
    %3144 = vmatpush1.msra.mxu0 0.0
    %3145 = vmatprep.subr.mxu0 0.0
    %3146 = vmatpush1.msra.mxu0 0.0
    %3147 = vmatprep.subr.mxu0 0.0
    %3148 = vmatpush1.msra.mxu0 0.0
    %3149 = vmatprep.subr.mxu0 0.0
    %3150 = vmatpush1.msra.mxu0 0.0
    %3151 = vmatprep.subr.mxu0 0.0
    %3152 = vmatpush1.msra.mxu0 0.0
    %3153 = vmatprep.subr.mxu0 0.0
    %3154 = vmatpush1.msra.mxu0 0.0
    %3155 = vmatprep.subr.mxu0 0.0
    %3156 = vmatpush1.msra.mxu0 0.0
    %3157 = vmatprep.subr.mxu0 0.0
    %3158 = vmatpush1.msra.mxu0 0.0
    %3159 = vmatprep.subr.mxu0 0.0
    %3160 = vmatpush1.msra.mxu0 0.0
    %3161 = vmatprep.subr.mxu0 0.0
    %3162 = vmatpush1.msra.mxu0 0.0
    %3163 = vmatprep.subr.mxu0 0.0
    %3164 = vmatpush1.msra.mxu0 0.0
    %3165 = vmatprep.subr.mxu0 0.0
    %3166 = vmatpush1.msra.mxu0 0.0
    %3167 = vmatprep.subr.mxu0 0.0
    %3168 = vmatpush1.msra.mxu0 0.0
    %3169 = vmatprep.subr.mxu0 0.0
    %3170 = vmatpush1.msra.mxu0 0.0
    %3171 = vmatprep.subr.mxu0 0.0
    %3172 = vmatpush1.msra.mxu0 0.0
    %3173 = vmatprep.mubr.f32.mxu0 0.0
    %3174 = vmatmul.mubr.f32.gmra.mrb[0].mxu0 %v3107
    %v3175 = vpop.f32.mrb[0].mxu0
    %v3176 = vadd.f32 %v3101, %v3175
    %v3177 = vpop.f32.mrb[0].mxu0
    %3178 = vdwg.mxu0
    %v3179 = vadd.f32 %v3176, %v173
    %v3180 = vxor.u32 %v3179, 2147483648
    %v3181 = vmul.f32 %v3180, 1.442695
    %v3182 = vpow.pop %v3181
    %v3183 = vadd.f32 %v3182, 1.0
    %v3184 = vrcp.pop %v3183
    %v3185 = vmul.f32 1.0, %v3184
    %v3186 = vmul.f32 %v3185, 2.0
    %v3187 = vsub.f32 %v3186, 1.0
    %v3188 = vmul.f32 %v3185, %v2681
    %3190 = vrot.lane.b32.xlu0 %v3187, 64
    %v3191 = vpop.permute.xlu0 %3190
    %v3193 = vmul.f32 %v3185, %v3191
    %3195 = vrot.lane.b32.xlu0 %v3193, 32
    %v3196 = vpop.permute.xlu0 %3195
    %v3198 = vadd.f32 %v3188, %v3196
    %v3199 = vtanh.pop %v3198
    %3201 = vrot.lane.b32.xlu0 %v3199, 64
    %v3202 = vpop.permute.xlu0 %3201
    %v3204 = vmul.f32 %v3185, %v3202
    %3205 = vmatprep.subr.mxu0 %v145
    %3206 = vmatpush1.msra.mxu0 %v144
    %3207 = vmatprep.subr.mxu0 %v147
    %3208 = vmatpush1.msra.mxu0 %v146
    %3209 = vmatprep.subr.mxu0 %v149
    %3210 = vmatpush1.msra.mxu0 %v148
    %3211 = vmatprep.subr.mxu0 %v151
    %3212 = vmatpush1.msra.mxu0 %v150
    %3213 = vmatprep.subr.mxu0 %v153
    %3214 = vmatpush1.msra.mxu0 %v152
    %3215 = vmatprep.subr.mxu0 %v155
    %3216 = vmatpush1.msra.mxu0 %v154
    %3217 = vmatprep.subr.mxu0 %v157
    %3218 = vmatpush1.msra.mxu0 %v156
    %3219 = vmatprep.subr.mxu0 %v159
    %3220 = vmatpush1.msra.mxu0 %v158
    %3221 = vmatprep.subr.mxu0 0.0
    %3222 = vmatpush1.msra.mxu0 0.0
    %3223 = vmatprep.subr.mxu0 0.0
    %3224 = vmatpush1.msra.mxu0 0.0
    %3225 = vmatprep.subr.mxu0 0.0
    %3226 = vmatpush1.msra.mxu0 0.0
    %3227 = vmatprep.subr.mxu0 0.0
    %3228 = vmatpush1.msra.mxu0 0.0
    %3229 = vmatprep.subr.mxu0 0.0
    %3230 = vmatpush1.msra.mxu0 0.0
    %3231 = vmatprep.subr.mxu0 0.0
    %3232 = vmatpush1.msra.mxu0 0.0
    %3233 = vmatprep.subr.mxu0 0.0
    %3234 = vmatpush1.msra.mxu0 0.0
    %3235 = vmatprep.subr.mxu0 0.0
    %3236 = vmatpush1.msra.mxu0 0.0
    %3237 = vmatprep.subr.mxu0 0.0
    %3238 = vmatpush1.msra.mxu0 0.0
    %3239 = vmatprep.subr.mxu0 0.0
    %3240 = vmatpush1.msra.mxu0 0.0
    %3241 = vmatprep.subr.mxu0 0.0
    %3242 = vmatpush1.msra.mxu0 0.0
    %3243 = vmatprep.subr.mxu0 0.0
    %3244 = vmatpush1.msra.mxu0 0.0
    %3245 = vmatprep.subr.mxu0 0.0
    %3246 = vmatpush1.msra.mxu0 0.0
    %3247 = vmatprep.subr.mxu0 0.0
    %3248 = vmatpush1.msra.mxu0 0.0
    %3249 = vmatprep.subr.mxu0 0.0
    %3250 = vmatpush1.msra.mxu0 0.0
    %3251 = vmatprep.subr.mxu0 0.0
    %3252 = vmatpush1.msra.mxu0 0.0
    %3253 = vmatprep.subr.mxu0 0.0
    %3254 = vmatpush1.msra.mxu0 0.0
    %3255 = vmatprep.subr.mxu0 0.0
    %3256 = vmatpush1.msra.mxu0 0.0
    %3257 = vmatprep.subr.mxu0 0.0
    %3258 = vmatpush1.msra.mxu0 0.0
    %3259 = vmatprep.subr.mxu0 0.0
    %3260 = vmatpush1.msra.mxu0 0.0
    %3261 = vmatprep.subr.mxu0 0.0
    %3262 = vmatpush1.msra.mxu0 0.0
    %3263 = vmatprep.subr.mxu0 0.0
    %3264 = vmatpush1.msra.mxu0 0.0
    %3265 = vmatprep.subr.mxu0 0.0
    %3266 = vmatpush1.msra.mxu0 0.0
    %3267 = vmatprep.subr.mxu0 0.0
    %3268 = vmatpush1.msra.mxu0 0.0
    %3269 = vmatprep.mubr.f32.mxu0 0.0
    %3270 = vmatmul.mubr.f32.gmra.mrb[0].mxu0 %v2863
    %v3271 = vpop.f32.mrb[0].mxu0
    %v3272 = vadd.f32 0.0, %v3271
    %v3273 = vpop.f32.mrb[0].mxu0
    %v3274 = vadd.f32 0.0, %v3273
    %3275 = vdwg.mxu0
    %3277 = vrot.lane.b32.xlu0 %v3204, 32
    %v3278 = vpop.permute.xlu0 %3277
    %v3279 = vsel %vm209, %v3278, 0
    %3281 = vmatprep.subr.mxu0 %v137
    %3282 = vmatpush1.msra.mxu0 %v136
    %3283 = vmatprep.subr.mxu0 %v139
    %3284 = vmatpush1.msra.mxu0 %v138
    %3285 = vmatprep.subr.mxu0 %v141
    %3286 = vmatpush1.msra.mxu0 %v140
    %3287 = vmatprep.subr.mxu0 %v143
    %3288 = vmatpush1.msra.mxu0 %v142
    %3289 = vmatprep.subr.mxu0 0.0
    %3290 = vmatpush1.msra.mxu0 0.0
    %3291 = vmatprep.subr.mxu0 0.0
    %3292 = vmatpush1.msra.mxu0 0.0
    %3293 = vmatprep.subr.mxu0 0.0
    %3294 = vmatpush1.msra.mxu0 0.0
    %3295 = vmatprep.subr.mxu0 0.0
    %3296 = vmatpush1.msra.mxu0 0.0
    %3297 = vmatprep.subr.mxu0 0.0
    %3298 = vmatpush1.msra.mxu0 0.0
    %3299 = vmatprep.subr.mxu0 0.0
    %3300 = vmatpush1.msra.mxu0 0.0
    %3301 = vmatprep.subr.mxu0 0.0
    %3302 = vmatpush1.msra.mxu0 0.0
    %3303 = vmatprep.subr.mxu0 0.0
    %3304 = vmatpush1.msra.mxu0 0.0
    %3305 = vmatprep.subr.mxu0 0.0
    %3306 = vmatpush1.msra.mxu0 0.0
    %3307 = vmatprep.subr.mxu0 0.0
    %3308 = vmatpush1.msra.mxu0 0.0
    %3309 = vmatprep.subr.mxu0 0.0
    %3310 = vmatpush1.msra.mxu0 0.0
    %3311 = vmatprep.subr.mxu0 0.0
    %3312 = vmatpush1.msra.mxu0 0.0
    %3313 = vmatprep.subr.mxu0 0.0
    %3314 = vmatpush1.msra.mxu0 0.0
    %3315 = vmatprep.subr.mxu0 0.0
    %3316 = vmatpush1.msra.mxu0 0.0
    %3317 = vmatprep.subr.mxu0 0.0
    %3318 = vmatpush1.msra.mxu0 0.0
    %3319 = vmatprep.subr.mxu0 0.0
    %3320 = vmatpush1.msra.mxu0 0.0
    %3321 = vmatprep.subr.mxu0 0.0
    %3322 = vmatpush1.msra.mxu0 0.0
    %3323 = vmatprep.subr.mxu0 0.0
    %3324 = vmatpush1.msra.mxu0 0.0
    %3325 = vmatprep.subr.mxu0 0.0
    %3326 = vmatpush1.msra.mxu0 0.0
    %3327 = vmatprep.subr.mxu0 0.0
    %3328 = vmatpush1.msra.mxu0 0.0
    %3329 = vmatprep.subr.mxu0 0.0
    %3330 = vmatpush1.msra.mxu0 0.0
    %3331 = vmatprep.subr.mxu0 0.0
    %3332 = vmatpush1.msra.mxu0 0.0
    %3333 = vmatprep.subr.mxu0 0.0
    %3334 = vmatpush1.msra.mxu0 0.0
    %3335 = vmatprep.subr.mxu0 0.0
    %3336 = vmatpush1.msra.mxu0 0.0
    %3337 = vmatprep.subr.mxu0 0.0
    %3338 = vmatpush1.msra.mxu0 0.0
    %3339 = vmatprep.subr.mxu0 0.0
    %3340 = vmatpush1.msra.mxu0 0.0
    %3341 = vmatprep.subr.mxu0 0.0
    %3342 = vmatpush1.msra.mxu0 0.0
    %3343 = vmatprep.subr.mxu0 0.0
    %3344 = vmatpush1.msra.mxu0 0.0
    %3345 = vmatprep.mubr.f32.mxu0 0.0
    %3346 = vmatmul.mubr.f32.gmra.mrb[0].mxu0 %v3279
    %v3347 = vpop.f32.mrb[0].mxu0
    %v3348 = vadd.f32 %v3272, %v3347
    %v3349 = vpop.f32.mrb[0].mxu0
    %v3350 = vadd.f32 %v3274, %v3349
    %3351 = vdwg.mxu0
    %v3352 = vadd.f32 %v3348, %v180
    %v3353 = vadd.f32 %v3350, %v184
    %v3354 = vxor.u32 %v3352, 2147483648
    %v3355 = vxor.u32 %v3353, 2147483648
    %v3356 = vmul.f32 %v3354, 1.442695
    %v3357 = vpow.pop %v3356
    %v3358 = vmul.f32 %v3355, 1.442695
    %v3359 = vpow.pop %v3358
    %v3360 = vadd.f32 %v3357, 1.0
    %v3361 = vadd.f32 %v3359, 1.0
    %v3362 = vrcp.pop %v3360
    %v3363 = vmul.f32 1.0, %v3362
    %v3364 = vrcp.pop %v3361
    %v3365 = vmul.f32 1.0, %v3364
    %v3366 = vmul.f32 %v3365, 2.0
    %v3367 = vsub.f32 %v3366, 1.0
    %v3368 = vmul.f32 %v3363, %v2857
    %v3369 = vmul.f32 %v3363, %v3367
    %3371 = vrot.lane.b32.xlu0 %v3369, 64
    %v3372 = vpop.permute.xlu0 %3371
    %v3374 = vadd.f32 %v3368, %v3372
    %v3375 = vtanh.pop %v3374
    %v3376 = vmul.f32 %v3365, %v3375
    %3378 = vrot.lane.b32.xlu0 %v3376, 64
    %v3379 = vpop.permute.xlu0 %3378
    %v3380 = vsel %vm618, %v3379, 0
    %3382 = vmatprep.subr.mxu0 0.0
    %3383 = vmatpush1.msra.mxu0 %v160
    %3384 = vmatprep.subr.mxu0 0.0
    %3385 = vmatpush1.msra.mxu0 %v161
    %3386 = vmatprep.subr.mxu0 0.0
    %3387 = vmatpush1.msra.mxu0 %v162
    %3388 = vmatprep.subr.mxu0 0.0
    %3389 = vmatpush1.msra.mxu0 %v163
    %3390 = vmatprep.subr.mxu0 0.0
    %3391 = vmatpush1.msra.mxu0 %v164
    %3392 = vmatprep.subr.mxu0 0.0
    %3393 = vmatpush1.msra.mxu0 %v165
    %3394 = vmatprep.subr.mxu0 0.0
    %3395 = vmatpush1.msra.mxu0 %v166
    %3396 = vmatprep.subr.mxu0 0.0
    %3397 = vmatpush1.msra.mxu0 %v167
    %3398 = vmatprep.subr.mxu0 0.0
    %3399 = vmatpush1.msra.mxu0 0.0
    %3400 = vmatprep.subr.mxu0 0.0
    %3401 = vmatpush1.msra.mxu0 0.0
    %3402 = vmatprep.subr.mxu0 0.0
    %3403 = vmatpush1.msra.mxu0 0.0
    %3404 = vmatprep.subr.mxu0 0.0
    %3405 = vmatpush1.msra.mxu0 0.0
    %3406 = vmatprep.subr.mxu0 0.0
    %3407 = vmatpush1.msra.mxu0 0.0
    %3408 = vmatprep.subr.mxu0 0.0
    %3409 = vmatpush1.msra.mxu0 0.0
    %3410 = vmatprep.subr.mxu0 0.0
    %3411 = vmatpush1.msra.mxu0 0.0
    %3412 = vmatprep.subr.mxu0 0.0
    %3413 = vmatpush1.msra.mxu0 0.0
    %3414 = vmatprep.subr.mxu0 0.0
    %3415 = vmatpush1.msra.mxu0 0.0
    %3416 = vmatprep.subr.mxu0 0.0
    %3417 = vmatpush1.msra.mxu0 0.0
    %3418 = vmatprep.subr.mxu0 0.0
    %3419 = vmatpush1.msra.mxu0 0.0
    %3420 = vmatprep.subr.mxu0 0.0
    %3421 = vmatpush1.msra.mxu0 0.0
    %3422 = vmatprep.subr.mxu0 0.0
    %3423 = vmatpush1.msra.mxu0 0.0
    %3424 = vmatprep.subr.mxu0 0.0
    %3425 = vmatpush1.msra.mxu0 0.0
    %3426 = vmatprep.subr.mxu0 0.0
    %3427 = vmatpush1.msra.mxu0 0.0
    %3428 = vmatprep.subr.mxu0 0.0
    %3429 = vmatpush1.msra.mxu0 0.0
    %3430 = vmatprep.subr.mxu0 0.0
    %3431 = vmatpush1.msra.mxu0 0.0
    %3432 = vmatprep.subr.mxu0 0.0
    %3433 = vmatpush1.msra.mxu0 0.0
    %3434 = vmatprep.subr.mxu0 0.0
    %3435 = vmatpush1.msra.mxu0 0.0
    %3436 = vmatprep.subr.mxu0 0.0
    %3437 = vmatpush1.msra.mxu0 0.0
    %3438 = vmatprep.subr.mxu0 0.0
    %3439 = vmatpush1.msra.mxu0 0.0
    %3440 = vmatprep.subr.mxu0 0.0
    %3441 = vmatpush1.msra.mxu0 0.0
    %3442 = vmatprep.subr.mxu0 0.0
    %3443 = vmatpush1.msra.mxu0 0.0
    %3444 = vmatprep.subr.mxu0 0.0
    %3445 = vmatpush1.msra.mxu0 0.0
    %3446 = vmatprep.mubr.f32.mxu0 0.0
    %3447 = vmatmul.mubr.f32.gmra.mrb[0].mxu0 %v3380
    %v3448 = vpop.f32.mrb[0].mxu0
    %v3449 = vadd.f32 %v192, %v3448
    %v3450 = vpop.f32.mrb[0].mxu0
    %3451 = vdwg.mxu0
    %s3452 = scalar_lea.vmem [#allocation14], 40
    %3453 = vst.msk [vmem:[%s3452] sm:$0xff] %vm209, %v3449
    %v3454 = vld [vmem:[#allocation2 + $0x30] sm:$0xff]
    %3455 = vmatprep.subr.mxu0 0.0
    %3456 = vmatpush1.msra.mxu0 %v124
    %3457 = vmatprep.subr.mxu0 0.0
    %3458 = vmatpush1.msra.mxu0 %v125
    %3459 = vmatprep.subr.mxu0 0.0
    %3460 = vmatpush1.msra.mxu0 %v126
    %3461 = vmatprep.subr.mxu0 0.0
    %3462 = vmatpush1.msra.mxu0 %v127
    %3463 = vmatprep.subr.mxu0 0.0
    %3464 = vmatpush1.msra.mxu0 0.0
    %3465 = vmatprep.subr.mxu0 0.0
    %3466 = vmatpush1.msra.mxu0 0.0
    %3467 = vmatprep.subr.mxu0 0.0
    %3468 = vmatpush1.msra.mxu0 0.0
    %3469 = vmatprep.subr.mxu0 0.0
    %3470 = vmatpush1.msra.mxu0 0.0
    %3471 = vmatprep.subr.mxu0 0.0
    %3472 = vmatpush1.msra.mxu0 0.0
    %3473 = vmatprep.subr.mxu0 0.0
    %3474 = vmatpush1.msra.mxu0 0.0
    %3475 = vmatprep.subr.mxu0 0.0
    %3476 = vmatpush1.msra.mxu0 0.0
    %3477 = vmatprep.subr.mxu0 0.0
    %3478 = vmatpush1.msra.mxu0 0.0
    %3479 = vmatprep.subr.mxu0 0.0
    %3480 = vmatpush1.msra.mxu0 0.0
    %3481 = vmatprep.subr.mxu0 0.0
    %3482 = vmatpush1.msra.mxu0 0.0
    %3483 = vmatprep.subr.mxu0 0.0
    %3484 = vmatpush1.msra.mxu0 0.0
    %3485 = vmatprep.subr.mxu0 0.0
    %3486 = vmatpush1.msra.mxu0 0.0
    %3487 = vmatprep.subr.mxu0 0.0
    %3488 = vmatpush1.msra.mxu0 0.0
    %3489 = vmatprep.subr.mxu0 0.0
    %3490 = vmatpush1.msra.mxu0 0.0
    %3491 = vmatprep.subr.mxu0 0.0
    %3492 = vmatpush1.msra.mxu0 0.0
    %3493 = vmatprep.subr.mxu0 0.0
    %3494 = vmatpush1.msra.mxu0 0.0
    %3495 = vmatprep.subr.mxu0 0.0
    %3496 = vmatpush1.msra.mxu0 0.0
    %3497 = vmatprep.subr.mxu0 0.0
    %3498 = vmatpush1.msra.mxu0 0.0
    %3499 = vmatprep.subr.mxu0 0.0
    %3500 = vmatpush1.msra.mxu0 0.0
    %3501 = vmatprep.subr.mxu0 0.0
    %3502 = vmatpush1.msra.mxu0 0.0
    %3503 = vmatprep.subr.mxu0 0.0
    %3504 = vmatpush1.msra.mxu0 0.0
    %3505 = vmatprep.subr.mxu0 0.0
    %3506 = vmatpush1.msra.mxu0 0.0
    %3507 = vmatprep.subr.mxu0 0.0
    %3508 = vmatpush1.msra.mxu0 0.0
    %3509 = vmatprep.subr.mxu0 0.0
    %3510 = vmatpush1.msra.mxu0 0.0
    %3511 = vmatprep.subr.mxu0 0.0
    %3512 = vmatpush1.msra.mxu0 0.0
    %3513 = vmatprep.subr.mxu0 0.0
    %3514 = vmatpush1.msra.mxu0 0.0
    %3515 = vmatprep.subr.mxu0 0.0
    %3516 = vmatpush1.msra.mxu0 0.0
    %3517 = vmatprep.subr.mxu0 0.0
    %3518 = vmatpush1.msra.mxu0 0.0
    %3519 = vmatprep.mubr.f32.mxu0 0.0
    %3520 = vmatmul.mubr.f32.gmra.mrb[0].mxu0 %v3107
    %v3521 = vpop.f32.mrb[0].mxu0
    %v3522 = vadd.f32 0.0, %v3521
    %v3523 = vpop.f32.mrb[0].mxu0
    %3524 = vdwg.mxu0
    %v3525 = vadd.f32 %v3454, %v3522
    %v3526 = vxor.u32 %v3525, 2147483648
    %v3527 = vmul.f32 %v3526, 1.442695
    %v3528 = vpow.pop %v3527
    %v3529 = vadd.f32 %v3528, 1.0
    %v3530 = vrcp.pop %v3529
    %v3531 = vmul.f32 1.0, %v3530
    %v3532 = vmul.f32 %v3531, 2.0
    %v3533 = vsub.f32 %v3532, 1.0
    %v3534 = vmul.f32 %v3531, %v3027
    %3536 = vrot.lane.b32.xlu0 %v3533, 64
    %v3537 = vpop.permute.xlu0 %3536
    %v3539 = vmul.f32 %v3531, %v3537
    %3541 = vrot.lane.b32.xlu0 %v3539, 32
    %v3542 = vpop.permute.xlu0 %3541
    %v3544 = vadd.f32 %v3534, %v3542
    %v3545 = vtanh.pop %v3544
    %3547 = vrot.lane.b32.xlu0 %v3545, 64
    %v3548 = vpop.permute.xlu0 %3547
    %v3550 = vmul.f32 %v3531, %v3548
    %3551 = vmatprep.subr.mxu0 0.0
    %3552 = vmatpush1.msra.mxu0 %v132
    %3553 = vmatprep.subr.mxu0 0.0
    %3554 = vmatpush1.msra.mxu0 %v133
    %3555 = vmatprep.subr.mxu0 0.0
    %3556 = vmatpush1.msra.mxu0 %v134
    %3557 = vmatprep.subr.mxu0 0.0
    %3558 = vmatpush1.msra.mxu0 %v135
    %3559 = vmatprep.subr.mxu0 0.0
    %3560 = vmatpush1.msra.mxu0 0.0
    %3561 = vmatprep.subr.mxu0 0.0
    %3562 = vmatpush1.msra.mxu0 0.0
    %3563 = vmatprep.subr.mxu0 0.0
    %3564 = vmatpush1.msra.mxu0 0.0
    %3565 = vmatprep.subr.mxu0 0.0
    %3566 = vmatpush1.msra.mxu0 0.0
    %3567 = vmatprep.subr.mxu0 0.0
    %3568 = vmatpush1.msra.mxu0 0.0
    %3569 = vmatprep.subr.mxu0 0.0
    %3570 = vmatpush1.msra.mxu0 0.0
    %3571 = vmatprep.subr.mxu0 0.0
    %3572 = vmatpush1.msra.mxu0 0.0
    %3573 = vmatprep.subr.mxu0 0.0
    %3574 = vmatpush1.msra.mxu0 0.0
    %3575 = vmatprep.subr.mxu0 0.0
    %3576 = vmatpush1.msra.mxu0 0.0
    %3577 = vmatprep.subr.mxu0 0.0
    %3578 = vmatpush1.msra.mxu0 0.0
    %3579 = vmatprep.subr.mxu0 0.0
    %3580 = vmatpush1.msra.mxu0 0.0
    %3581 = vmatprep.subr.mxu0 0.0
    %3582 = vmatpush1.msra.mxu0 0.0
    %3583 = vmatprep.subr.mxu0 0.0
    %3584 = vmatpush1.msra.mxu0 0.0
    %3585 = vmatprep.subr.mxu0 0.0
    %3586 = vmatpush1.msra.mxu0 0.0
    %3587 = vmatprep.subr.mxu0 0.0
    %3588 = vmatpush1.msra.mxu0 0.0
    %3589 = vmatprep.subr.mxu0 0.0
    %3590 = vmatpush1.msra.mxu0 0.0
    %3591 = vmatprep.subr.mxu0 0.0
    %3592 = vmatpush1.msra.mxu0 0.0
    %3593 = vmatprep.subr.mxu0 0.0
    %3594 = vmatpush1.msra.mxu0 0.0
    %3595 = vmatprep.subr.mxu0 0.0
    %3596 = vmatpush1.msra.mxu0 0.0
    %3597 = vmatprep.subr.mxu0 0.0
    %3598 = vmatpush1.msra.mxu0 0.0
    %3599 = vmatprep.subr.mxu0 0.0
    %3600 = vmatpush1.msra.mxu0 0.0
    %3601 = vmatprep.subr.mxu0 0.0
    %3602 = vmatpush1.msra.mxu0 0.0
    %3603 = vmatprep.subr.mxu0 0.0
    %3604 = vmatpush1.msra.mxu0 0.0
    %3605 = vmatprep.subr.mxu0 0.0
    %3606 = vmatpush1.msra.mxu0 0.0
    %3607 = vmatprep.subr.mxu0 0.0
    %3608 = vmatpush1.msra.mxu0 0.0
    %3609 = vmatprep.subr.mxu0 0.0
    %3610 = vmatpush1.msra.mxu0 0.0
    %3611 = vmatprep.subr.mxu0 0.0
    %3612 = vmatpush1.msra.mxu0 0.0
    %3613 = vmatprep.subr.mxu0 0.0
    %3614 = vmatpush1.msra.mxu0 0.0
    %3615 = vmatprep.mubr.f32.mxu0 0.0
    %3616 = vmatmul.mubr.f32.gmra.mrb[0].mxu0 %v3279
    %v3617 = vpop.f32.mrb[0].mxu0
    %v3618 = vadd.f32 0.0, %v3617
    %v3619 = vpop.f32.mrb[0].mxu0
    %3620 = vdwg.mxu0
    %3622 = vrot.lane.b32.xlu0 %v3550, 32
    %v3623 = vpop.permute.xlu0 %3622
    %v3624 = vsel %vm209, %v3623, 0
    %3626 = vmatprep.subr.mxu0 0.0
    %3627 = vmatpush1.msra.mxu0 %v128
    %3628 = vmatprep.subr.mxu0 0.0
    %3629 = vmatpush1.msra.mxu0 %v129
    %3630 = vmatprep.subr.mxu0 0.0
    %3631 = vmatpush1.msra.mxu0 %v130
    %3632 = vmatprep.subr.mxu0 0.0
    %3633 = vmatpush1.msra.mxu0 %v131
    %3634 = vmatprep.subr.mxu0 0.0
    %3635 = vmatpush1.msra.mxu0 0.0
    %3636 = vmatprep.subr.mxu0 0.0
    %3637 = vmatpush1.msra.mxu0 0.0
    %3638 = vmatprep.subr.mxu0 0.0
    %3639 = vmatpush1.msra.mxu0 0.0
    %3640 = vmatprep.subr.mxu0 0.0
    %3641 = vmatpush1.msra.mxu0 0.0
    %3642 = vmatprep.subr.mxu0 0.0
    %3643 = vmatpush1.msra.mxu0 0.0
    %3644 = vmatprep.subr.mxu0 0.0
    %3645 = vmatpush1.msra.mxu0 0.0
    %3646 = vmatprep.subr.mxu0 0.0
    %3647 = vmatpush1.msra.mxu0 0.0
    %3648 = vmatprep.subr.mxu0 0.0
    %3649 = vmatpush1.msra.mxu0 0.0
    %3650 = vmatprep.subr.mxu0 0.0
    %3651 = vmatpush1.msra.mxu0 0.0
    %3652 = vmatprep.subr.mxu0 0.0
    %3653 = vmatpush1.msra.mxu0 0.0
    %3654 = vmatprep.subr.mxu0 0.0
    %3655 = vmatpush1.msra.mxu0 0.0
    %3656 = vmatprep.subr.mxu0 0.0
    %3657 = vmatpush1.msra.mxu0 0.0
    %3658 = vmatprep.subr.mxu0 0.0
    %3659 = vmatpush1.msra.mxu0 0.0
    %3660 = vmatprep.subr.mxu0 0.0
    %3661 = vmatpush1.msra.mxu0 0.0
    %3662 = vmatprep.subr.mxu0 0.0
    %3663 = vmatpush1.msra.mxu0 0.0
    %3664 = vmatprep.subr.mxu0 0.0
    %3665 = vmatpush1.msra.mxu0 0.0
    %3666 = vmatprep.subr.mxu0 0.0
    %3667 = vmatpush1.msra.mxu0 0.0
    %3668 = vmatprep.subr.mxu0 0.0
    %3669 = vmatpush1.msra.mxu0 0.0
    %3670 = vmatprep.subr.mxu0 0.0
    %3671 = vmatpush1.msra.mxu0 0.0
    %3672 = vmatprep.subr.mxu0 0.0
    %3673 = vmatpush1.msra.mxu0 0.0
    %3674 = vmatprep.subr.mxu0 0.0
    %3675 = vmatpush1.msra.mxu0 0.0
    %3676 = vmatprep.subr.mxu0 0.0
    %3677 = vmatpush1.msra.mxu0 0.0
    %3678 = vmatprep.subr.mxu0 0.0
    %3679 = vmatpush1.msra.mxu0 0.0
    %3680 = vmatprep.subr.mxu0 0.0
    %3681 = vmatpush1.msra.mxu0 0.0
    %3682 = vmatprep.subr.mxu0 0.0
    %3683 = vmatpush1.msra.mxu0 0.0
    %3684 = vmatprep.subr.mxu0 0.0
    %3685 = vmatpush1.msra.mxu0 0.0
    %3686 = vmatprep.subr.mxu0 0.0
    %3687 = vmatpush1.msra.mxu0 0.0
    %3688 = vmatprep.subr.mxu0 0.0
    %3689 = vmatpush1.msra.mxu0 0.0
    %3690 = vmatprep.mubr.f32.mxu0 0.0
    %3691 = vmatmul.mubr.f32.gmra.mrb[0].mxu0 %v3624
    %v3692 = vpop.f32.mrb[0].mxu0
    %v3693 = vadd.f32 %v3618, %v3692
    %v3694 = vpop.f32.mrb[0].mxu0
    %3695 = vdwg.mxu0
    %v3696 = vadd.f32 %v3693, %v173
    %v3697 = vxor.u32 %v3696, 2147483648
    %v3698 = vmul.f32 %v3697, 1.442695
    %v3699 = vpow.pop %v3698
    %v3700 = vadd.f32 %v3699, 1.0
    %v3701 = vrcp.pop %v3700
    %v3702 = vmul.f32 1.0, %v3701
    %v3703 = vmul.f32 %v3702, 2.0
    %v3704 = vsub.f32 %v3703, 1.0
    %v3705 = vmul.f32 %v3702, %v3198
    %3707 = vrot.lane.b32.xlu0 %v3704, 64
    %v3708 = vpop.permute.xlu0 %3707
    %v3710 = vmul.f32 %v3702, %v3708
    %3712 = vrot.lane.b32.xlu0 %v3710, 32
    %v3713 = vpop.permute.xlu0 %3712
    %v3715 = vadd.f32 %v3705, %v3713
    %v3716 = vtanh.pop %v3715
    %3718 = vrot.lane.b32.xlu0 %v3716, 64
    %v3719 = vpop.permute.xlu0 %3718
    %v3721 = vmul.f32 %v3702, %v3719
    %3722 = vmatprep.subr.mxu0 %v145
    %3723 = vmatpush1.msra.mxu0 %v144
    %3724 = vmatprep.subr.mxu0 %v147
    %3725 = vmatpush1.msra.mxu0 %v146
    %3726 = vmatprep.subr.mxu0 %v149
    %3727 = vmatpush1.msra.mxu0 %v148
    %3728 = vmatprep.subr.mxu0 %v151
    %3729 = vmatpush1.msra.mxu0 %v150
    %3730 = vmatprep.subr.mxu0 %v153
    %3731 = vmatpush1.msra.mxu0 %v152
    %3732 = vmatprep.subr.mxu0 %v155
    %3733 = vmatpush1.msra.mxu0 %v154
    %3734 = vmatprep.subr.mxu0 %v157
    %3735 = vmatpush1.msra.mxu0 %v156
    %3736 = vmatprep.subr.mxu0 %v159
    %3737 = vmatpush1.msra.mxu0 %v158
    %3738 = vmatprep.subr.mxu0 0.0
    %3739 = vmatpush1.msra.mxu0 0.0
    %3740 = vmatprep.subr.mxu0 0.0
    %3741 = vmatpush1.msra.mxu0 0.0
    %3742 = vmatprep.subr.mxu0 0.0
    %3743 = vmatpush1.msra.mxu0 0.0
    %3744 = vmatprep.subr.mxu0 0.0
    %3745 = vmatpush1.msra.mxu0 0.0
    %3746 = vmatprep.subr.mxu0 0.0
    %3747 = vmatpush1.msra.mxu0 0.0
    %3748 = vmatprep.subr.mxu0 0.0
    %3749 = vmatpush1.msra.mxu0 0.0
    %3750 = vmatprep.subr.mxu0 0.0
    %3751 = vmatpush1.msra.mxu0 0.0
    %3752 = vmatprep.subr.mxu0 0.0
    %3753 = vmatpush1.msra.mxu0 0.0
    %3754 = vmatprep.subr.mxu0 0.0
    %3755 = vmatpush1.msra.mxu0 0.0
    %3756 = vmatprep.subr.mxu0 0.0
    %3757 = vmatpush1.msra.mxu0 0.0
    %3758 = vmatprep.subr.mxu0 0.0
    %3759 = vmatpush1.msra.mxu0 0.0
    %3760 = vmatprep.subr.mxu0 0.0
    %3761 = vmatpush1.msra.mxu0 0.0
    %3762 = vmatprep.subr.mxu0 0.0
    %3763 = vmatpush1.msra.mxu0 0.0
    %3764 = vmatprep.subr.mxu0 0.0
    %3765 = vmatpush1.msra.mxu0 0.0
    %3766 = vmatprep.subr.mxu0 0.0
    %3767 = vmatpush1.msra.mxu0 0.0
    %3768 = vmatprep.subr.mxu0 0.0
    %3769 = vmatpush1.msra.mxu0 0.0
    %3770 = vmatprep.subr.mxu0 0.0
    %3771 = vmatpush1.msra.mxu0 0.0
    %3772 = vmatprep.subr.mxu0 0.0
    %3773 = vmatpush1.msra.mxu0 0.0
    %3774 = vmatprep.subr.mxu0 0.0
    %3775 = vmatpush1.msra.mxu0 0.0
    %3776 = vmatprep.subr.mxu0 0.0
    %3777 = vmatpush1.msra.mxu0 0.0
    %3778 = vmatprep.subr.mxu0 0.0
    %3779 = vmatpush1.msra.mxu0 0.0
    %3780 = vmatprep.subr.mxu0 0.0
    %3781 = vmatpush1.msra.mxu0 0.0
    %3782 = vmatprep.subr.mxu0 0.0
    %3783 = vmatpush1.msra.mxu0 0.0
    %3784 = vmatprep.subr.mxu0 0.0
    %3785 = vmatpush1.msra.mxu0 0.0
    %3786 = vmatprep.mubr.f32.mxu0 0.0
    %3787 = vmatmul.mubr.f32.gmra.mrb[0].mxu0 %v3380
    %v3788 = vpop.f32.mrb[0].mxu0
    %v3789 = vadd.f32 0.0, %v3788
    %v3790 = vpop.f32.mrb[0].mxu0
    %v3791 = vadd.f32 0.0, %v3790
    %3792 = vdwg.mxu0
    %3794 = vrot.lane.b32.xlu0 %v3721, 32
    %v3795 = vpop.permute.xlu0 %3794
    %v3796 = vsel %vm209, %v3795, 0
    %3798 = vmatprep.subr.mxu0 %v137
    %3799 = vmatpush1.msra.mxu0 %v136
    %3800 = vmatprep.subr.mxu0 %v139
    %3801 = vmatpush1.msra.mxu0 %v138
    %3802 = vmatprep.subr.mxu0 %v141
    %3803 = vmatpush1.msra.mxu0 %v140
    %3804 = vmatprep.subr.mxu0 %v143
    %3805 = vmatpush1.msra.mxu0 %v142
    %3806 = vmatprep.subr.mxu0 0.0
    %3807 = vmatpush1.msra.mxu0 0.0
    %3808 = vmatprep.subr.mxu0 0.0
    %3809 = vmatpush1.msra.mxu0 0.0
    %3810 = vmatprep.subr.mxu0 0.0
    %3811 = vmatpush1.msra.mxu0 0.0
    %3812 = vmatprep.subr.mxu0 0.0
    %3813 = vmatpush1.msra.mxu0 0.0
    %3814 = vmatprep.subr.mxu0 0.0
    %3815 = vmatpush1.msra.mxu0 0.0
    %3816 = vmatprep.subr.mxu0 0.0
    %3817 = vmatpush1.msra.mxu0 0.0
    %3818 = vmatprep.subr.mxu0 0.0
    %3819 = vmatpush1.msra.mxu0 0.0
    %3820 = vmatprep.subr.mxu0 0.0
    %3821 = vmatpush1.msra.mxu0 0.0
    %3822 = vmatprep.subr.mxu0 0.0
    %3823 = vmatpush1.msra.mxu0 0.0
    %3824 = vmatprep.subr.mxu0 0.0
    %3825 = vmatpush1.msra.mxu0 0.0
    %3826 = vmatprep.subr.mxu0 0.0
    %3827 = vmatpush1.msra.mxu0 0.0
    %3828 = vmatprep.subr.mxu0 0.0
    %3829 = vmatpush1.msra.mxu0 0.0
    %3830 = vmatprep.subr.mxu0 0.0
    %3831 = vmatpush1.msra.mxu0 0.0
    %3832 = vmatprep.subr.mxu0 0.0
    %3833 = vmatpush1.msra.mxu0 0.0
    %3834 = vmatprep.subr.mxu0 0.0
    %3835 = vmatpush1.msra.mxu0 0.0
    %3836 = vmatprep.subr.mxu0 0.0
    %3837 = vmatpush1.msra.mxu0 0.0
    %3838 = vmatprep.subr.mxu0 0.0
    %3839 = vmatpush1.msra.mxu0 0.0
    %3840 = vmatprep.subr.mxu0 0.0
    %3841 = vmatpush1.msra.mxu0 0.0
    %3842 = vmatprep.subr.mxu0 0.0
    %3843 = vmatpush1.msra.mxu0 0.0
    %3844 = vmatprep.subr.mxu0 0.0
    %3845 = vmatpush1.msra.mxu0 0.0
    %3846 = vmatprep.subr.mxu0 0.0
    %3847 = vmatpush1.msra.mxu0 0.0
    %3848 = vmatprep.subr.mxu0 0.0
    %3849 = vmatpush1.msra.mxu0 0.0
    %3850 = vmatprep.subr.mxu0 0.0
    %3851 = vmatpush1.msra.mxu0 0.0
    %3852 = vmatprep.subr.mxu0 0.0
    %3853 = vmatpush1.msra.mxu0 0.0
    %3854 = vmatprep.subr.mxu0 0.0
    %3855 = vmatpush1.msra.mxu0 0.0
    %3856 = vmatprep.subr.mxu0 0.0
    %3857 = vmatpush1.msra.mxu0 0.0
    %3858 = vmatprep.subr.mxu0 0.0
    %3859 = vmatpush1.msra.mxu0 0.0
    %3860 = vmatprep.subr.mxu0 0.0
    %3861 = vmatpush1.msra.mxu0 0.0
    %3862 = vmatprep.mubr.f32.mxu0 0.0
    %3863 = vmatmul.mubr.f32.gmra.mrb[0].mxu0 %v3796
    %v3864 = vpop.f32.mrb[0].mxu0
    %v3865 = vadd.f32 %v3789, %v3864
    %v3866 = vpop.f32.mrb[0].mxu0
    %v3867 = vadd.f32 %v3791, %v3866
    %3868 = vdwg.mxu0
    %v3869 = vadd.f32 %v3865, %v180
    %v3870 = vadd.f32 %v3867, %v184
    %v3871 = vxor.u32 %v3869, 2147483648
    %v3872 = vxor.u32 %v3870, 2147483648
    %v3873 = vmul.f32 %v3871, 1.442695
    %v3874 = vpow.pop %v3873
    %v3875 = vmul.f32 %v3872, 1.442695
    %v3876 = vpow.pop %v3875
    %v3877 = vadd.f32 %v3874, 1.0
    %v3878 = vadd.f32 %v3876, 1.0
    %v3879 = vrcp.pop %v3877
    %v3880 = vmul.f32 1.0, %v3879
    %v3881 = vrcp.pop %v3878
    %v3882 = vmul.f32 1.0, %v3881
    %v3883 = vmul.f32 %v3882, 2.0
    %v3884 = vsub.f32 %v3883, 1.0
    %v3885 = vmul.f32 %v3880, %v3374
    %v3886 = vmul.f32 %v3880, %v3884
    %3888 = vrot.lane.b32.xlu0 %v3886, 64
    %v3889 = vpop.permute.xlu0 %3888
    %v3891 = vadd.f32 %v3885, %v3889
    %v3892 = vtanh.pop %v3891
    %v3893 = vmul.f32 %v3882, %v3892
    %3895 = vrot.lane.b32.xlu0 %v3893, 64
    %v3896 = vpop.permute.xlu0 %3895
    %v3897 = vsel %vm618, %v3896, 0
    %3899 = vmatprep.subr.mxu0 0.0
    %3900 = vmatpush1.msra.mxu0 %v160
    %3901 = vmatprep.subr.mxu0 0.0
    %3902 = vmatpush1.msra.mxu0 %v161
    %3903 = vmatprep.subr.mxu0 0.0
    %3904 = vmatpush1.msra.mxu0 %v162
    %3905 = vmatprep.subr.mxu0 0.0
    %3906 = vmatpush1.msra.mxu0 %v163
    %3907 = vmatprep.subr.mxu0 0.0
    %3908 = vmatpush1.msra.mxu0 %v164
    %3909 = vmatprep.subr.mxu0 0.0
    %3910 = vmatpush1.msra.mxu0 %v165
    %3911 = vmatprep.subr.mxu0 0.0
    %3912 = vmatpush1.msra.mxu0 %v166
    %3913 = vmatprep.subr.mxu0 0.0
    %3914 = vmatpush1.msra.mxu0 %v167
    %3915 = vmatprep.subr.mxu0 0.0
    %3916 = vmatpush1.msra.mxu0 0.0
    %3917 = vmatprep.subr.mxu0 0.0
    %3918 = vmatpush1.msra.mxu0 0.0
    %3919 = vmatprep.subr.mxu0 0.0
    %3920 = vmatpush1.msra.mxu0 0.0
    %3921 = vmatprep.subr.mxu0 0.0
    %3922 = vmatpush1.msra.mxu0 0.0
    %3923 = vmatprep.subr.mxu0 0.0
    %3924 = vmatpush1.msra.mxu0 0.0
    %3925 = vmatprep.subr.mxu0 0.0
    %3926 = vmatpush1.msra.mxu0 0.0
    %3927 = vmatprep.subr.mxu0 0.0
    %3928 = vmatpush1.msra.mxu0 0.0
    %3929 = vmatprep.subr.mxu0 0.0
    %3930 = vmatpush1.msra.mxu0 0.0
    %3931 = vmatprep.subr.mxu0 0.0
    %3932 = vmatpush1.msra.mxu0 0.0
    %3933 = vmatprep.subr.mxu0 0.0
    %3934 = vmatpush1.msra.mxu0 0.0
    %3935 = vmatprep.subr.mxu0 0.0
    %3936 = vmatpush1.msra.mxu0 0.0
    %3937 = vmatprep.subr.mxu0 0.0
    %3938 = vmatpush1.msra.mxu0 0.0
    %3939 = vmatprep.subr.mxu0 0.0
    %3940 = vmatpush1.msra.mxu0 0.0
    %3941 = vmatprep.subr.mxu0 0.0
    %3942 = vmatpush1.msra.mxu0 0.0
    %3943 = vmatprep.subr.mxu0 0.0
    %3944 = vmatpush1.msra.mxu0 0.0
    %3945 = vmatprep.subr.mxu0 0.0
    %3946 = vmatpush1.msra.mxu0 0.0
    %3947 = vmatprep.subr.mxu0 0.0
    %3948 = vmatpush1.msra.mxu0 0.0
    %3949 = vmatprep.subr.mxu0 0.0
    %3950 = vmatpush1.msra.mxu0 0.0
    %3951 = vmatprep.subr.mxu0 0.0
    %3952 = vmatpush1.msra.mxu0 0.0
    %3953 = vmatprep.subr.mxu0 0.0
    %3954 = vmatpush1.msra.mxu0 0.0
    %3955 = vmatprep.subr.mxu0 0.0
    %3956 = vmatpush1.msra.mxu0 0.0
    %3957 = vmatprep.subr.mxu0 0.0
    %3958 = vmatpush1.msra.mxu0 0.0
    %3959 = vmatprep.subr.mxu0 0.0
    %3960 = vmatpush1.msra.mxu0 0.0
    %3961 = vmatprep.subr.mxu0 0.0
    %3962 = vmatpush1.msra.mxu0 0.0
    %3963 = vmatprep.mubr.f32.mxu0 0.0
    %3964 = vmatmul.mubr.f32.gmra.mrb[0].mxu0 %v3897
    %v3965 = vpop.f32.mrb[0].mxu0
    %v3966 = vadd.f32 %v192, %v3965
    %v3967 = vpop.f32.mrb[0].mxu0
    %3968 = vdwg.mxu0
    %s3969 = scalar_lea.vmem [#allocation14], 48
    %3970 = vst.msk [vmem:[%s3969] sm:$0xff] %vm209, %v3966
    %v3971 = vld [vmem:[#allocation2 + $0x38] sm:$0xff]
    %3972 = vmatprep.subr.mxu0 0.0
    %3973 = vmatpush1.msra.mxu0 %v124
    %3974 = vmatprep.subr.mxu0 0.0
    %3975 = vmatpush1.msra.mxu0 %v125
    %3976 = vmatprep.subr.mxu0 0.0
    %3977 = vmatpush1.msra.mxu0 %v126
    %3978 = vmatprep.subr.mxu0 0.0
    %3979 = vmatpush1.msra.mxu0 %v127
    %3980 = vmatprep.subr.mxu0 0.0
    %3981 = vmatpush1.msra.mxu0 0.0
    %3982 = vmatprep.subr.mxu0 0.0
    %3983 = vmatpush1.msra.mxu0 0.0
    %3984 = vmatprep.subr.mxu0 0.0
    %3985 = vmatpush1.msra.mxu0 0.0
    %3986 = vmatprep.subr.mxu0 0.0
    %3987 = vmatpush1.msra.mxu0 0.0
    %3988 = vmatprep.subr.mxu0 0.0
    %3989 = vmatpush1.msra.mxu0 0.0
    %3990 = vmatprep.subr.mxu0 0.0
    %3991 = vmatpush1.msra.mxu0 0.0
    %3992 = vmatprep.subr.mxu0 0.0
    %3993 = vmatpush1.msra.mxu0 0.0
    %3994 = vmatprep.subr.mxu0 0.0
    %3995 = vmatpush1.msra.mxu0 0.0
    %3996 = vmatprep.subr.mxu0 0.0
    %3997 = vmatpush1.msra.mxu0 0.0
    %3998 = vmatprep.subr.mxu0 0.0
    %3999 = vmatpush1.msra.mxu0 0.0
    %4000 = vmatprep.subr.mxu0 0.0
    %4001 = vmatpush1.msra.mxu0 0.0
    %4002 = vmatprep.subr.mxu0 0.0
    %4003 = vmatpush1.msra.mxu0 0.0
    %4004 = vmatprep.subr.mxu0 0.0
    %4005 = vmatpush1.msra.mxu0 0.0
    %4006 = vmatprep.subr.mxu0 0.0
    %4007 = vmatpush1.msra.mxu0 0.0
    %4008 = vmatprep.subr.mxu0 0.0
    %4009 = vmatpush1.msra.mxu0 0.0
    %4010 = vmatprep.subr.mxu0 0.0
    %4011 = vmatpush1.msra.mxu0 0.0
    %4012 = vmatprep.subr.mxu0 0.0
    %4013 = vmatpush1.msra.mxu0 0.0
    %4014 = vmatprep.subr.mxu0 0.0
    %4015 = vmatpush1.msra.mxu0 0.0
    %4016 = vmatprep.subr.mxu0 0.0
    %4017 = vmatpush1.msra.mxu0 0.0
    %4018 = vmatprep.subr.mxu0 0.0
    %4019 = vmatpush1.msra.mxu0 0.0
    %4020 = vmatprep.subr.mxu0 0.0
    %4021 = vmatpush1.msra.mxu0 0.0
    %4022 = vmatprep.subr.mxu0 0.0
    %4023 = vmatpush1.msra.mxu0 0.0
    %4024 = vmatprep.subr.mxu0 0.0
    %4025 = vmatpush1.msra.mxu0 0.0
    %4026 = vmatprep.subr.mxu0 0.0
    %4027 = vmatpush1.msra.mxu0 0.0
    %4028 = vmatprep.subr.mxu0 0.0
    %4029 = vmatpush1.msra.mxu0 0.0
    %4030 = vmatprep.subr.mxu0 0.0
    %4031 = vmatpush1.msra.mxu0 0.0
    %4032 = vmatprep.subr.mxu0 0.0
    %4033 = vmatpush1.msra.mxu0 0.0
    %4034 = vmatprep.subr.mxu0 0.0
    %4035 = vmatpush1.msra.mxu0 0.0
    %4036 = vmatprep.mubr.f32.mxu0 0.0
    %4037 = vmatmul.mubr.f32.gmra.mrb[0].mxu0 %v3624
    %v4038 = vpop.f32.mrb[0].mxu0
    %v4039 = vadd.f32 0.0, %v4038
    %v4040 = vpop.f32.mrb[0].mxu0
    %4041 = vdwg.mxu0
    %v4042 = vadd.f32 %v3971, %v4039
    %v4043 = vxor.u32 %v4042, 2147483648
    %v4044 = vmul.f32 %v4043, 1.442695
    %v4045 = vpow.pop %v4044
    %v4046 = vadd.f32 %v4045, 1.0
    %v4047 = vrcp.pop %v4046
    %v4048 = vmul.f32 1.0, %v4047
    %v4049 = vmul.f32 %v4048, 2.0
    %v4050 = vsub.f32 %v4049, 1.0
    %v4051 = vmul.f32 %v4048, %v3544
    %4053 = vrot.lane.b32.xlu0 %v4050, 64
    %v4054 = vpop.permute.xlu0 %4053
    %v4056 = vmul.f32 %v4048, %v4054
    %4058 = vrot.lane.b32.xlu0 %v4056, 32
    %v4059 = vpop.permute.xlu0 %4058
    %v4061 = vadd.f32 %v4051, %v4059
    %v4062 = vtanh.pop %v4061
    %4064 = vrot.lane.b32.xlu0 %v4062, 64
    %v4065 = vpop.permute.xlu0 %4064
    %v4067 = vmul.f32 %v4048, %v4065
    %4068 = vmatprep.subr.mxu0 0.0
    %4069 = vmatpush1.msra.mxu0 %v132
    %4070 = vmatprep.subr.mxu0 0.0
    %4071 = vmatpush1.msra.mxu0 %v133
    %4072 = vmatprep.subr.mxu0 0.0
    %4073 = vmatpush1.msra.mxu0 %v134
    %4074 = vmatprep.subr.mxu0 0.0
    %4075 = vmatpush1.msra.mxu0 %v135
    %4076 = vmatprep.subr.mxu0 0.0
    %4077 = vmatpush1.msra.mxu0 0.0
    %4078 = vmatprep.subr.mxu0 0.0
    %4079 = vmatpush1.msra.mxu0 0.0
    %4080 = vmatprep.subr.mxu0 0.0
    %4081 = vmatpush1.msra.mxu0 0.0
    %4082 = vmatprep.subr.mxu0 0.0
    %4083 = vmatpush1.msra.mxu0 0.0
    %4084 = vmatprep.subr.mxu0 0.0
    %4085 = vmatpush1.msra.mxu0 0.0
    %4086 = vmatprep.subr.mxu0 0.0
    %4087 = vmatpush1.msra.mxu0 0.0
    %4088 = vmatprep.subr.mxu0 0.0
    %4089 = vmatpush1.msra.mxu0 0.0
    %4090 = vmatprep.subr.mxu0 0.0
    %4091 = vmatpush1.msra.mxu0 0.0
    %4092 = vmatprep.subr.mxu0 0.0
    %4093 = vmatpush1.msra.mxu0 0.0
    %4094 = vmatprep.subr.mxu0 0.0
    %4095 = vmatpush1.msra.mxu0 0.0
    %4096 = vmatprep.subr.mxu0 0.0
    %4097 = vmatpush1.msra.mxu0 0.0
    %4098 = vmatprep.subr.mxu0 0.0
    %4099 = vmatpush1.msra.mxu0 0.0
    %4100 = vmatprep.subr.mxu0 0.0
    %4101 = vmatpush1.msra.mxu0 0.0
    %4102 = vmatprep.subr.mxu0 0.0
    %4103 = vmatpush1.msra.mxu0 0.0
    %4104 = vmatprep.subr.mxu0 0.0
    %4105 = vmatpush1.msra.mxu0 0.0
    %4106 = vmatprep.subr.mxu0 0.0
    %4107 = vmatpush1.msra.mxu0 0.0
    %4108 = vmatprep.subr.mxu0 0.0
    %4109 = vmatpush1.msra.mxu0 0.0
    %4110 = vmatprep.subr.mxu0 0.0
    %4111 = vmatpush1.msra.mxu0 0.0
    %4112 = vmatprep.subr.mxu0 0.0
    %4113 = vmatpush1.msra.mxu0 0.0
    %4114 = vmatprep.subr.mxu0 0.0
    %4115 = vmatpush1.msra.mxu0 0.0
    %4116 = vmatprep.subr.mxu0 0.0
    %4117 = vmatpush1.msra.mxu0 0.0
    %4118 = vmatprep.subr.mxu0 0.0
    %4119 = vmatpush1.msra.mxu0 0.0
    %4120 = vmatprep.subr.mxu0 0.0
    %4121 = vmatpush1.msra.mxu0 0.0
    %4122 = vmatprep.subr.mxu0 0.0
    %4123 = vmatpush1.msra.mxu0 0.0
    %4124 = vmatprep.subr.mxu0 0.0
    %4125 = vmatpush1.msra.mxu0 0.0
    %4126 = vmatprep.subr.mxu0 0.0
    %4127 = vmatpush1.msra.mxu0 0.0
    %4128 = vmatprep.subr.mxu0 0.0
    %4129 = vmatpush1.msra.mxu0 0.0
    %4130 = vmatprep.subr.mxu0 0.0
    %4131 = vmatpush1.msra.mxu0 0.0
    %4132 = vmatprep.mubr.f32.mxu0 0.0
    %4133 = vmatmul.mubr.f32.gmra.mrb[0].mxu0 %v3796
    %v4134 = vpop.f32.mrb[0].mxu0
    %v4135 = vadd.f32 0.0, %v4134
    %v4136 = vpop.f32.mrb[0].mxu0
    %4137 = vdwg.mxu0
    %4139 = vrot.lane.b32.xlu0 %v4067, 32
    %v4140 = vpop.permute.xlu0 %4139
    %v4141 = vsel %vm209, %v4140, 0
    %4143 = vmatprep.subr.mxu0 0.0
    %4144 = vmatpush1.msra.mxu0 %v128
    %4145 = vmatprep.subr.mxu0 0.0
    %4146 = vmatpush1.msra.mxu0 %v129
    %4147 = vmatprep.subr.mxu0 0.0
    %4148 = vmatpush1.msra.mxu0 %v130
    %4149 = vmatprep.subr.mxu0 0.0
    %4150 = vmatpush1.msra.mxu0 %v131
    %4151 = vmatprep.subr.mxu0 0.0
    %4152 = vmatpush1.msra.mxu0 0.0
    %4153 = vmatprep.subr.mxu0 0.0
    %4154 = vmatpush1.msra.mxu0 0.0
    %4155 = vmatprep.subr.mxu0 0.0
    %4156 = vmatpush1.msra.mxu0 0.0
    %4157 = vmatprep.subr.mxu0 0.0
    %4158 = vmatpush1.msra.mxu0 0.0
    %4159 = vmatprep.subr.mxu0 0.0
    %4160 = vmatpush1.msra.mxu0 0.0
    %4161 = vmatprep.subr.mxu0 0.0
    %4162 = vmatpush1.msra.mxu0 0.0
    %4163 = vmatprep.subr.mxu0 0.0
    %4164 = vmatpush1.msra.mxu0 0.0
    %4165 = vmatprep.subr.mxu0 0.0
    %4166 = vmatpush1.msra.mxu0 0.0
    %4167 = vmatprep.subr.mxu0 0.0
    %4168 = vmatpush1.msra.mxu0 0.0
    %4169 = vmatprep.subr.mxu0 0.0
    %4170 = vmatpush1.msra.mxu0 0.0
    %4171 = vmatprep.subr.mxu0 0.0
    %4172 = vmatpush1.msra.mxu0 0.0
    %4173 = vmatprep.subr.mxu0 0.0
    %4174 = vmatpush1.msra.mxu0 0.0
    %4175 = vmatprep.subr.mxu0 0.0
    %4176 = vmatpush1.msra.mxu0 0.0
    %4177 = vmatprep.subr.mxu0 0.0
    %4178 = vmatpush1.msra.mxu0 0.0
    %4179 = vmatprep.subr.mxu0 0.0
    %4180 = vmatpush1.msra.mxu0 0.0
    %4181 = vmatprep.subr.mxu0 0.0
    %4182 = vmatpush1.msra.mxu0 0.0
    %4183 = vmatprep.subr.mxu0 0.0
    %4184 = vmatpush1.msra.mxu0 0.0
    %4185 = vmatprep.subr.mxu0 0.0
    %4186 = vmatpush1.msra.mxu0 0.0
    %4187 = vmatprep.subr.mxu0 0.0
    %4188 = vmatpush1.msra.mxu0 0.0
    %4189 = vmatprep.subr.mxu0 0.0
    %4190 = vmatpush1.msra.mxu0 0.0
    %4191 = vmatprep.subr.mxu0 0.0
    %4192 = vmatpush1.msra.mxu0 0.0
    %4193 = vmatprep.subr.mxu0 0.0
    %4194 = vmatpush1.msra.mxu0 0.0
    %4195 = vmatprep.subr.mxu0 0.0
    %4196 = vmatpush1.msra.mxu0 0.0
    %4197 = vmatprep.subr.mxu0 0.0
    %4198 = vmatpush1.msra.mxu0 0.0
    %4199 = vmatprep.subr.mxu0 0.0
    %4200 = vmatpush1.msra.mxu0 0.0
    %4201 = vmatprep.subr.mxu0 0.0
    %4202 = vmatpush1.msra.mxu0 0.0
    %4203 = vmatprep.subr.mxu0 0.0
    %4204 = vmatpush1.msra.mxu0 0.0
    %4205 = vmatprep.subr.mxu0 0.0
    %4206 = vmatpush1.msra.mxu0 0.0
    %4207 = vmatprep.mubr.f32.mxu0 0.0
    %4208 = vmatmul.mubr.f32.gmra.mrb[0].mxu0 %v4141
    %v4209 = vpop.f32.mrb[0].mxu0
    %v4210 = vadd.f32 %v4135, %v4209
    %v4211 = vpop.f32.mrb[0].mxu0
    %4212 = vdwg.mxu0
    %v4213 = vadd.f32 %v4210, %v173
    %v4214 = vxor.u32 %v4213, 2147483648
    %v4215 = vmul.f32 %v4214, 1.442695
    %v4216 = vpow.pop %v4215
    %v4217 = vadd.f32 %v4216, 1.0
    %v4218 = vrcp.pop %v4217
    %v4219 = vmul.f32 1.0, %v4218
    %v4220 = vmul.f32 %v4219, 2.0
    %v4221 = vsub.f32 %v4220, 1.0
    %v4222 = vmul.f32 %v4219, %v3715
    %4224 = vrot.lane.b32.xlu0 %v4221, 64
    %v4225 = vpop.permute.xlu0 %4224
    %v4227 = vmul.f32 %v4219, %v4225
    %4229 = vrot.lane.b32.xlu0 %v4227, 32
    %v4230 = vpop.permute.xlu0 %4229
    %v4232 = vadd.f32 %v4222, %v4230
    %v4233 = vtanh.pop %v4232
    %4235 = vrot.lane.b32.xlu0 %v4233, 64
    %v4236 = vpop.permute.xlu0 %4235
    %v4238 = vmul.f32 %v4219, %v4236
    %4239 = vmatprep.subr.mxu0 %v145
    %4240 = vmatpush1.msra.mxu0 %v144
    %4241 = vmatprep.subr.mxu0 %v147
    %4242 = vmatpush1.msra.mxu0 %v146
    %4243 = vmatprep.subr.mxu0 %v149
    %4244 = vmatpush1.msra.mxu0 %v148
    %4245 = vmatprep.subr.mxu0 %v151
    %4246 = vmatpush1.msra.mxu0 %v150
    %4247 = vmatprep.subr.mxu0 %v153
    %4248 = vmatpush1.msra.mxu0 %v152
    %4249 = vmatprep.subr.mxu0 %v155
    %4250 = vmatpush1.msra.mxu0 %v154
    %4251 = vmatprep.subr.mxu0 %v157
    %4252 = vmatpush1.msra.mxu0 %v156
    %4253 = vmatprep.subr.mxu0 %v159
    %4254 = vmatpush1.msra.mxu0 %v158
    %4255 = vmatprep.subr.mxu0 0.0
    %4256 = vmatpush1.msra.mxu0 0.0
    %4257 = vmatprep.subr.mxu0 0.0
    %4258 = vmatpush1.msra.mxu0 0.0
    %4259 = vmatprep.subr.mxu0 0.0
    %4260 = vmatpush1.msra.mxu0 0.0
    %4261 = vmatprep.subr.mxu0 0.0
    %4262 = vmatpush1.msra.mxu0 0.0
    %4263 = vmatprep.subr.mxu0 0.0
    %4264 = vmatpush1.msra.mxu0 0.0
    %4265 = vmatprep.subr.mxu0 0.0
    %4266 = vmatpush1.msra.mxu0 0.0
    %4267 = vmatprep.subr.mxu0 0.0
    %4268 = vmatpush1.msra.mxu0 0.0
    %4269 = vmatprep.subr.mxu0 0.0
    %4270 = vmatpush1.msra.mxu0 0.0
    %4271 = vmatprep.subr.mxu0 0.0
    %4272 = vmatpush1.msra.mxu0 0.0
    %4273 = vmatprep.subr.mxu0 0.0
    %4274 = vmatpush1.msra.mxu0 0.0
    %4275 = vmatprep.subr.mxu0 0.0
    %4276 = vmatpush1.msra.mxu0 0.0
    %4277 = vmatprep.subr.mxu0 0.0
    %4278 = vmatpush1.msra.mxu0 0.0
    %4279 = vmatprep.subr.mxu0 0.0
    %4280 = vmatpush1.msra.mxu0 0.0
    %4281 = vmatprep.subr.mxu0 0.0
    %4282 = vmatpush1.msra.mxu0 0.0
    %4283 = vmatprep.subr.mxu0 0.0
    %4284 = vmatpush1.msra.mxu0 0.0
    %4285 = vmatprep.subr.mxu0 0.0
    %4286 = vmatpush1.msra.mxu0 0.0
    %4287 = vmatprep.subr.mxu0 0.0
    %4288 = vmatpush1.msra.mxu0 0.0
    %4289 = vmatprep.subr.mxu0 0.0
    %4290 = vmatpush1.msra.mxu0 0.0
    %4291 = vmatprep.subr.mxu0 0.0
    %4292 = vmatpush1.msra.mxu0 0.0
    %4293 = vmatprep.subr.mxu0 0.0
    %4294 = vmatpush1.msra.mxu0 0.0
    %4295 = vmatprep.subr.mxu0 0.0
    %4296 = vmatpush1.msra.mxu0 0.0
    %4297 = vmatprep.subr.mxu0 0.0
    %4298 = vmatpush1.msra.mxu0 0.0
    %4299 = vmatprep.subr.mxu0 0.0
    %4300 = vmatpush1.msra.mxu0 0.0
    %4301 = vmatprep.subr.mxu0 0.0
    %4302 = vmatpush1.msra.mxu0 0.0
    %4303 = vmatprep.mubr.f32.mxu0 0.0
    %4304 = vmatmul.mubr.f32.gmra.mrb[0].mxu0 %v3897
    %v4305 = vpop.f32.mrb[0].mxu0
    %v4306 = vadd.f32 0.0, %v4305
    %v4307 = vpop.f32.mrb[0].mxu0
    %v4308 = vadd.f32 0.0, %v4307
    %4309 = vdwg.mxu0
    %4311 = vrot.lane.b32.xlu0 %v4238, 32
    %v4312 = vpop.permute.xlu0 %4311
    %v4313 = vsel %vm209, %v4312, 0
    %4315 = vmatprep.subr.mxu0 %v137
    %4316 = vmatpush1.msra.mxu0 %v136
    %4317 = vmatprep.subr.mxu0 %v139
    %4318 = vmatpush1.msra.mxu0 %v138
    %4319 = vmatprep.subr.mxu0 %v141
    %4320 = vmatpush1.msra.mxu0 %v140
    %4321 = vmatprep.subr.mxu0 %v143
    %4322 = vmatpush1.msra.mxu0 %v142
    %4323 = vmatprep.subr.mxu0 0.0
    %4324 = vmatpush1.msra.mxu0 0.0
    %4325 = vmatprep.subr.mxu0 0.0
    %4326 = vmatpush1.msra.mxu0 0.0
    %4327 = vmatprep.subr.mxu0 0.0
    %4328 = vmatpush1.msra.mxu0 0.0
    %4329 = vmatprep.subr.mxu0 0.0
    %4330 = vmatpush1.msra.mxu0 0.0
    %4331 = vmatprep.subr.mxu0 0.0
    %4332 = vmatpush1.msra.mxu0 0.0
    %4333 = vmatprep.subr.mxu0 0.0
    %4334 = vmatpush1.msra.mxu0 0.0
    %4335 = vmatprep.subr.mxu0 0.0
    %4336 = vmatpush1.msra.mxu0 0.0
    %4337 = vmatprep.subr.mxu0 0.0
    %4338 = vmatpush1.msra.mxu0 0.0
    %4339 = vmatprep.subr.mxu0 0.0
    %4340 = vmatpush1.msra.mxu0 0.0
    %4341 = vmatprep.subr.mxu0 0.0
    %4342 = vmatpush1.msra.mxu0 0.0
    %4343 = vmatprep.subr.mxu0 0.0
    %4344 = vmatpush1.msra.mxu0 0.0
    %4345 = vmatprep.subr.mxu0 0.0
    %4346 = vmatpush1.msra.mxu0 0.0
    %4347 = vmatprep.subr.mxu0 0.0
    %4348 = vmatpush1.msra.mxu0 0.0
    %4349 = vmatprep.subr.mxu0 0.0
    %4350 = vmatpush1.msra.mxu0 0.0
    %4351 = vmatprep.subr.mxu0 0.0
    %4352 = vmatpush1.msra.mxu0 0.0
    %4353 = vmatprep.subr.mxu0 0.0
    %4354 = vmatpush1.msra.mxu0 0.0
    %4355 = vmatprep.subr.mxu0 0.0
    %4356 = vmatpush1.msra.mxu0 0.0
    %4357 = vmatprep.subr.mxu0 0.0
    %4358 = vmatpush1.msra.mxu0 0.0
    %4359 = vmatprep.subr.mxu0 0.0
    %4360 = vmatpush1.msra.mxu0 0.0
    %4361 = vmatprep.subr.mxu0 0.0
    %4362 = vmatpush1.msra.mxu0 0.0
    %4363 = vmatprep.subr.mxu0 0.0
    %4364 = vmatpush1.msra.mxu0 0.0
    %4365 = vmatprep.subr.mxu0 0.0
    %4366 = vmatpush1.msra.mxu0 0.0
    %4367 = vmatprep.subr.mxu0 0.0
    %4368 = vmatpush1.msra.mxu0 0.0
    %4369 = vmatprep.subr.mxu0 0.0
    %4370 = vmatpush1.msra.mxu0 0.0
    %4371 = vmatprep.subr.mxu0 0.0
    %4372 = vmatpush1.msra.mxu0 0.0
    %4373 = vmatprep.subr.mxu0 0.0
    %4374 = vmatpush1.msra.mxu0 0.0
    %4375 = vmatprep.subr.mxu0 0.0
    %4376 = vmatpush1.msra.mxu0 0.0
    %4377 = vmatprep.subr.mxu0 0.0
    %4378 = vmatpush1.msra.mxu0 0.0
    %4379 = vmatprep.mubr.f32.mxu0 0.0
    %4380 = vmatmul.mubr.f32.gmra.mrb[0].mxu0 %v4313
    %v4381 = vpop.f32.mrb[0].mxu0
    %v4382 = vadd.f32 %v4306, %v4381
    %v4383 = vpop.f32.mrb[0].mxu0
    %v4384 = vadd.f32 %v4308, %v4383
    %4385 = vdwg.mxu0
    %v4386 = vadd.f32 %v4382, %v180
    %v4387 = vadd.f32 %v4384, %v184
    %v4388 = vxor.u32 %v4386, 2147483648
    %v4389 = vxor.u32 %v4387, 2147483648
    %v4390 = vmul.f32 %v4388, 1.442695
    %v4391 = vpow.pop %v4390
    %v4392 = vmul.f32 %v4389, 1.442695
    %v4393 = vpow.pop %v4392
    %v4394 = vadd.f32 %v4391, 1.0
    %v4395 = vadd.f32 %v4393, 1.0
    %v4396 = vrcp.pop %v4394
    %v4397 = vmul.f32 1.0, %v4396
    %v4398 = vrcp.pop %v4395
    %v4399 = vmul.f32 1.0, %v4398
    %v4400 = vmul.f32 %v4399, 2.0
    %v4401 = vsub.f32 %v4400, 1.0
    %v4402 = vmul.f32 %v4397, %v3891
    %v4403 = vmul.f32 %v4397, %v4401
    %4405 = vrot.lane.b32.xlu0 %v4403, 64
    %v4406 = vpop.permute.xlu0 %4405
    %v4408 = vadd.f32 %v4402, %v4406
    %v4409 = vtanh.pop %v4408
    %v4410 = vmul.f32 %v4399, %v4409
    %4412 = vrot.lane.b32.xlu0 %v4410, 64
    %v4413 = vpop.permute.xlu0 %4412
    %v4414 = vsel %vm618, %v4413, 0
    %4416 = vmatprep.subr.mxu0 0.0
    %4417 = vmatpush1.msra.mxu0 %v160
    %4418 = vmatprep.subr.mxu0 0.0
    %4419 = vmatpush1.msra.mxu0 %v161
    %4420 = vmatprep.subr.mxu0 0.0
    %4421 = vmatpush1.msra.mxu0 %v162
    %4422 = vmatprep.subr.mxu0 0.0
    %4423 = vmatpush1.msra.mxu0 %v163
    %4424 = vmatprep.subr.mxu0 0.0
    %4425 = vmatpush1.msra.mxu0 %v164
    %4426 = vmatprep.subr.mxu0 0.0
    %4427 = vmatpush1.msra.mxu0 %v165
    %4428 = vmatprep.subr.mxu0 0.0
    %4429 = vmatpush1.msra.mxu0 %v166
    %4430 = vmatprep.subr.mxu0 0.0
    %4431 = vmatpush1.msra.mxu0 %v167
    %4432 = vmatprep.subr.mxu0 0.0
    %4433 = vmatpush1.msra.mxu0 0.0
    %4434 = vmatprep.subr.mxu0 0.0
    %4435 = vmatpush1.msra.mxu0 0.0
    %4436 = vmatprep.subr.mxu0 0.0
    %4437 = vmatpush1.msra.mxu0 0.0
    %4438 = vmatprep.subr.mxu0 0.0
    %4439 = vmatpush1.msra.mxu0 0.0
    %4440 = vmatprep.subr.mxu0 0.0
    %4441 = vmatpush1.msra.mxu0 0.0
    %4442 = vmatprep.subr.mxu0 0.0
    %4443 = vmatpush1.msra.mxu0 0.0
    %4444 = vmatprep.subr.mxu0 0.0
    %4445 = vmatpush1.msra.mxu0 0.0
    %4446 = vmatprep.subr.mxu0 0.0
    %4447 = vmatpush1.msra.mxu0 0.0
    %4448 = vmatprep.subr.mxu0 0.0
    %4449 = vmatpush1.msra.mxu0 0.0
    %4450 = vmatprep.subr.mxu0 0.0
    %4451 = vmatpush1.msra.mxu0 0.0
    %4452 = vmatprep.subr.mxu0 0.0
    %4453 = vmatpush1.msra.mxu0 0.0
    %4454 = vmatprep.subr.mxu0 0.0
    %4455 = vmatpush1.msra.mxu0 0.0
    %4456 = vmatprep.subr.mxu0 0.0
    %4457 = vmatpush1.msra.mxu0 0.0
    %4458 = vmatprep.subr.mxu0 0.0
    %4459 = vmatpush1.msra.mxu0 0.0
    %4460 = vmatprep.subr.mxu0 0.0
    %4461 = vmatpush1.msra.mxu0 0.0
    %4462 = vmatprep.subr.mxu0 0.0
    %4463 = vmatpush1.msra.mxu0 0.0
    %4464 = vmatprep.subr.mxu0 0.0
    %4465 = vmatpush1.msra.mxu0 0.0
    %4466 = vmatprep.subr.mxu0 0.0
    %4467 = vmatpush1.msra.mxu0 0.0
    %4468 = vmatprep.subr.mxu0 0.0
    %4469 = vmatpush1.msra.mxu0 0.0
    %4470 = vmatprep.subr.mxu0 0.0
    %4471 = vmatpush1.msra.mxu0 0.0
    %4472 = vmatprep.subr.mxu0 0.0
    %4473 = vmatpush1.msra.mxu0 0.0
    %4474 = vmatprep.subr.mxu0 0.0
    %4475 = vmatpush1.msra.mxu0 0.0
    %4476 = vmatprep.subr.mxu0 0.0
    %4477 = vmatpush1.msra.mxu0 0.0
    %4478 = vmatprep.subr.mxu0 0.0
    %4479 = vmatpush1.msra.mxu0 0.0
    %4480 = vmatprep.mubr.f32.mxu0 0.0
    %4481 = vmatmul.mubr.f32.gmra.mrb[0].mxu0 %v4414
    %v4482 = vpop.f32.mrb[0].mxu0
    %v4483 = vadd.f32 %v192, %v4482
    %v4484 = vpop.f32.mrb[0].mxu0
    %4485 = vdwg.mxu0
    %s4486 = scalar_lea.vmem [#allocation14], 56
    %4487 = vst.msk [vmem:[%s4486] sm:$0xff] %vm209, %v4483
    // Predicated region
    $region74: #{tpu_custom_call.1} parent=1 // pred_check
      _
    $region75: #{tpu_custom_call.1} parent=1 // pred_check_branch
      %4489 = sbr.rel (0) target = $region77
    $region76: #{tpu_custom_call.1} parent=1 // pred_region
      %s4491 = ssub.s32 1024, 1024
      %4492 = vsyncadd [#allocation5], %s4491
      %s4493 = sshll.u32 [#allocation14], 4
      %s4494 = int_to_ptr.vmem [resolvable:$true] %s4493
      %4499 = dma.vmem_to_hbm [thread:$0]  %s4494, 1024, %s12, [#allocation5], 128, 128, 8
    $region77: #{tpu_custom_call.1} parent=1 // pred_fallthru
      _
    // Predicated region
    $region78: #{tpu_custom_call.1} parent=1 // pred_check
      _
    $region79: #{tpu_custom_call.1} parent=1 // pred_check_branch
      %4501 = sbr.rel (0) target = $region81
    $region80: #{tpu_custom_call.1} parent=1 // pred_region
      %4502 = dma.done [#allocation5], 1024
    $region81: #{tpu_custom_call.1} parent=1 // pred_fallthru
      _
    %4503 = vsyncpa [#allocation4], 1
    %4504 = vsyncpa [#allocation7], 1
    %4505 = vsyncpa [#allocation10], 1
    %4506 = vsyncpa [#allocation13], 1
    %4507 = vsyncpa [#allocation5], 1

</llo_original>
